<compile_context>
chip_gen: v7x
topology: tpu7x:2x2x1
jax: 0.10.0
libtpu: 0.0.40
codegen_flags: <defaults>
</compile_context>

<pallas_src>
import functools

import jax
import jax.numpy as jnp
from jax.experimental import pallas as pl
from jax.experimental.pallas import tpu as pltpu


_VMEM_LIMIT = 32 * 1024 * 1024   # explicit scoped-VMEM budget (safe on v5e/v6e/v7x)
BN_EPS = 1e-5
LAYER_CFG = [(1, 0), (2, 1), (2, 1), (2, 1), (2, 1)]   # (stride, padding) per layer


# --------------------------------------------------------------------------
# Small helpers
# --------------------------------------------------------------------------
def _round_up(v, m):
    return ((v + m - 1) // m) * m


def _largest_divisor_leq(n, cap):
    t = min(n, cap)
    while n % t:
        t -= 1
    return t


# --------------------------------------------------------------------------
# Pallas kernels
# --------------------------------------------------------------------------
def _matmul_kernel(x_ref, w_ref, o_ref):
    # bf16 x bf16 -> f32 accumulation on the MXU.
    o_ref[...] = jnp.dot(x_ref[...], w_ref[...],
                         preferred_element_type=jnp.float32)


def pallas_matmul(x_bf16, w_bf16):
    """(M, K) @ (K, N) -> (M, N) f32.  K is a single block; grid over (M, N)."""
    M, K = x_bf16.shape
    K2, N = w_bf16.shape
    assert K == K2
    tm = _largest_divisor_leq(M, 512)
    tn = _largest_divisor_leq(N, 256)
    # Make sure there are >= 2 grid steps so both TensorCores get work on v7x.
    if (M // tm) * (N // tn) < 2:
        if tm % 2 == 0 and tm >= 16:
            tm //= 2
        elif tn % 2 == 0 and tn >= 256:
            tn //= 2
    grid = (M // tm, N // tn)
    return pl.pallas_call(
        _matmul_kernel,
        out_shape=jax.ShapeDtypeStruct((M, N), jnp.float32),
        grid=grid,
        in_specs=[pl.BlockSpec((tm, K), lambda i, j: (i, 0)),
                  pl.BlockSpec((K, tn), lambda i, j: (0, j))],
        out_specs=pl.BlockSpec((tm, tn), lambda i, j: (i, j)),
        compiler_params=pltpu.CompilerParams(
            dimension_semantics=("parallel", "parallel"),
            vmem_limit_bytes=_VMEM_LIMIT),
    )(x_bf16, w_bf16)


def _bn_stats_kernel(y_ref, s_ref, q_ref):
    # s_ref: per-column sum, q_ref: per-column sum of squares (both resident).
    @pl.when(pl.program_id(0) == 0)
    def _():
        s_ref[...] = jnp.zeros_like(s_ref)
        q_ref[...] = jnp.zeros_like(q_ref)

    y = y_ref[...]
    s_ref[...] += jnp.sum(y, axis=0, keepdims=True)
    q_ref[...] += jnp.sum(y * y, axis=0, keepdims=True)


def pallas_bn_stats(y2d):
    """y2d: (R, L) f32  ->  (sum, sumsq) each (1, L) f32."""
    R, L = y2d.shape
    tr = _largest_divisor_leq(R, 512)
    return pl.pallas_call(
        _bn_stats_kernel,
        out_shape=(jax.ShapeDtypeStruct((1, L), jnp.float32),
                   jax.ShapeDtypeStruct((1, L), jnp.float32)),
        grid=(R // tr,),
        in_specs=[pl.BlockSpec((tr, L), lambda i: (i, 0))],
        out_specs=[pl.BlockSpec((1, L), lambda i: (0, 0)),
                   pl.BlockSpec((1, L), lambda i: (0, 0))],
        compiler_params=pltpu.CompilerParams(
            dimension_semantics=("arbitrary",),
            vmem_limit_bytes=_VMEM_LIMIT),
    )(y2d)


def _affine_act_kernel(y_ref, sc_ref, sh_ref, o_ref, *, act):
    z = y_ref[...] * sc_ref[...] + sh_ref[...]      # f32 math
    if act == "relu":
        z = jnp.maximum(z, 0.0)
    elif act == "tanh":
        z = jnp.tanh(z)
    o_ref[...] = z.astype(o_ref.dtype)


def pallas_affine_act(y2d, scale, shift, act, out_dtype):
    """y2d: (R, L) f32, scale/shift: (1, L) f32 -> (R, L) out_dtype."""
    R, L = y2d.shape
    tr = _largest_divisor_leq(R, 512)
    return pl.pallas_call(
        functools.partial(_affine_act_kernel, act=act),
        out_shape=jax.ShapeDtypeStruct((R, L), out_dtype),
        grid=(R // tr,),
        in_specs=[pl.BlockSpec((tr, L), lambda i: (i, 0)),
                  pl.BlockSpec((1, L), lambda i: (0, 0)),
                  pl.BlockSpec((1, L), lambda i: (0, 0))],
        out_specs=pl.BlockSpec((tr, L), lambda i: (i, 0)),
        compiler_params=pltpu.CompilerParams(
            dimension_semantics=("parallel",),
            vmem_limit_bytes=_VMEM_LIMIT),
    )(y2d, scale, shift)


# --------------------------------------------------------------------------
# XLA glue: scatter-free col2im overlap-add
# --------------------------------------------------------------------------
def _dilate(t, s):
    """Zero-interleave spatial dims of (N,H,W,C) with stride s (scatter-free)."""
    N_, H_, W_, C_ = t.shape
    tw = jnp.concatenate(
        [t[:, :, :, None, :], jnp.zeros((N_, H_, W_, s - 1, C_), t.dtype)], axis=3)
    tw = tw.reshape(N_, H_, W_ * s, C_)[:, :, :(W_ - 1) * s + 1, :]
    Wd = tw.shape[2]
    th = jnp.concatenate(
        [tw[:, :, None, :, :], jnp.zeros((N_, H_, s - 1, Wd, C_), t.dtype)], axis=2)
    th = th.reshape(N_, H_ * s, Wd, C_)[:, :(H_ - 1) * s + 1, :, :]
    return th


def col2im(z, N, H, W, kh, kw, Cout, stride, padding):
    """z: (N*H*W, kh*kw*Cout) f32  ->  ConvTranspose output (N, Hout, Wout, Cout)."""
    z6 = z.reshape(N, H, W, kh, kw, Cout)
    Hd, Wd = (H - 1) * stride + 1, (W - 1) * stride + 1
    Hp, Wp = Hd + kh - 1, Wd + kw - 1
    Hout = (H - 1) * stride - 2 * padding + kh
    Wout = (W - 1) * stride - 2 * padding + kw
    out = jnp.zeros((N, Hp, Wp, Cout), jnp.float32)
    for i in range(kh):
        for j in range(kw):
            t = z6[:, :, :, i, j, :]
            if stride > 1:
                t = _dilate(t, stride)
            out = out + jnp.pad(
                t, ((0, 0), (i, kh - 1 - i), (j, kw - 1 - j), (0, 0)))
    y = out[:, padding:padding + Hout, padding:padding + Wout, :]
    return y, Hout, Wout


# --------------------------------------------------------------------------
# Generator forward (Pallas hot path)
# --------------------------------------------------------------------------
def generator_forward(x_nchw, params):
    n_layers = len(LAYER_CFG)
    x = jnp.transpose(x_nchw, (0, 2, 3, 1)).astype(jnp.float32)   # NCHW -> NHWC
    Nb, H, W, _ = x.shape
    x2d = x.reshape(Nb * H * W, -1)                               # (N*H*W, Cin)

    for li, (stride, padding) in enumerate(LAYER_CFG):
        w = params[f"w{li}"].astype(jnp.float32)                  # (Cin, Cout, kh, kw)
        Cin_l, Cout, kh, kw = w.shape
        last = (li == n_layers - 1)

        # --- channel padding for aligned / lane-dense tiles ---
        Kp = _round_up(Cin_l, 128) if Cin_l > 64 else Cin_l       # e.g. 100 -> 128
        Cout_p = _round_up(Cout, 8) if last else Cout             # 3 -> 8  =>  N=128
        if x2d.shape[1] != Kp:
            x2d = jnp.pad(x2d, ((0, 0), (0, Kp - x2d.shape[1])))
        wp = w
        if Kp != Cin_l:
            wp = jnp.pad(wp, ((0, Kp - Cin_l), (0, 0), (0, 0), (0, 0)))
        if Cout_p != Cout:
            wp = jnp.pad(wp, ((0, 0), (0, Cout_p - Cout), (0, 0), (0, 0)))
        # ConvTranspose weight (Cin,Cout,kh,kw) -> GEMM weight (Kp, kh*kw*Cout_p)
        Wm = jnp.transpose(wp, (0, 2, 3, 1)).reshape(Kp, kh * kw * Cout_p)

        # --- Pallas GEMM (bf16 inputs, f32 accumulation) ---
        z = pallas_matmul(x2d.astype(jnp.bfloat16), Wm.astype(jnp.bfloat16))

        # --- overlap-add to the ConvTranspose output (XLA glue, scatter-free) ---
        y, Hout, Wout = col2im(z, Nb, H, W, kh, kw, Cout_p, stride, padding)
        R, L = Nb * Hout, Wout * Cout_p
        y2d = y.reshape(R, L)                                     # lane-dense view

        if not last:
            # BatchNorm2d (training-mode batch stats, matching a fresh nn.Module) + ReLU
            ssum, ssq = pallas_bn_stats(y2d)
            count = float(R * Wout)                               # N*Hout*Wout
            ch_sum = ssum.reshape(Wout, Cout_p).sum(axis=0)
            ch_sq = ssq.reshape(Wout, Cout_p).sum(axis=0)
            mean = ch_sum / count
            var = ch_sq / count - mean * mean
            # NOTE: gamma ~ N(0, 0.02) mirrors the module's init_weights (intentional).
            gamma, beta = params[f"gamma{li}"], params[f"beta{li}"]
            inv = gamma / jnp.sqrt(var + BN_EPS)
            scale = jnp.tile(inv, Wout)[None, :].astype(jnp.float32)
            shift = jnp.tile(beta - mean * inv, Wout)[None, :].astype(jnp.float32)
            # bf16 output: feeds the next GEMM directly (no extra cast pass).
            out2d = pallas_affine_act(y2d, scale, shift, "relu", jnp.bfloat16)
            # (N*H, W*C) and (N*H*W, C) share the same memory layout -> free reshape.
            x2d = out2d.reshape(Nb * Hout * Wout, Cout_p)
            H, W = Hout, Wout
        else:
            bias = params["bias_last"]
            if Cout_p != Cout:
                bias = jnp.pad(bias, (0, Cout_p - Cout))
            scale = jnp.ones((1, L), jnp.float32)
            shift = jnp.tile(bias, Wout)[None, :].astype(jnp.float32)
            out2d = pallas_affine_act(y2d, scale, shift, "tanh", jnp.float32)
            out = out2d.reshape(Nb, Hout, Wout, Cout_p)[:, :, :, :Cout]
            return jnp.transpose(out, (0, 3, 1, 2))               # back to NCHW


# --------------------------------------------------------------------------
# Pure-JAX reference (independent conv path via lax.conv_general_dilated)
# --------------------------------------------------------------------------
def reference_forward(x_nchw, params):
    x = jnp.transpose(x_nchw, (0, 2, 3, 1)).astype(jnp.float32)
    n_layers = len(LAYER_CFG)
    for li, (stride, padding) in enumerate(LAYER_CFG):
        w = params[f"w{li}"]                             # (Cin, Cout, k, k)
        k = w.shape[2]
        rhs = jnp.transpose(jnp.flip(w, axis=(2, 3)), (2, 3, 0, 1))   # HWIO
        pad = k - 1 - padding
        y = jax.lax.conv_general_dilated(
            x, rhs, window_strides=(1, 1),
            padding=[(pad, pad), (pad, pad)],
            lhs_dilation=(stride, stride),
            dimension_numbers=("NHWC", "HWIO", "NHWC"))
        if li < n_layers - 1:
            mean = jnp.mean(y, axis=(0, 1, 2))
            var = jnp.var(y, axis=(0, 1, 2))
            gamma, beta = params[f"gamma{li}"], params[f"beta{li}"]
            y = (y - mean) / jnp.sqrt(var + BN_EPS) * gamma + beta
            y = jnp.maximum(y, 0.0)
        else:
            y = jnp.tanh(y + params["bias_last"])
        x = y
    return jnp.transpose(x, (0, 3, 1, 2))


# --------------------------------------------------------------------------
# Deterministic parameter init (mirrors Generator.init_weights, scaled down)
# --------------------------------------------------------------------------
def make_params(key, chans, k=4):
    params = {}
    n_layers = len(chans) - 1
    for li in range(n_layers):
        cin, cout = chans[li], chans[li + 1]
        key, kw_, kg_ = jax.random.split(key, 3)
        params[f"w{li}"] = 0.02 * jax.random.normal(
            kw_, (cin, cout, k, k), jnp.float32)          # ConvTranspose2d weight
        if li < n_layers - 1:
            params[f"gamma{li}"] = 0.02 * jax.random.normal(
                kg_, (cout,), jnp.float32)                # BatchNorm weight (per init_weights)
            params[f"beta{li}"] = jnp.zeros((cout,), jnp.float32)
    # last layer has bias=True (default PyTorch init: uniform(-b, b), b=1/sqrt(fan_in))
    key, kb = jax.random.split(key)
    cin_last = chans[-2]
    b = 1.0 / jnp.sqrt(cin_last * k * k)
    params["bias_last"] = jax.random.uniform(
        kb, (chans[-1],), jnp.float32, minval=-b, maxval=b)
    return params


# --------------------------------------------------------------------------
if __name__ == "__main__":
    key = jax.random.PRNGKey(0)
    noise_dim = 100
    input_channels = 3
    batch = 2
    # scaled-down channel widths (1024,512,256,128 -> 128,64,32,16)
    chans = [noise_dim, 128, 64, 32, 16, input_channels]

    kx, kp = jax.random.split(key)
    params = make_params(kp, chans)
    x = jax.random.normal(kx, (batch, noise_dim, 1, 1), jnp.float32)

    gen_fn = jax.jit(generator_forward)
    out = jax.block_until_ready(gen_fn(x, params))
    assert out.shape == (batch, input_channels, 64, 64), out.shape

    ref = jax.block_until_ready(jax.jit(reference_forward)(x, params))
    rel_err = jnp.linalg.norm(out - ref) / (jnp.linalg.norm(ref) + 1e-12)
    assert float(rel_err) < 3e-2, f"relative error too large: {float(rel_err)}"

    print("KERNEL_OK")
</pallas_src>

<mosaic_0001>
module attributes {stable_mosaic.version = 11 : i64} {
  func.func @_matmul_kernel(%arg0: i32, %arg1: i32, %arg2: memref<2x128xbf16, #tpu.memory_space<vmem>>, %arg3: memref<128x256xbf16, #tpu.memory_space<vmem>>, %arg4: memref<2x256xf32, #tpu.memory_space<vmem>>) attributes {dimension_semantics = [#tpu.dimension_semantics<parallel>, #tpu.dimension_semantics<parallel>], iteration_bounds = array<i64: 1, 8>, scalar_prefetch = 0 : i64, scratch_operands = 0 : i64, tpu.core_type = #tpu.core_type<tc>, window_params = [{transform_indices = @transform_0, window_bounds = array<i64: 2, 128>}, {transform_indices = @transform_1, window_bounds = array<i64: 128, 256>}, {transform_indices = @transform_2, window_bounds = array<i64: 2, 256>}]} {
    %c0 = arith.constant 0 : index
    %c0_0 = arith.constant 0 : index
    %0 = vector.load %arg2[%c0, %c0_0] : memref<2x128xbf16, #tpu.memory_space<vmem>>, vector<2x128xbf16>
    %c0_1 = arith.constant 0 : index
    %c0_2 = arith.constant 0 : index
    %1 = vector.load %arg3[%c0_1, %c0_2] : memref<128x256xbf16, #tpu.memory_space<vmem>>, vector<128x256xbf16>
    %cst = arith.constant dense<0.000000e+00> : vector<2x256xf32>
    %2 = tpu.matmul %0, %1, %cst {dimension_numbers = #tpu.dot_dimension_numbers<[1], [0], [0], [1], [0, 0, 1, 1], [], []>} : vector<2x128xbf16>, vector<128x256xbf16>, vector<2x256xf32> -> vector<2x256xf32>
    %c0_3 = arith.constant 0 : index
    %c0_4 = arith.constant 0 : index
    %3 = vector.load %arg4[%c0_3, %c0_4] : memref<2x256xf32, #tpu.memory_space<vmem>>, vector<2x256xf32>
    tpu.vector_store %arg4[%c0_3, %c0_4], %2 {strides = array<i32>} : memref<2x256xf32, #tpu.memory_space<vmem>>, vector<2x256xf32>,
    return
  }
  func.func @transform_0(%arg0: i32, %arg1: i32) -> (i32, i32) {
    %c0_i32 = arith.constant 0 : i32
    %c0_i32_0 = arith.constant 0 : i32
    return %arg0, %c0_i32 : i32, i32
  }
  func.func @transform_1(%arg0: i32, %arg1: i32) -> (i32, i32) {
    %c0_i32 = arith.constant 0 : i32
    %c0_i32_0 = arith.constant 0 : i32
    return %c0_i32, %arg1 : i32, i32
  }
  func.func @transform_2(%arg0: i32, %arg1: i32) -> (i32, i32) {
    %c0_i32 = arith.constant 0 : i32
    return %arg0, %arg1 : i32, i32
  }
}

module attributes {stable_mosaic.version = 11 : i64} {
  func.func @_bn_stats_kernel(%arg0: i32, %arg1: memref<8x512xf32, #tpu.memory_space<vmem>>, %arg2: memref<1x512xf32, #tpu.memory_space<vmem>>, %arg3: memref<1x512xf32, #tpu.memory_space<vmem>>) attributes {dimension_semantics = [#tpu.dimension_semantics<arbitrary>], iteration_bounds = array<i64: 1>, scalar_prefetch = 0 : i64, scratch_operands = 0 : i64, tpu.core_type = #tpu.core_type<tc>, window_params = [{transform_indices = @transform_0, window_bounds = array<i64: 8, 512>}, {pipeline_mode = #tpu.pipeline_mode<synchronous>, transform_indices = @transform_1, window_bounds = array<i64: 1, 512>}, {pipeline_mode = #tpu.pipeline_mode<synchronous>, transform_indices = @transform_2, window_bounds = array<i64: 1, 512>}]} {
    %c0_i32 = arith.constant 0 : i32
    %0 = arith.cmpi eq, %arg0, %c0_i32 : i32
    %1 = arith.extui %0 : i1 to i32
    %c0_i32_0 = arith.constant 0 : i32
    %2 = arith.cmpi ne, %1, %c0_i32_0 : i32
    scf.if %2 {
      %cst_11 = arith.constant 0.000000e+00 : f32
      %15 = vector.broadcast %cst_11 : f32 to vector<1x512xf32>
      %c0_12 = arith.constant 0 : index
      %c0_13 = arith.constant 0 : index
      %16 = vector.load %arg2[%c0_12, %c0_13] : memref<1x512xf32, #tpu.memory_space<vmem>>, vector<1x512xf32>
      tpu.vector_store %arg2[%c0_12, %c0_13], %15 {strides = array<i32>} : memref<1x512xf32, #tpu.memory_space<vmem>>, vector<1x512xf32>,
      %cst_14 = arith.constant 0.000000e+00 : f32
      %17 = vector.broadcast %cst_14 : f32 to vector<1x512xf32>
      %c0_15 = arith.constant 0 : index
      %c0_16 = arith.constant 0 : index
      %18 = vector.load %arg3[%c0_15, %c0_16] : memref<1x512xf32, #tpu.memory_space<vmem>>, vector<1x512xf32>
      tpu.vector_store %arg3[%c0_15, %c0_16], %17 {strides = array<i32>} : memref<1x512xf32, #tpu.memory_space<vmem>>, vector<1x512xf32>,
    } else {
    }
    %c0 = arith.constant 0 : index
    %c0_1 = arith.constant 0 : index
    %3 = vector.load %arg1[%c0, %c0_1] : memref<8x512xf32, #tpu.memory_space<vmem>>, vector<8x512xf32>
    %c0_2 = arith.constant 0 : index
    %c0_3 = arith.constant 0 : index
    %4 = vector.load %arg2[%c0_2, %c0_3] : memref<1x512xf32, #tpu.memory_space<vmem>>, vector<1x512xf32>
    %cst = arith.constant dense<0.000000e+00> : vector<512xf32>
    %5 = vector.multi_reduction <add>, %3, %cst [0] : vector<8x512xf32> to vector<512xf32>
    %6 = vector.shape_cast %5 : vector<512xf32> to vector<1x512xf32>
    %7 = arith.addf %4, %6 : vector<1x512xf32>
    %c0_4 = arith.constant 0 : index
    %c0_5 = arith.constant 0 : index
    %8 = vector.load %arg2[%c0_4, %c0_5] : memref<1x512xf32, #tpu.memory_space<vmem>>, vector<1x512xf32>
    tpu.vector_store %arg2[%c0_4, %c0_5], %7 {strides = array<i32>} : memref<1x512xf32, #tpu.memory_space<vmem>>, vector<1x512xf32>,
    %c0_6 = arith.constant 0 : index
    %c0_7 = arith.constant 0 : index
    %9 = vector.load %arg3[%c0_6, %c0_7] : memref<1x512xf32, #tpu.memory_space<vmem>>, vector<1x512xf32>
    %10 = arith.mulf %3, %3 : vector<8x512xf32>
    %cst_8 = arith.constant dense<0.000000e+00> : vector<512xf32>
    %11 = vector.multi_reduction <add>, %10, %cst_8 [0] : vector<8x512xf32> to vector<512xf32>
    %12 = vector.shape_cast %11 : vector<512xf32> to vector<1x512xf32>
    %13 = arith.addf %9, %12 : vector<1x512xf32>
    %c0_9 = arith.constant 0 : index
    %c0_10 = arith.constant 0 : index
    %14 = vector.load %arg3[%c0_9, %c0_10] : memref<1x512xf32, #tpu.memory_space<vmem>>, vector<1x512xf32>
    tpu.vector_store %arg3[%c0_9, %c0_10], %13 {strides = array<i32>} : memref<1x512xf32, #tpu.memory_space<vmem>>, vector<1x512xf32>,
    return
  }
  func.func @transform_0(%arg0: i32) -> (i32, i32) {
    %c0_i32 = arith.constant 0 : i32
    %c0_i32_0 = arith.constant 0 : i32
    return %arg0, %c0_i32 : i32, i32
  }
  func.func @transform_1(%arg0: i32) -> (i32, i32) {
    %c0_i32 = arith.constant 0 : i32
    %c0_i32_0 = arith.constant 0 : i32
    %c0_i32_1 = arith.constant 0 : i32
    return %c0_i32, %c0_i32_0 : i32, i32
  }
  func.func @transform_2(%arg0: i32) -> (i32, i32) {
    %c0_i32 = arith.constant 0 : i32
    %c0_i32_0 = arith.constant 0 : i32
    %c0_i32_1 = arith.constant 0 : i32
    return %c0_i32, %c0_i32_0 : i32, i32
  }
}

module attributes {stable_mosaic.version = 11 : i64} {
  func.func @_affine_act_kernel(%arg0: i32, %arg1: memref<8x512xf32, #tpu.memory_space<vmem>>, %arg2: memref<1x512xf32, #tpu.memory_space<vmem>>, %arg3: memref<1x512xf32, #tpu.memory_space<vmem>>, %arg4: memref<8x512xbf16, #tpu.memory_space<vmem>>) attributes {dimension_semantics = [#tpu.dimension_semantics<parallel>], iteration_bounds = array<i64: 1>, scalar_prefetch = 0 : i64, scratch_operands = 0 : i64, tpu.core_type = #tpu.core_type<tc>, window_params = [{transform_indices = @transform_0, window_bounds = array<i64: 8, 512>}, {pipeline_mode = #tpu.pipeline_mode<synchronous>, transform_indices = @transform_1, window_bounds = array<i64: 1, 512>}, {pipeline_mode = #tpu.pipeline_mode<synchronous>, transform_indices = @transform_2, window_bounds = array<i64: 1, 512>}, {transform_indices = @transform_3, window_bounds = array<i64: 8, 512>}]} {
    %c0 = arith.constant 0 : index
    %c0_0 = arith.constant 0 : index
    %0 = vector.load %arg1[%c0, %c0_0] : memref<8x512xf32, #tpu.memory_space<vmem>>, vector<8x512xf32>
    %c0_1 = arith.constant 0 : index
    %c0_2 = arith.constant 0 : index
    %1 = vector.load %arg2[%c0_1, %c0_2] : memref<1x512xf32, #tpu.memory_space<vmem>>, vector<1x512xf32>
    %2 = vector.broadcast %1 : vector<1x512xf32> to vector<8x512xf32>
    %3 = arith.mulf %0, %2 : vector<8x512xf32>
    %c0_3 = arith.constant 0 : index
    %c0_4 = arith.constant 0 : index
    %4 = vector.load %arg3[%c0_3, %c0_4] : memref<1x512xf32, #tpu.memory_space<vmem>>, vector<1x512xf32>
    %5 = vector.broadcast %4 : vector<1x512xf32> to vector<8x512xf32>
    %6 = arith.addf %3, %5 : vector<8x512xf32>
    %cst = arith.constant 0.000000e+00 : f32
    %7 = vector.broadcast %cst : f32 to vector<8x512xf32>
    %8 = arith.maximumf %6, %7 : vector<8x512xf32>
    %9 = arith.truncf %8 : vector<8x512xf32> to vector<8x512xbf16>
    %c0_5 = arith.constant 0 : index
    %c0_6 = arith.constant 0 : index
    %10 = vector.load %arg4[%c0_5, %c0_6] : memref<8x512xbf16, #tpu.memory_space<vmem>>, vector<8x512xbf16>
    tpu.vector_store %arg4[%c0_5, %c0_6], %9 {strides = array<i32>} : memref<8x512xbf16, #tpu.memory_space<vmem>>, vector<8x512xbf16>,
    return
  }
  func.func @transform_0(%arg0: i32) -> (i32, i32) {
    %c0_i32 = arith.constant 0 : i32
    %c0_i32_0 = arith.constant 0 : i32
    return %arg0, %c0_i32 : i32, i32
  }
  func.func @transform_1(%arg0: i32) -> (i32, i32) {
    %c0_i32 = arith.constant 0 : i32
    %c0_i32_0 = arith.constant 0 : i32
    %c0_i32_1 = arith.constant 0 : i32
    return %c0_i32, %c0_i32_0 : i32, i32
  }
  func.func @transform_2(%arg0: i32) -> (i32, i32) {
    %c0_i32 = arith.constant 0 : i32
    %c0_i32_0 = arith.constant 0 : i32
    %c0_i32_1 = arith.constant 0 : i32
    return %c0_i32, %c0_i32_0 : i32, i32
  }
  func.func @transform_3(%arg0: i32) -> (i32, i32) {
    %c0_i32 = arith.constant 0 : i32
    %c0_i32_0 = arith.constant 0 : i32
    return %arg0, %c0_i32 : i32, i32
  }
}

module attributes {stable_mosaic.version = 11 : i64} {
  func.func @_matmul_kernel(%arg0: i32, %arg1: i32, %arg2: memref<32x128xbf16, #tpu.memory_space<vmem>>, %arg3: memref<128x256xbf16, #tpu.memory_space<vmem>>, %arg4: memref<32x256xf32, #tpu.memory_space<vmem>>) attributes {dimension_semantics = [#tpu.dimension_semantics<parallel>, #tpu.dimension_semantics<parallel>], iteration_bounds = array<i64: 1, 4>, scalar_prefetch = 0 : i64, scratch_operands = 0 : i64, tpu.core_type = #tpu.core_type<tc>, window_params = [{transform_indices = @transform_0, window_bounds = array<i64: 32, 128>}, {transform_indices = @transform_1, window_bounds = array<i64: 128, 256>}, {transform_indices = @transform_2, window_bounds = array<i64: 32, 256>}]} {
    %c0 = arith.constant 0 : index
    %c0_0 = arith.constant 0 : index
    %0 = vector.load %arg2[%c0, %c0_0] : memref<32x128xbf16, #tpu.memory_space<vmem>>, vector<32x128xbf16>
    %c0_1 = arith.constant 0 : index
    %c0_2 = arith.constant 0 : index
    %1 = vector.load %arg3[%c0_1, %c0_2] : memref<128x256xbf16, #tpu.memory_space<vmem>>, vector<128x256xbf16>
    %cst = arith.constant dense<0.000000e+00> : vector<32x256xf32>
    %2 = tpu.matmul %0, %1, %cst {dimension_numbers = #tpu.dot_dimension_numbers<[1], [0], [0], [1], [0, 0, 1, 1], [], []>} : vector<32x128xbf16>, vector<128x256xbf16>, vector<32x256xf32> -> vector<32x256xf32>
    %c0_3 = arith.constant 0 : index
    %c0_4 = arith.constant 0 : index
    %3 = vector.load %arg4[%c0_3, %c0_4] : memref<32x256xf32, #tpu.memory_space<vmem>>, vector<32x256xf32>
    tpu.vector_store %arg4[%c0_3, %c0_4], %2 {strides = array<i32>} : memref<32x256xf32, #tpu.memory_space<vmem>>, vector<32x256xf32>,
    return
  }
  func.func @transform_0(%arg0: i32, %arg1: i32) -> (i32, i32) {
    %c0_i32 = arith.constant 0 : i32
    %c0_i32_0 = arith.constant 0 : i32
    return %arg0, %c0_i32 : i32, i32
  }
  func.func @transform_1(%arg0: i32, %arg1: i32) -> (i32, i32) {
    %c0_i32 = arith.constant 0 : i32
    %c0_i32_0 = arith.constant 0 : i32
    return %c0_i32, %arg1 : i32, i32
  }
  func.func @transform_2(%arg0: i32, %arg1: i32) -> (i32, i32) {
    %c0_i32 = arith.constant 0 : i32
    return %arg0, %arg1 : i32, i32
  }
}

module attributes {stable_mosaic.version = 11 : i64} {
  func.func @_bn_stats_kernel(%arg0: i32, %arg1: memref<16x512xf32, #tpu.memory_space<vmem>>, %arg2: memref<1x512xf32, #tpu.memory_space<vmem>>, %arg3: memref<1x512xf32, #tpu.memory_space<vmem>>) attributes {dimension_semantics = [#tpu.dimension_semantics<arbitrary>], iteration_bounds = array<i64: 1>, scalar_prefetch = 0 : i64, scratch_operands = 0 : i64, tpu.core_type = #tpu.core_type<tc>, window_params = [{transform_indices = @transform_0, window_bounds = array<i64: 16, 512>}, {pipeline_mode = #tpu.pipeline_mode<synchronous>, transform_indices = @transform_1, window_bounds = array<i64: 1, 512>}, {pipeline_mode = #tpu.pipeline_mode<synchronous>, transform_indices = @transform_2, window_bounds = array<i64: 1, 512>}]} {
    %c0_i32 = arith.constant 0 : i32
    %0 = arith.cmpi eq, %arg0, %c0_i32 : i32
    %1 = arith.extui %0 : i1 to i32
    %c0_i32_0 = arith.constant 0 : i32
    %2 = arith.cmpi ne, %1, %c0_i32_0 : i32
    scf.if %2 {
      %cst_11 = arith.constant 0.000000e+00 : f32
      %15 = vector.broadcast %cst_11 : f32 to vector<1x512xf32>
      %c0_12 = arith.constant 0 : index
      %c0_13 = arith.constant 0 : index
      %16 = vector.load %arg2[%c0_12, %c0_13] : memref<1x512xf32, #tpu.memory_space<vmem>>, vector<1x512xf32>
      tpu.vector_store %arg2[%c0_12, %c0_13], %15 {strides = array<i32>} : memref<1x512xf32, #tpu.memory_space<vmem>>, vector<1x512xf32>,
      %cst_14 = arith.constant 0.000000e+00 : f32
      %17 = vector.broadcast %cst_14 : f32 to vector<1x512xf32>
      %c0_15 = arith.constant 0 : index
      %c0_16 = arith.constant 0 : index
      %18 = vector.load %arg3[%c0_15, %c0_16] : memref<1x512xf32, #tpu.memory_space<vmem>>, vector<1x512xf32>
      tpu.vector_store %arg3[%c0_15, %c0_16], %17 {strides = array<i32>} : memref<1x512xf32, #tpu.memory_space<vmem>>, vector<1x512xf32>,
    } else {
    }
    %c0 = arith.constant 0 : index
    %c0_1 = arith.constant 0 : index
    %3 = vector.load %arg1[%c0, %c0_1] : memref<16x512xf32, #tpu.memory_space<vmem>>, vector<16x512xf32>
    %c0_2 = arith.constant 0 : index
    %c0_3 = arith.constant 0 : index
    %4 = vector.load %arg2[%c0_2, %c0_3] : memref<1x512xf32, #tpu.memory_space<vmem>>, vector<1x512xf32>
    %cst = arith.constant dense<0.000000e+00> : vector<512xf32>
    %5 = vector.multi_reduction <add>, %3, %cst [0] : vector<16x512xf32> to vector<512xf32>
    %6 = vector.shape_cast %5 : vector<512xf32> to vector<1x512xf32>
    %7 = arith.addf %4, %6 : vector<1x512xf32>
    %c0_4 = arith.constant 0 : index
    %c0_5 = arith.constant 0 : index
    %8 = vector.load %arg2[%c0_4, %c0_5] : memref<1x512xf32, #tpu.memory_space<vmem>>, vector<1x512xf32>
    tpu.vector_store %arg2[%c0_4, %c0_5], %7 {strides = array<i32>} : memref<1x512xf32, #tpu.memory_space<vmem>>, vector<1x512xf32>,
    %c0_6 = arith.constant 0 : index
    %c0_7 = arith.constant 0 : index
    %9 = vector.load %arg3[%c0_6, %c0_7] : memref<1x512xf32, #tpu.memory_space<vmem>>, vector<1x512xf32>
    %10 = arith.mulf %3, %3 : vector<16x512xf32>
    %cst_8 = arith.constant dense<0.000000e+00> : vector<512xf32>
    %11 = vector.multi_reduction <add>, %10, %cst_8 [0] : vector<16x512xf32> to vector<512xf32>
    %12 = vector.shape_cast %11 : vector<512xf32> to vector<1x512xf32>
    %13 = arith.addf %9, %12 : vector<1x512xf32>
    %c0_9 = arith.constant 0 : index
    %c0_10 = arith.constant 0 : index
    %14 = vector.load %arg3[%c0_9, %c0_10] : memref<1x512xf32, #tpu.memory_space<vmem>>, vector<1x512xf32>
    tpu.vector_store %arg3[%c0_9, %c0_10], %13 {strides = array<i32>} : memref<1x512xf32, #tpu.memory_space<vmem>>, vector<1x512xf32>,
    return
  }
  func.func @transform_0(%arg0: i32) -> (i32, i32) {
    %c0_i32 = arith.constant 0 : i32
    %c0_i32_0 = arith.constant 0 : i32
    return %arg0, %c0_i32 : i32, i32
  }
  func.func @transform_1(%arg0: i32) -> (i32, i32) {
    %c0_i32 = arith.constant 0 : i32
    %c0_i32_0 = arith.constant 0 : i32
    %c0_i32_1 = arith.constant 0 : i32
    return %c0_i32, %c0_i32_0 : i32, i32
  }
  func.func @transform_2(%arg0: i32) -> (i32, i32) {
    %c0_i32 = arith.constant 0 : i32
    %c0_i32_0 = arith.constant 0 : i32
    %c0_i32_1 = arith.constant 0 : i32
    return %c0_i32, %c0_i32_0 : i32, i32
  }
}

module attributes {stable_mosaic.version = 11 : i64} {
  func.func @_affine_act_kernel(%arg0: i32, %arg1: memref<16x512xf32, #tpu.memory_space<vmem>>, %arg2: memref<1x512xf32, #tpu.memory_space<vmem>>, %arg3: memref<1x512xf32, #tpu.memory_space<vmem>>, %arg4: memref<16x512xbf16, #tpu.memory_space<vmem>>) attributes {dimension_semantics = [#tpu.dimension_semantics<parallel>], iteration_bounds = array<i64: 1>, scalar_prefetch = 0 : i64, scratch_operands = 0 : i64, tpu.core_type = #tpu.core_type<tc>, window_params = [{transform_indices = @transform_0, window_bounds = array<i64: 16, 512>}, {pipeline_mode = #tpu.pipeline_mode<synchronous>, transform_indices = @transform_1, window_bounds = array<i64: 1, 512>}, {pipeline_mode = #tpu.pipeline_mode<synchronous>, transform_indices = @transform_2, window_bounds = array<i64: 1, 512>}, {transform_indices = @transform_3, window_bounds = array<i64: 16, 512>}]} {
    %c0 = arith.constant 0 : index
    %c0_0 = arith.constant 0 : index
    %0 = vector.load %arg1[%c0, %c0_0] : memref<16x512xf32, #tpu.memory_space<vmem>>, vector<16x512xf32>
    %c0_1 = arith.constant 0 : index
    %c0_2 = arith.constant 0 : index
    %1 = vector.load %arg2[%c0_1, %c0_2] : memref<1x512xf32, #tpu.memory_space<vmem>>, vector<1x512xf32>
    %2 = vector.broadcast %1 : vector<1x512xf32> to vector<16x512xf32>
    %3 = arith.mulf %0, %2 : vector<16x512xf32>
    %c0_3 = arith.constant 0 : index
    %c0_4 = arith.constant 0 : index
    %4 = vector.load %arg3[%c0_3, %c0_4] : memref<1x512xf32, #tpu.memory_space<vmem>>, vector<1x512xf32>
    %5 = vector.broadcast %4 : vector<1x512xf32> to vector<16x512xf32>
    %6 = arith.addf %3, %5 : vector<16x512xf32>
    %cst = arith.constant 0.000000e+00 : f32
    %7 = vector.broadcast %cst : f32 to vector<16x512xf32>
    %8 = arith.maximumf %6, %7 : vector<16x512xf32>
    %9 = arith.truncf %8 : vector<16x512xf32> to vector<16x512xbf16>
    %c0_5 = arith.constant 0 : index
    %c0_6 = arith.constant 0 : index
    %10 = vector.load %arg4[%c0_5, %c0_6] : memref<16x512xbf16, #tpu.memory_space<vmem>>, vector<16x512xbf16>
    tpu.vector_store %arg4[%c0_5, %c0_6], %9 {strides = array<i32>} : memref<16x512xbf16, #tpu.memory_space<vmem>>, vector<16x512xbf16>,
    return
  }
  func.func @transform_0(%arg0: i32) -> (i32, i32) {
    %c0_i32 = arith.constant 0 : i32
    %c0_i32_0 = arith.constant 0 : i32
    return %arg0, %c0_i32 : i32, i32
  }
  func.func @transform_1(%arg0: i32) -> (i32, i32) {
    %c0_i32 = arith.constant 0 : i32
    %c0_i32_0 = arith.constant 0 : i32
    %c0_i32_1 = arith.constant 0 : i32
    return %c0_i32, %c0_i32_0 : i32, i32
  }
  func.func @transform_2(%arg0: i32) -> (i32, i32) {
    %c0_i32 = arith.constant 0 : i32
    %c0_i32_0 = arith.constant 0 : i32
    %c0_i32_1 = arith.constant 0 : i32
    return %c0_i32, %c0_i32_0 : i32, i32
  }
  func.func @transform_3(%arg0: i32) -> (i32, i32) {
    %c0_i32 = arith.constant 0 : i32
    %c0_i32_0 = arith.constant 0 : i32
    return %arg0, %c0_i32 : i32, i32
  }
}

module attributes {stable_mosaic.version = 11 : i64} {
  func.func @_matmul_kernel(%arg0: i32, %arg1: i32, %arg2: memref<128x64xbf16, #tpu.memory_space<vmem>>, %arg3: memref<64x256xbf16, #tpu.memory_space<vmem>>, %arg4: memref<128x256xf32, #tpu.memory_space<vmem>>) attributes {dimension_semantics = [#tpu.dimension_semantics<parallel>, #tpu.dimension_semantics<parallel>], iteration_bounds = array<i64: 1, 2>, scalar_prefetch = 0 : i64, scratch_operands = 0 : i64, tpu.core_type = #tpu.core_type<tc>, window_params = [{transform_indices = @transform_0, window_bounds = array<i64: 128, 64>}, {transform_indices = @transform_1, window_bounds = array<i64: 64, 256>}, {transform_indices = @transform_2, window_bounds = array<i64: 128, 256>}]} {
    %c0 = arith.constant 0 : index
    %c0_0 = arith.constant 0 : index
    %0 = vector.load %arg2[%c0, %c0_0] : memref<128x64xbf16, #tpu.memory_space<vmem>>, vector<128x64xbf16>
    %c0_1 = arith.constant 0 : index
    %c0_2 = arith.constant 0 : index
    %1 = vector.load %arg3[%c0_1, %c0_2] : memref<64x256xbf16, #tpu.memory_space<vmem>>, vector<64x256xbf16>
    %cst = arith.constant dense<0.000000e+00> : vector<128x256xf32>
    %2 = tpu.matmul %0, %1, %cst {dimension_numbers = #tpu.dot_dimension_numbers<[1], [0], [0], [1], [0, 0, 1, 1], [], []>} : vector<128x64xbf16>, vector<64x256xbf16>, vector<128x256xf32> -> vector<128x256xf32>
    %c0_3 = arith.constant 0 : index
    %c0_4 = arith.constant 0 : index
    %3 = vector.load %arg4[%c0_3, %c0_4] : memref<128x256xf32, #tpu.memory_space<vmem>>, vector<128x256xf32>
    tpu.vector_store %arg4[%c0_3, %c0_4], %2 {strides = array<i32>} : memref<128x256xf32, #tpu.memory_space<vmem>>, vector<128x256xf32>,
    return
  }
  func.func @transform_0(%arg0: i32, %arg1: i32) -> (i32, i32) {
    %c0_i32 = arith.constant 0 : i32
    %c0_i32_0 = arith.constant 0 : i32
    return %arg0, %c0_i32 : i32, i32
  }
  func.func @transform_1(%arg0: i32, %arg1: i32) -> (i32, i32) {
    %c0_i32 = arith.constant 0 : i32
    %c0_i32_0 = arith.constant 0 : i32
    return %c0_i32, %arg1 : i32, i32
  }
  func.func @transform_2(%arg0: i32, %arg1: i32) -> (i32, i32) {
    %c0_i32 = arith.constant 0 : i32
    return %arg0, %arg1 : i32, i32
  }
}

module attributes {stable_mosaic.version = 11 : i64} {
  func.func @_bn_stats_kernel(%arg0: i32, %arg1: memref<32x512xf32, #tpu.memory_space<vmem>>, %arg2: memref<1x512xf32, #tpu.memory_space<vmem>>, %arg3: memref<1x512xf32, #tpu.memory_space<vmem>>) attributes {dimension_semantics = [#tpu.dimension_semantics<arbitrary>], iteration_bounds = array<i64: 1>, scalar_prefetch = 0 : i64, scratch_operands = 0 : i64, tpu.core_type = #tpu.core_type<tc>, window_params = [{transform_indices = @transform_0, window_bounds = array<i64: 32, 512>}, {pipeline_mode = #tpu.pipeline_mode<synchronous>, transform_indices = @transform_1, window_bounds = array<i64: 1, 512>}, {pipeline_mode = #tpu.pipeline_mode<synchronous>, transform_indices = @transform_2, window_bounds = array<i64: 1, 512>}]} {
    %c0_i32 = arith.constant 0 : i32
    %0 = arith.cmpi eq, %arg0, %c0_i32 : i32
    %1 = arith.extui %0 : i1 to i32
    %c0_i32_0 = arith.constant 0 : i32
    %2 = arith.cmpi ne, %1, %c0_i32_0 : i32
    scf.if %2 {
      %cst_11 = arith.constant 0.000000e+00 : f32
      %15 = vector.broadcast %cst_11 : f32 to vector<1x512xf32>
      %c0_12 = arith.constant 0 : index
      %c0_13 = arith.constant 0 : index
      %16 = vector.load %arg2[%c0_12, %c0_13] : memref<1x512xf32, #tpu.memory_space<vmem>>, vector<1x512xf32>
      tpu.vector_store %arg2[%c0_12, %c0_13], %15 {strides = array<i32>} : memref<1x512xf32, #tpu.memory_space<vmem>>, vector<1x512xf32>,
      %cst_14 = arith.constant 0.000000e+00 : f32
      %17 = vector.broadcast %cst_14 : f32 to vector<1x512xf32>
      %c0_15 = arith.constant 0 : index
      %c0_16 = arith.constant 0 : index
      %18 = vector.load %arg3[%c0_15, %c0_16] : memref<1x512xf32, #tpu.memory_space<vmem>>, vector<1x512xf32>
      tpu.vector_store %arg3[%c0_15, %c0_16], %17 {strides = array<i32>} : memref<1x512xf32, #tpu.memory_space<vmem>>, vector<1x512xf32>,
    } else {
    }
    %c0 = arith.constant 0 : index
    %c0_1 = arith.constant 0 : index
    %3 = vector.load %arg1[%c0, %c0_1] : memref<32x512xf32, #tpu.memory_space<vmem>>, vector<32x512xf32>
    %c0_2 = arith.constant 0 : index
    %c0_3 = arith.constant 0 : index
    %4 = vector.load %arg2[%c0_2, %c0_3] : memref<1x512xf32, #tpu.memory_space<vmem>>, vector<1x512xf32>
    %cst = arith.constant dense<0.000000e+00> : vector<512xf32>
    %5 = vector.multi_reduction <add>, %3, %cst [0] : vector<32x512xf32> to vector<512xf32>
    %6 = vector.shape_cast %5 : vector<512xf32> to vector<1x512xf32>
    %7 = arith.addf %4, %6 : vector<1x512xf32>
    %c0_4 = arith.constant 0 : index
    %c0_5 = arith.constant 0 : index
    %8 = vector.load %arg2[%c0_4, %c0_5] : memref<1x512xf32, #tpu.memory_space<vmem>>, vector<1x512xf32>
    tpu.vector_store %arg2[%c0_4, %c0_5], %7 {strides = array<i32>} : memref<1x512xf32, #tpu.memory_space<vmem>>, vector<1x512xf32>,
    %c0_6 = arith.constant 0 : index
    %c0_7 = arith.constant 0 : index
    %9 = vector.load %arg3[%c0_6, %c0_7] : memref<1x512xf32, #tpu.memory_space<vmem>>, vector<1x512xf32>
    %10 = arith.mulf %3, %3 : vector<32x512xf32>
    %cst_8 = arith.constant dense<0.000000e+00> : vector<512xf32>
    %11 = vector.multi_reduction <add>, %10, %cst_8 [0] : vector<32x512xf32> to vector<512xf32>
    %12 = vector.shape_cast %11 : vector<512xf32> to vector<1x512xf32>
    %13 = arith.addf %9, %12 : vector<1x512xf32>
    %c0_9 = arith.constant 0 : index
    %c0_10 = arith.constant 0 : index
    %14 = vector.load %arg3[%c0_9, %c0_10] : memref<1x512xf32, #tpu.memory_space<vmem>>, vector<1x512xf32>
    tpu.vector_store %arg3[%c0_9, %c0_10], %13 {strides = array<i32>} : memref<1x512xf32, #tpu.memory_space<vmem>>, vector<1x512xf32>,
    return
  }
  func.func @transform_0(%arg0: i32) -> (i32, i32) {
    %c0_i32 = arith.constant 0 : i32
    %c0_i32_0 = arith.constant 0 : i32
    return %arg0, %c0_i32 : i32, i32
  }
  func.func @transform_1(%arg0: i32) -> (i32, i32) {
    %c0_i32 = arith.constant 0 : i32
    %c0_i32_0 = arith.constant 0 : i32
    %c0_i32_1 = arith.constant 0 : i32
    return %c0_i32, %c0_i32_0 : i32, i32
  }
  func.func @transform_2(%arg0: i32) -> (i32, i32) {
    %c0_i32 = arith.constant 0 : i32
    %c0_i32_0 = arith.constant 0 : i32
    %c0_i32_1 = arith.constant 0 : i32
    return %c0_i32, %c0_i32_0 : i32, i32
  }
}

module attributes {stable_mosaic.version = 11 : i64} {
  func.func @_affine_act_kernel(%arg0: i32, %arg1: memref<32x512xf32, #tpu.memory_space<vmem>>, %arg2: memref<1x512xf32, #tpu.memory_space<vmem>>, %arg3: memref<1x512xf32, #tpu.memory_space<vmem>>, %arg4: memref<32x512xbf16, #tpu.memory_space<vmem>>) attributes {dimension_semantics = [#tpu.dimension_semantics<parallel>], iteration_bounds = array<i64: 1>, scalar_prefetch = 0 : i64, scratch_operands = 0 : i64, tpu.core_type = #tpu.core_type<tc>, window_params = [{transform_indices = @transform_0, window_bounds = array<i64: 32, 512>}, {pipeline_mode = #tpu.pipeline_mode<synchronous>, transform_indices = @transform_1, window_bounds = array<i64: 1, 512>}, {pipeline_mode = #tpu.pipeline_mode<synchronous>, transform_indices = @transform_2, window_bounds = array<i64: 1, 512>}, {transform_indices = @transform_3, window_bounds = array<i64: 32, 512>}]} {
    %c0 = arith.constant 0 : index
    %c0_0 = arith.constant 0 : index
    %0 = vector.load %arg1[%c0, %c0_0] : memref<32x512xf32, #tpu.memory_space<vmem>>, vector<32x512xf32>
    %c0_1 = arith.constant 0 : index
    %c0_2 = arith.constant 0 : index
    %1 = vector.load %arg2[%c0_1, %c0_2] : memref<1x512xf32, #tpu.memory_space<vmem>>, vector<1x512xf32>
    %2 = vector.broadcast %1 : vector<1x512xf32> to vector<32x512xf32>
    %3 = arith.mulf %0, %2 : vector<32x512xf32>
    %c0_3 = arith.constant 0 : index
    %c0_4 = arith.constant 0 : index
    %4 = vector.load %arg3[%c0_3, %c0_4] : memref<1x512xf32, #tpu.memory_space<vmem>>, vector<1x512xf32>
    %5 = vector.broadcast %4 : vector<1x512xf32> to vector<32x512xf32>
    %6 = arith.addf %3, %5 : vector<32x512xf32>
    %cst = arith.constant 0.000000e+00 : f32
    %7 = vector.broadcast %cst : f32 to vector<32x512xf32>
    %8 = arith.maximumf %6, %7 : vector<32x512xf32>
    %9 = arith.truncf %8 : vector<32x512xf32> to vector<32x512xbf16>
    %c0_5 = arith.constant 0 : index
    %c0_6 = arith.constant 0 : index
    %10 = vector.load %arg4[%c0_5, %c0_6] : memref<32x512xbf16, #tpu.memory_space<vmem>>, vector<32x512xbf16>
    tpu.vector_store %arg4[%c0_5, %c0_6], %9 {strides = array<i32>} : memref<32x512xbf16, #tpu.memory_space<vmem>>, vector<32x512xbf16>,
    return
  }
  func.func @transform_0(%arg0: i32) -> (i32, i32) {
    %c0_i32 = arith.constant 0 : i32
    %c0_i32_0 = arith.constant 0 : i32
    return %arg0, %c0_i32 : i32, i32
  }
  func.func @transform_1(%arg0: i32) -> (i32, i32) {
    %c0_i32 = arith.constant 0 : i32
    %c0_i32_0 = arith.constant 0 : i32
    %c0_i32_1 = arith.constant 0 : i32
    return %c0_i32, %c0_i32_0 : i32, i32
  }
  func.func @transform_2(%arg0: i32) -> (i32, i32) {
    %c0_i32 = arith.constant 0 : i32
    %c0_i32_0 = arith.constant 0 : i32
    %c0_i32_1 = arith.constant 0 : i32
    return %c0_i32, %c0_i32_0 : i32, i32
  }
  func.func @transform_3(%arg0: i32) -> (i32, i32) {
    %c0_i32 = arith.constant 0 : i32
    %c0_i32_0 = arith.constant 0 : i32
    return %arg0, %c0_i32 : i32, i32
  }
}

module attributes {stable_mosaic.version = 11 : i64} {
  func.func @_matmul_kernel(%arg0: i32, %arg1: i32, %arg2: memref<256x32xbf16, #tpu.memory_space<vmem>>, %arg3: memref<32x256xbf16, #tpu.memory_space<vmem>>, %arg4: memref<256x256xf32, #tpu.memory_space<vmem>>) attributes {dimension_semantics = [#tpu.dimension_semantics<parallel>, #tpu.dimension_semantics<parallel>], iteration_bounds = array<i64: 2, 1>, scalar_prefetch = 0 : i64, scratch_operands = 0 : i64, tpu.core_type = #tpu.core_type<tc>, window_params = [{transform_indices = @transform_0, window_bounds = array<i64: 256, 32>}, {transform_indices = @transform_1, window_bounds = array<i64: 32, 256>}, {transform_indices = @transform_2, window_bounds = array<i64: 256, 256>}]} {
    %c0 = arith.constant 0 : index
    %c0_0 = arith.constant 0 : index
    %0 = vector.load %arg2[%c0, %c0_0] : memref<256x32xbf16, #tpu.memory_space<vmem>>, vector<256x32xbf16>
    %c0_1 = arith.constant 0 : index
    %c0_2 = arith.constant 0 : index
    %1 = vector.load %arg3[%c0_1, %c0_2] : memref<32x256xbf16, #tpu.memory_space<vmem>>, vector<32x256xbf16>
    %cst = arith.constant dense<0.000000e+00> : vector<256x256xf32>
    %2 = tpu.matmul %0, %1, %cst {dimension_numbers = #tpu.dot_dimension_numbers<[1], [0], [0], [1], [0, 0, 1, 1], [], []>} : vector<256x32xbf16>, vector<32x256xbf16>, vector<256x256xf32> -> vector<256x256xf32>
    %c0_3 = arith.constant 0 : index
    %c0_4 = arith.constant 0 : index
    %3 = vector.load %arg4[%c0_3, %c0_4] : memref<256x256xf32, #tpu.memory_space<vmem>>, vector<256x256xf32>
    tpu.vector_store %arg4[%c0_3, %c0_4], %2 {strides = array<i32>} : memref<256x256xf32, #tpu.memory_space<vmem>>, vector<256x256xf32>,
    return
  }
  func.func @transform_0(%arg0: i32, %arg1: i32) -> (i32, i32) {
    %c0_i32 = arith.constant 0 : i32
    %c0_i32_0 = arith.constant 0 : i32
    return %arg0, %c0_i32 : i32, i32
  }
  func.func @transform_1(%arg0: i32, %arg1: i32) -> (i32, i32) {
    %c0_i32 = arith.constant 0 : i32
    %c0_i32_0 = arith.constant 0 : i32
    return %c0_i32, %arg1 : i32, i32
  }
  func.func @transform_2(%arg0: i32, %arg1: i32) -> (i32, i32) {
    %c0_i32 = arith.constant 0 : i32
    return %arg0, %arg1 : i32, i32
  }
}

module attributes {stable_mosaic.version = 11 : i64} {
  func.func @_bn_stats_kernel(%arg0: i32, %arg1: memref<64x512xf32, #tpu.memory_space<vmem>>, %arg2: memref<1x512xf32, #tpu.memory_space<vmem>>, %arg3: memref<1x512xf32, #tpu.memory_space<vmem>>) attributes {dimension_semantics = [#tpu.dimension_semantics<arbitrary>], iteration_bounds = array<i64: 1>, scalar_prefetch = 0 : i64, scratch_operands = 0 : i64, tpu.core_type = #tpu.core_type<tc>, window_params = [{transform_indices = @transform_0, window_bounds = array<i64: 64, 512>}, {pipeline_mode = #tpu.pipeline_mode<synchronous>, transform_indices = @transform_1, window_bounds = array<i64: 1, 512>}, {pipeline_mode = #tpu.pipeline_mode<synchronous>, transform_indices = @transform_2, window_bounds = array<i64: 1, 512>}]} {
    %c0_i32 = arith.constant 0 : i32
    %0 = arith.cmpi eq, %arg0, %c0_i32 : i32
    %1 = arith.extui %0 : i1 to i32
    %c0_i32_0 = arith.constant 0 : i32
    %2 = arith.cmpi ne, %1, %c0_i32_0 : i32
    scf.if %2 {
      %cst_11 = arith.constant 0.000000e+00 : f32
      %15 = vector.broadcast %cst_11 : f32 to vector<1x512xf32>
      %c0_12 = arith.constant 0 : index
      %c0_13 = arith.constant 0 : index
      %16 = vector.load %arg2[%c0_12, %c0_13] : memref<1x512xf32, #tpu.memory_space<vmem>>, vector<1x512xf32>
      tpu.vector_store %arg2[%c0_12, %c0_13], %15 {strides = array<i32>} : memref<1x512xf32, #tpu.memory_space<vmem>>, vector<1x512xf32>,
      %cst_14 = arith.constant 0.000000e+00 : f32
      %17 = vector.broadcast %cst_14 : f32 to vector<1x512xf32>
      %c0_15 = arith.constant 0 : index
      %c0_16 = arith.constant 0 : index
      %18 = vector.load %arg3[%c0_15, %c0_16] : memref<1x512xf32, #tpu.memory_space<vmem>>, vector<1x512xf32>
      tpu.vector_store %arg3[%c0_15, %c0_16], %17 {strides = array<i32>} : memref<1x512xf32, #tpu.memory_space<vmem>>, vector<1x512xf32>,
    } else {
    }
    %c0 = arith.constant 0 : index
    %c0_1 = arith.constant 0 : index
    %3 = vector.load %arg1[%c0, %c0_1] : memref<64x512xf32, #tpu.memory_space<vmem>>, vector<64x512xf32>
    %c0_2 = arith.constant 0 : index
    %c0_3 = arith.constant 0 : index
    %4 = vector.load %arg2[%c0_2, %c0_3] : memref<1x512xf32, #tpu.memory_space<vmem>>, vector<1x512xf32>
    %cst = arith.constant dense<0.000000e+00> : vector<512xf32>
    %5 = vector.multi_reduction <add>, %3, %cst [0] : vector<64x512xf32> to vector<512xf32>
    %6 = vector.shape_cast %5 : vector<512xf32> to vector<1x512xf32>
    %7 = arith.addf %4, %6 : vector<1x512xf32>
    %c0_4 = arith.constant 0 : index
    %c0_5 = arith.constant 0 : index
    %8 = vector.load %arg2[%c0_4, %c0_5] : memref<1x512xf32, #tpu.memory_space<vmem>>, vector<1x512xf32>
    tpu.vector_store %arg2[%c0_4, %c0_5], %7 {strides = array<i32>} : memref<1x512xf32, #tpu.memory_space<vmem>>, vector<1x512xf32>,
    %c0_6 = arith.constant 0 : index
    %c0_7 = arith.constant 0 : index
    %9 = vector.load %arg3[%c0_6, %c0_7] : memref<1x512xf32, #tpu.memory_space<vmem>>, vector<1x512xf32>
    %10 = arith.mulf %3, %3 : vector<64x512xf32>
    %cst_8 = arith.constant dense<0.000000e+00> : vector<512xf32>
    %11 = vector.multi_reduction <add>, %10, %cst_8 [0] : vector<64x512xf32> to vector<512xf32>
    %12 = vector.shape_cast %11 : vector<512xf32> to vector<1x512xf32>
    %13 = arith.addf %9, %12 : vector<1x512xf32>
    %c0_9 = arith.constant 0 : index
    %c0_10 = arith.constant 0 : index
    %14 = vector.load %arg3[%c0_9, %c0_10] : memref<1x512xf32, #tpu.memory_space<vmem>>, vector<1x512xf32>
    tpu.vector_store %arg3[%c0_9, %c0_10], %13 {strides = array<i32>} : memref<1x512xf32, #tpu.memory_space<vmem>>, vector<1x512xf32>,
    return
  }
  func.func @transform_0(%arg0: i32) -> (i32, i32) {
    %c0_i32 = arith.constant 0 : i32
    %c0_i32_0 = arith.constant 0 : i32
    return %arg0, %c0_i32 : i32, i32
  }
  func.func @transform_1(%arg0: i32) -> (i32, i32) {
    %c0_i32 = arith.constant 0 : i32
    %c0_i32_0 = arith.constant 0 : i32
    %c0_i32_1 = arith.constant 0 : i32
    return %c0_i32, %c0_i32_0 : i32, i32
  }
  func.func @transform_2(%arg0: i32) -> (i32, i32) {
    %c0_i32 = arith.constant 0 : i32
    %c0_i32_0 = arith.constant 0 : i32
    %c0_i32_1 = arith.constant 0 : i32
    return %c0_i32, %c0_i32_0 : i32, i32
  }
}

module attributes {stable_mosaic.version = 11 : i64} {
  func.func @_affine_act_kernel(%arg0: i32, %arg1: memref<64x512xf32, #tpu.memory_space<vmem>>, %arg2: memref<1x512xf32, #tpu.memory_space<vmem>>, %arg3: memref<1x512xf32, #tpu.memory_space<vmem>>, %arg4: memref<64x512xbf16, #tpu.memory_space<vmem>>) attributes {dimension_semantics = [#tpu.dimension_semantics<parallel>], iteration_bounds = array<i64: 1>, scalar_prefetch = 0 : i64, scratch_operands = 0 : i64, tpu.core_type = #tpu.core_type<tc>, window_params = [{transform_indices = @transform_0, window_bounds = array<i64: 64, 512>}, {pipeline_mode = #tpu.pipeline_mode<synchronous>, transform_indices = @transform_1, window_bounds = array<i64: 1, 512>}, {pipeline_mode = #tpu.pipeline_mode<synchronous>, transform_indices = @transform_2, window_bounds = array<i64: 1, 512>}, {transform_indices = @transform_3, window_bounds = array<i64: 64, 512>}]} {
    %c0 = arith.constant 0 : index
    %c0_0 = arith.constant 0 : index
    %0 = vector.load %arg1[%c0, %c0_0] : memref<64x512xf32, #tpu.memory_space<vmem>>, vector<64x512xf32>
    %c0_1 = arith.constant 0 : index
    %c0_2 = arith.constant 0 : index
    %1 = vector.load %arg2[%c0_1, %c0_2] : memref<1x512xf32, #tpu.memory_space<vmem>>, vector<1x512xf32>
    %2 = vector.broadcast %1 : vector<1x512xf32> to vector<64x512xf32>
    %3 = arith.mulf %0, %2 : vector<64x512xf32>
    %c0_3 = arith.constant 0 : index
    %c0_4 = arith.constant 0 : index
    %4 = vector.load %arg3[%c0_3, %c0_4] : memref<1x512xf32, #tpu.memory_space<vmem>>, vector<1x512xf32>
    %5 = vector.broadcast %4 : vector<1x512xf32> to vector<64x512xf32>
    %6 = arith.addf %3, %5 : vector<64x512xf32>
    %cst = arith.constant 0.000000e+00 : f32
    %7 = vector.broadcast %cst : f32 to vector<64x512xf32>
    %8 = arith.maximumf %6, %7 : vector<64x512xf32>
    %9 = arith.truncf %8 : vector<64x512xf32> to vector<64x512xbf16>
    %c0_5 = arith.constant 0 : index
    %c0_6 = arith.constant 0 : index
    %10 = vector.load %arg4[%c0_5, %c0_6] : memref<64x512xbf16, #tpu.memory_space<vmem>>, vector<64x512xbf16>
    tpu.vector_store %arg4[%c0_5, %c0_6], %9 {strides = array<i32>} : memref<64x512xbf16, #tpu.memory_space<vmem>>, vector<64x512xbf16>,
    return
  }
  func.func @transform_0(%arg0: i32) -> (i32, i32) {
    %c0_i32 = arith.constant 0 : i32
    %c0_i32_0 = arith.constant 0 : i32
    return %arg0, %c0_i32 : i32, i32
  }
  func.func @transform_1(%arg0: i32) -> (i32, i32) {
    %c0_i32 = arith.constant 0 : i32
    %c0_i32_0 = arith.constant 0 : i32
    %c0_i32_1 = arith.constant 0 : i32
    return %c0_i32, %c0_i32_0 : i32, i32
  }
  func.func @transform_2(%arg0: i32) -> (i32, i32) {
    %c0_i32 = arith.constant 0 : i32
    %c0_i32_0 = arith.constant 0 : i32
    %c0_i32_1 = arith.constant 0 : i32
    return %c0_i32, %c0_i32_0 : i32, i32
  }
  func.func @transform_3(%arg0: i32) -> (i32, i32) {
    %c0_i32 = arith.constant 0 : i32
    %c0_i32_0 = arith.constant 0 : i32
    return %arg0, %c0_i32 : i32, i32
  }
}

module attributes {stable_mosaic.version = 11 : i64} {
  func.func @_matmul_kernel(%arg0: i32, %arg1: i32, %arg2: memref<512x16xbf16, #tpu.memory_space<vmem>>, %arg3: memref<16x128xbf16, #tpu.memory_space<vmem>>, %arg4: memref<512x128xf32, #tpu.memory_space<vmem>>) attributes {dimension_semantics = [#tpu.dimension_semantics<parallel>, #tpu.dimension_semantics<parallel>], iteration_bounds = array<i64: 4, 1>, scalar_prefetch = 0 : i64, scratch_operands = 0 : i64, tpu.core_type = #tpu.core_type<tc>, window_params = [{transform_indices = @transform_0, window_bounds = array<i64: 512, 16>}, {transform_indices = @transform_1, window_bounds = array<i64: 16, 128>}, {transform_indices = @transform_2, window_bounds = array<i64: 512, 128>}]} {
    %c0 = arith.constant 0 : index
    %c0_0 = arith.constant 0 : index
    %0 = vector.load %arg2[%c0, %c0_0] : memref<512x16xbf16, #tpu.memory_space<vmem>>, vector<512x16xbf16>
    %c0_1 = arith.constant 0 : index
    %c0_2 = arith.constant 0 : index
    %1 = vector.load %arg3[%c0_1, %c0_2] : memref<16x128xbf16, #tpu.memory_space<vmem>>, vector<16x128xbf16>
    %cst = arith.constant dense<0.000000e+00> : vector<512x128xf32>
    %2 = tpu.matmul %0, %1, %cst {dimension_numbers = #tpu.dot_dimension_numbers<[1], [0], [0], [1], [0, 0, 1, 1], [], []>} : vector<512x16xbf16>, vector<16x128xbf16>, vector<512x128xf32> -> vector<512x128xf32>
    %c0_3 = arith.constant 0 : index
    %c0_4 = arith.constant 0 : index
    %3 = vector.load %arg4[%c0_3, %c0_4] : memref<512x128xf32, #tpu.memory_space<vmem>>, vector<512x128xf32>
    tpu.vector_store %arg4[%c0_3, %c0_4], %2 {strides = array<i32>} : memref<512x128xf32, #tpu.memory_space<vmem>>, vector<512x128xf32>,
    return
  }
  func.func @transform_0(%arg0: i32, %arg1: i32) -> (i32, i32) {
    %c0_i32 = arith.constant 0 : i32
    %c0_i32_0 = arith.constant 0 : i32
    return %arg0, %c0_i32 : i32, i32
  }
  func.func @transform_1(%arg0: i32, %arg1: i32) -> (i32, i32) {
    %c0_i32 = arith.constant 0 : i32
    %c0_i32_0 = arith.constant 0 : i32
    return %c0_i32, %arg1 : i32, i32
  }
  func.func @transform_2(%arg0: i32, %arg1: i32) -> (i32, i32) {
    %c0_i32 = arith.constant 0 : i32
    return %arg0, %arg1 : i32, i32
  }
}

module attributes {stable_mosaic.version = 11 : i64} {
  func.func @_affine_act_kernel(%arg0: i32, %arg1: memref<128x512xf32, #tpu.memory_space<vmem>>, %arg2: memref<1x512xf32, #tpu.memory_space<vmem>>, %arg3: memref<1x512xf32, #tpu.memory_space<vmem>>, %arg4: memref<128x512xf32, #tpu.memory_space<vmem>>) attributes {dimension_semantics = [#tpu.dimension_semantics<parallel>], iteration_bounds = array<i64: 1>, scalar_prefetch = 0 : i64, scratch_operands = 0 : i64, tpu.core_type = #tpu.core_type<tc>, window_params = [{transform_indices = @transform_0, window_bounds = array<i64: 128, 512>}, {pipeline_mode = #tpu.pipeline_mode<synchronous>, transform_indices = @transform_1, window_bounds = array<i64: 1, 512>}, {pipeline_mode = #tpu.pipeline_mode<synchronous>, transform_indices = @transform_2, window_bounds = array<i64: 1, 512>}, {transform_indices = @transform_3, window_bounds = array<i64: 128, 512>}]} {
    %c0 = arith.constant 0 : index
    %c0_0 = arith.constant 0 : index
    %0 = vector.load %arg1[%c0, %c0_0] : memref<128x512xf32, #tpu.memory_space<vmem>>, vector<128x512xf32>
    %c0_1 = arith.constant 0 : index
    %c0_2 = arith.constant 0 : index
    %1 = vector.load %arg2[%c0_1, %c0_2] : memref<1x512xf32, #tpu.memory_space<vmem>>, vector<1x512xf32>
    %2 = vector.broadcast %1 : vector<1x512xf32> to vector<128x512xf32>
    %3 = arith.mulf %0, %2 : vector<128x512xf32>
    %c0_3 = arith.constant 0 : index
    %c0_4 = arith.constant 0 : index
    %4 = vector.load %arg3[%c0_3, %c0_4] : memref<1x512xf32, #tpu.memory_space<vmem>>, vector<1x512xf32>
    %5 = vector.broadcast %4 : vector<1x512xf32> to vector<128x512xf32>
    %6 = arith.addf %3, %5 : vector<128x512xf32>
    %7 = math.tanh %6 : vector<128x512xf32>
    %c0_5 = arith.constant 0 : index
    %c0_6 = arith.constant 0 : index
    %8 = vector.load %arg4[%c0_5, %c0_6] : memref<128x512xf32, #tpu.memory_space<vmem>>, vector<128x512xf32>
    tpu.vector_store %arg4[%c0_5, %c0_6], %7 {strides = array<i32>} : memref<128x512xf32, #tpu.memory_space<vmem>>, vector<128x512xf32>,
    return
  }
  func.func @transform_0(%arg0: i32) -> (i32, i32) {
    %c0_i32 = arith.constant 0 : i32
    %c0_i32_0 = arith.constant 0 : i32
    return %arg0, %c0_i32 : i32, i32
  }
  func.func @transform_1(%arg0: i32) -> (i32, i32) {
    %c0_i32 = arith.constant 0 : i32
    %c0_i32_0 = arith.constant 0 : i32
    %c0_i32_1 = arith.constant 0 : i32
    return %c0_i32, %c0_i32_0 : i32, i32
  }
  func.func @transform_2(%arg0: i32) -> (i32, i32) {
    %c0_i32 = arith.constant 0 : i32
    %c0_i32_0 = arith.constant 0 : i32
    %c0_i32_1 = arith.constant 0 : i32
    return %c0_i32, %c0_i32_0 : i32, i32
  }
  func.func @transform_3(%arg0: i32) -> (i32, i32) {
    %c0_i32 = arith.constant 0 : i32
    %c0_i32_0 = arith.constant 0 : i32
    return %arg0, %c0_i32 : i32, i32
  }
}

</mosaic_0001>

<llo_original>
// kernel: tile.48
$region0: #{tile.48}
  #allocation0 [shape = 's32[1]{0}', space=sflag, size = 0x4, scoped, tag = 'scoped memory for tile.48']
  %s0 = inlined_call_operand.vmem [shape: f32[128], index: 0, kind: input, shape index: {}]
  %s1 = inlined_call_operand.vmem [shape: f32[4,128], index: 1, kind: output, shape index: {}]
  // Predicated region
  $region2: #{tile.48} parent=0 // pred_check
    _
  $region3: #{tile.48} parent=0 // pred_check_branch
    %3 = sbr.rel (0) target = $region5
  $region4: #{tile.48} parent=0 // pred_region
    _
  $region5: #{tile.48} parent=0 // pred_fallthru
    _
  %v4 = vld [vmem:[%s0] ss:$0 sm:$0xff]
  %5 = vst [vmem:[%s1] sm:$0xf] %v4

// kernel: generator_forward.14
$region0: #{generator_forward.14}
  #allocation0 [shape = 'u32[]', space=smem, size = 0x4, offset = 0x4, fixed_abs, tag = 'smem constant byte address 0x4 - core index']
  #allocation1 [shape = 'u32[144,128]{1,0:T(1,128)}', space=vmem, size = 0x12000, scoped, tag = 'internal scratch']
  %s0 = inlined_call_operand.vmem [shape: bf16[2,128], index: 0, kind: input, shape index: {}]
  %s1 = inlined_call_operand.vmem [shape: bf16[128,2048], index: 1, kind: input, shape index: {}]
  %s2 = inlined_call_operand.vmem [shape: f32[2,2048], index: 2, kind: output, shape index: {}]
  %s3 = sld [smem:[#allocation0]]
  $region79: #{generator_forward.14} parent=0
    _
  %s5 = ssub.s32 1, %s3
  %s6 = scalar_select 0, %s5, %s3
  $region1: #{generator_forward.14} parent=0
    #allocation2 [shape = 'u8[131072]{0}', space=vmem, size = 0x20000, scoped, tag = 'input window, operand 1']
    loop: start=0, step=1, limit=10
    $region2: #{generator_forward.14} parent=1 // loop_pre_header
      _
    $region3: #{generator_forward.14} parent=1 // loop_header
      %s8 = sphi 0, %s12
      %p9 = scmp.ge.s32.totalorder %s8, 10
      %s15 = sphi 0, %s27
      %s16 = sphi 0, %s23
      %s17 = sphi 0, %s15
      %s18 = sphi 0, %s16
      %s19 = sphi 0, %s17
      %s20 = sphi 0, %s18
      %s30 = sphi 0, %s32
      %s33 = sphi 0, %s30
      %s34 = sphi 0, %s33
      %s50 = sphi 0, %s34
      %s56 = sphi 0, %s58
      %s59 = sphi 0, %s56
      %s60 = sphi 0, %s59
      %s76 = sphi 0, %s60
      %s84 = sphi 0, %s86
      %s87 = sphi 0, %s84
      %s88 = sphi 0, %s87
      %s104 = sphi 0, %s88
    $region4: #{generator_forward.14} parent=1 // loop_header_branch
      %11 = sbr.rel (%p9) target = $region8
    $region5: #{generator_forward.14} parent=1 // loop_body
      %s13 = ssub.s32 %s8, 1
      %s14 = ssub.s32 %s8, 2
      %s21 = sadd.s32 1, %s16
      %p22 = scmp.ge.s32.totalorder %s21, 8
      %s23 = scalar_select %p22, 0, %s21
      %s24 = sadd.s32 1, %s15
      %s25 = scalar_select %p22, %s24, %s15
      %p26 = scmp.ge.s32.totalorder %s25, 1
      %s27 = scalar_select %p26, 0, %s25
      %s28 = ssub.s32 %s15, %s27
      %p29 = scmp.eq.s32.totalorder %s28, 0
      %s31 = sadd.s32 %s30, 1
      %s32 = scalar_select %p29, %s30, %s31
      %p35 = pneg %p29
      %p36 = scmp.eq.s32.totalorder %s8, 7
      %p37 = por %p35, %p36
      %p38 = scmp.ne.s32.totalorder %s30, %s33
      %p39 = scmp.eq.s32.totalorder %s8, 0
      %p40 = por %p38, %p39
      %p41 = scmp.ne.s32.totalorder %s30, %s33
      %p42 = scmp.eq.s32.totalorder %s13, 7
      %p43 = por %p41, %p42
      %p44 = scmp.ne.s32.totalorder %s33, %s34
      %p45 = scmp.eq.s32.totalorder %s13, 0
      %p46 = por %p44, %p45
      %p47 = scmp.ne.s32.totalorder %s33, %s34
      %p48 = scmp.eq.s32.totalorder %s14, 7
      %p49 = por %p47, %p48
      %p51 = scmp.ne.s32.totalorder %s34, %s50
      %p52 = scmp.eq.s32.totalorder %s14, 0
      %p53 = por %p51, %p52
      %s54 = ssub.s32 %s16, %s23
      %p55 = scmp.eq.s32.totalorder %s54, 0
      %s57 = sadd.s32 %s56, 1
      %s58 = scalar_select %p55, %s56, %s57
      %p61 = pneg %p55
      %p62 = scmp.eq.s32.totalorder %s8, 7
      %p63 = por %p61, %p62
      %p64 = scmp.ne.s32.totalorder %s56, %s59
      %p65 = scmp.eq.s32.totalorder %s8, 0
      %p66 = por %p64, %p65
      %p67 = scmp.ne.s32.totalorder %s56, %s59
      %p68 = scmp.eq.s32.totalorder %s13, 7
      %p69 = por %p67, %p68
      %p70 = scmp.ne.s32.totalorder %s59, %s60
      %p71 = scmp.eq.s32.totalorder %s13, 0
      %p72 = por %p70, %p71
      %p73 = scmp.ne.s32.totalorder %s59, %s60
      %p74 = scmp.eq.s32.totalorder %s14, 7
      %p75 = por %p73, %p74
      %p77 = scmp.ne.s32.totalorder %s60, %s76
      %p78 = scmp.eq.s32.totalorder %s14, 0
      %p79 = por %p77, %p78
      %s80 = ssub.s32 %s15, %s27
      %s81 = ssub.s32 %s16, %s23
      %s82 = sor.u32 %s80, %s81
      %p83 = scmp.eq.s32.totalorder %s82, 0
      %s85 = sadd.s32 %s84, 1
      %s86 = scalar_select %p83, %s84, %s85
      %p89 = pneg %p83
      %p90 = scmp.eq.s32.totalorder %s8, 7
      %p91 = por %p89, %p90
      %p92 = scmp.ne.s32.totalorder %s84, %s87
      %p93 = scmp.eq.s32.totalorder %s8, 0
      %p94 = por %p92, %p93
      %p95 = scmp.ne.s32.totalorder %s84, %s87
      %p96 = scmp.eq.s32.totalorder %s13, 7
      %p97 = por %p95, %p96
      %p98 = scmp.ne.s32.totalorder %s87, %s88
      %p99 = scmp.eq.s32.totalorder %s13, 0
      %p100 = por %p98, %p99
      %p101 = scmp.ne.s32.totalorder %s87, %s88
      %p102 = scmp.eq.s32.totalorder %s14, 7
      %p103 = por %p101, %p102
      %p105 = scmp.ne.s32.totalorder %s88, %s104
      %p106 = scmp.eq.s32.totalorder %s14, 0
      %p107 = por %p105, %p106
      %p108 = scmp.le.s32.totalorder 1, %s8
      %p109 = scmp.lt.s32.totalorder %s8, 9
      %p110 = pnand %p108, %p109
      %p111 = pneg %p110
      // Predicated region
      $region9: #{generator_forward.14} parent=5 // pred_check
        _
      $region10: #{generator_forward.14} parent=5 // pred_check_branch
        %113 = sbr.rel (%p110) target = $region12
      $region11: #{generator_forward.14} parent=5 // pred_region
        %s114 = ssub.s32 %s8, 1
        // Predicated region
        $region13: #{generator_forward.14} parent=11 // pred_check
          %p115 = pneg %p46
        $region14: #{generator_forward.14} parent=11 // pred_check_branch
          %117 = sbr.rel (%p115) target = $region16
        $region15: #{generator_forward.14} parent=11 // pred_region
          %p118 = scmp.lt.s32.totalorder %s17, 0
          %s119 = scalar_select %p118, %s17, 0
          %s120 = scalar_lea.vmem %s0, %s119
        $region16: #{generator_forward.14} parent=11 // pred_fallthru
          _
      $region12: #{generator_forward.14} parent=5 // pred_fallthru
        _
      %p121 = scmp.lt.s32.totalorder %s8, 8
      // Predicated region
      $region17: #{generator_forward.14} parent=5 // pred_check
        %p122 = pneg %p121
      $region18: #{generator_forward.14} parent=5 // pred_check_branch
        %124 = sbr.rel (%p122) target = $region20
      $region19: #{generator_forward.14} parent=5 // pred_region
        // Predicated region
        $region21: #{generator_forward.14} parent=19 // pred_check
          %p125 = pneg %p66
        $region22: #{generator_forward.14} parent=19 // pred_check_branch
          %127 = sbr.rel (%p125) target = $region24
        $region23: #{generator_forward.14} parent=19 // pred_region
          %s128 = sand.u32 %s56, 1
          %s129 = sand.u32 %s56, 1
          %s130 = smul.addr %s129, 128
          %s131 = scalar_lea.vmem [#allocation2], %s130
          %s132 = smul.u32 2, %s16
          %s133 = smul.addr %s132, 4
          %s134 = scalar_lea.vmem %s1, %s133
          // Predicated region
          $region25: #{generator_forward.14} parent=23 // pred_check
            _
          $region26: #{generator_forward.14} parent=23 // pred_check_branch
            %136 = sbr.rel (0) target = $region28
          $region27: #{generator_forward.14} parent=23 // pred_region
            // Predicated region
            $region29: #{generator_forward.14} parent=27 // pred_check
              _
            $region30: #{generator_forward.14} parent=27 // pred_check_branch
              %138 = sbr.rel (0) target = $region32
            $region31: #{generator_forward.14} parent=27 // pred_region
              // Predicated region
              $region44: #{generator_forward.14} parent=31 // pred_check
                _
              $region45: #{generator_forward.14} parent=31 // pred_check_branch
                %183 = sbr.rel (0) target = $region47
              $region46: #{generator_forward.14} parent=31 // pred_region
                loop: start=0, step=1, limit=1
                $region48: #{generator_forward.14} parent=46 // loop_pre_header
                  _
                $region49: #{generator_forward.14} parent=46 // loop_header
                  %s185 = sphi 0, %s189
                  %p186 = scmp.ge.s32.totalorder %s185, 1
                  %s190 = sphi %s134, %s134
                  %s191 = sphi %s131, %s131
                $region50: #{generator_forward.14} parent=46 // loop_header_branch
                  %188 = sbr.rel (%p186) target = $region54
                $region51: #{generator_forward.14} parent=46 // loop_body
                  %v192 = vld [vmem:[%s190] sm:$0xff]
                  %193 = vst [vmem:[%s191] sm:$0xff] %v192
                  %v194 = vld [vmem:[%s190 + $0x40] sm:$0xff]
                  %195 = vst [vmem:[%s191 + $0x8] sm:$0xff] %v194
                  %v196 = vld [vmem:[%s190 + $0x80] sm:$0xff]
                  %197 = vst [vmem:[%s191 + $0x10] sm:$0xff] %v196
                  %v198 = vld [vmem:[%s190 + $0xc0] sm:$0xff]
                  %199 = vst [vmem:[%s191 + $0x18] sm:$0xff] %v198
                  %v200 = vld [vmem:[%s190 + $0x100] sm:$0xff]
                  %201 = vst [vmem:[%s191 + $0x20] sm:$0xff] %v200
                  %v202 = vld [vmem:[%s190 + $0x140] sm:$0xff]
                  %203 = vst [vmem:[%s191 + $0x28] sm:$0xff] %v202
                  %v204 = vld [vmem:[%s190 + $0x180] sm:$0xff]
                  %205 = vst [vmem:[%s191 + $0x30] sm:$0xff] %v204
                  %v206 = vld [vmem:[%s190 + $0x1c0] sm:$0xff]
                  %207 = vst [vmem:[%s191 + $0x38] sm:$0xff] %v206
                  %v208 = vld [vmem:[%s190 + $0x200] sm:$0xff]
                  %209 = vst [vmem:[%s191 + $0x40] sm:$0xff] %v208
                  %v210 = vld [vmem:[%s190 + $0x240] sm:$0xff]
                  %211 = vst [vmem:[%s191 + $0x48] sm:$0xff] %v210
                  %v212 = vld [vmem:[%s190 + $0x280] sm:$0xff]
                  %213 = vst [vmem:[%s191 + $0x50] sm:$0xff] %v212
                  %v214 = vld [vmem:[%s190 + $0x2c0] sm:$0xff]
                  %215 = vst [vmem:[%s191 + $0x58] sm:$0xff] %v214
                  %v216 = vld [vmem:[%s190 + $0x300] sm:$0xff]
                  %217 = vst [vmem:[%s191 + $0x60] sm:$0xff] %v216
                  %v218 = vld [vmem:[%s190 + $0x340] sm:$0xff]
                  %219 = vst [vmem:[%s191 + $0x68] sm:$0xff] %v218
                  %v220 = vld [vmem:[%s190 + $0x380] sm:$0xff]
                  %221 = vst [vmem:[%s191 + $0x70] sm:$0xff] %v220
                  %v222 = vld [vmem:[%s190 + $0x3c0] sm:$0xff]
                  %223 = vst [vmem:[%s191 + $0x78] sm:$0xff] %v222
                $region52: #{generator_forward.14} parent=46 // loop_footer
                  %s189 = sadd.s32 1, %s185
                $region53: #{generator_forward.14} parent=46 // loop_footer_branch
                  %184 = sbr.rel target = $region49
                $region54: #{generator_forward.14} parent=46 // loop_exit
                  _
              $region47: #{generator_forward.14} parent=31 // pred_fallthru
                _
              // Predicated region
              $region55: #{generator_forward.14} parent=31 // pred_check
                _
              $region56: #{generator_forward.14} parent=31 // pred_check_branch
                %225 = sbr.rel target = $region58
              $region57: #{generator_forward.14} parent=31 // pred_region
                _
              $region58: #{generator_forward.14} parent=31 // pred_fallthru
                _
            $region32: #{generator_forward.14} parent=27 // pred_fallthru
              _
            // Predicated region
            $region33: #{generator_forward.14} parent=27 // pred_check
              _
            $region34: #{generator_forward.14} parent=27 // pred_check_branch
              %140 = sbr.rel target = $region36
            $region35: #{generator_forward.14} parent=27 // pred_region
              loop: start=0, step=1, limit=1
              $region37: #{generator_forward.14} parent=35 // loop_pre_header
                _
              $region38: #{generator_forward.14} parent=35 // loop_header
                %s143 = sphi 0, %s147
                %p144 = scmp.ge.s32.totalorder %s143, 1
                %s148 = sphi %s134, %s134
                %s149 = sphi %s131, %s131
              $region39: #{generator_forward.14} parent=35 // loop_header_branch
                %146 = sbr.rel (%p144) target = $region43
              $region40: #{generator_forward.14} parent=35 // loop_body
                %v150 = vld [vmem:[%s148] sm:$0xff]
                %151 = vst [vmem:[%s149] sm:$0xff] %v150
                %v152 = vld [vmem:[%s148 + $0x40] sm:$0xff]
                %153 = vst [vmem:[%s149 + $0x8] sm:$0xff] %v152
                %v154 = vld [vmem:[%s148 + $0x80] sm:$0xff]
                %155 = vst [vmem:[%s149 + $0x10] sm:$0xff] %v154
                %v156 = vld [vmem:[%s148 + $0xc0] sm:$0xff]
                %157 = vst [vmem:[%s149 + $0x18] sm:$0xff] %v156
                %v158 = vld [vmem:[%s148 + $0x100] sm:$0xff]
                %159 = vst [vmem:[%s149 + $0x20] sm:$0xff] %v158
                %v160 = vld [vmem:[%s148 + $0x140] sm:$0xff]
                %161 = vst [vmem:[%s149 + $0x28] sm:$0xff] %v160
                %v162 = vld [vmem:[%s148 + $0x180] sm:$0xff]
                %163 = vst [vmem:[%s149 + $0x30] sm:$0xff] %v162
                %v164 = vld [vmem:[%s148 + $0x1c0] sm:$0xff]
                %165 = vst [vmem:[%s149 + $0x38] sm:$0xff] %v164
                %v166 = vld [vmem:[%s148 + $0x200] sm:$0xff]
                %167 = vst [vmem:[%s149 + $0x40] sm:$0xff] %v166
                %v168 = vld [vmem:[%s148 + $0x240] sm:$0xff]
                %169 = vst [vmem:[%s149 + $0x48] sm:$0xff] %v168
                %v170 = vld [vmem:[%s148 + $0x280] sm:$0xff]
                %171 = vst [vmem:[%s149 + $0x50] sm:$0xff] %v170
                %v172 = vld [vmem:[%s148 + $0x2c0] sm:$0xff]
                %173 = vst [vmem:[%s149 + $0x58] sm:$0xff] %v172
                %v174 = vld [vmem:[%s148 + $0x300] sm:$0xff]
                %175 = vst [vmem:[%s149 + $0x60] sm:$0xff] %v174
                %v176 = vld [vmem:[%s148 + $0x340] sm:$0xff]
                %177 = vst [vmem:[%s149 + $0x68] sm:$0xff] %v176
                %v178 = vld [vmem:[%s148 + $0x380] sm:$0xff]
                %179 = vst [vmem:[%s149 + $0x70] sm:$0xff] %v178
                %v180 = vld [vmem:[%s148 + $0x3c0] sm:$0xff]
                %181 = vst [vmem:[%s149 + $0x78] sm:$0xff] %v180
              $region41: #{generator_forward.14} parent=35 // loop_footer
                %s147 = sadd.s32 1, %s143
              $region42: #{generator_forward.14} parent=35 // loop_footer_branch
                %142 = sbr.rel target = $region38
              $region43: #{generator_forward.14} parent=35 // loop_exit
                _
            $region36: #{generator_forward.14} parent=27 // pred_fallthru
              _
          $region28: #{generator_forward.14} parent=23 // pred_fallthru
            _
          %226 = vnop
        $region24: #{generator_forward.14} parent=19 // pred_fallthru
          _
      $region20: #{generator_forward.14} parent=5 // pred_fallthru
        _
      %p227 = scmp.le.s32.totalorder 1, %s8
      %p228 = scmp.lt.s32.totalorder %s8, 9
      %p229 = pnand %p227, %p228
      %p230 = pneg %p229
      // Predicated region
      $region59: #{generator_forward.14} parent=5 // pred_check
        _
      $region60: #{generator_forward.14} parent=5 // pred_check_branch
        %232 = sbr.rel (%p229) target = $region62
      $region61: #{generator_forward.14} parent=5 // pred_region
        %s233 = ssub.s32 %s8, 1
        %s234 = sand.u32 %s59, 1
        %s235 = sand.u32 %s59, 1
        %s236 = smul.addr %s235, 128
        %s237 = scalar_lea.vmem [#allocation2], %s236
        // Predicated region
        $region63: #{generator_forward.14} parent=61 // pred_check
          %p238 = pneg %p72
        $region64: #{generator_forward.14} parent=61 // pred_check_branch
          %240 = sbr.rel (%p238) target = $region66
        $region65: #{generator_forward.14} parent=61 // pred_region
          _
        $region66: #{generator_forward.14} parent=61 // pred_fallthru
          _
        %p241 = scmp.lt.s32.totalorder %s17, 0
        %s242 = scalar_select %p241, %s17, 0
        %s243 = scalar_lea.vmem %s0, %s242
        %p244 = pneg %p46
        %p245 = pneg %p43
        %s246 = sand.u32 %s59, 1
        %s247 = sand.u32 %s59, 1
        %s248 = smul.addr %s247, 128
        %s249 = scalar_lea.vmem [#allocation2], %s248
        %p250 = pneg %p72
        %p251 = pneg %p69
        %p252 = pneg %p100
        %p253 = pneg %p97
        %s254 = smul.u32 2, %s18
        %p255 = scmp.lt.s32.totalorder %s17, 0
        %s256 = scalar_select %p255, %s17, 0
        %p257 = scmp.lt.s32.totalorder %s254, 15
        %s258 = scalar_select %p257, %s254, 15
        %s259 = smul.addr %s256, 16
        %s260 = sadd.s32 %s258, %s259
        %s261 = smul.addr %s260, 2
        %s262 = scalar_lea.vmem %s2, %s261
        %p263 = scmp.lt.s32.totalorder %s17, 0
        %s264 = scalar_select %p263, %s17, 0
        %s265 = scalar_lea.vmem %s0, %s264
        %s266 = smul.u32 2, %s18
        %s267 = smul.u32 2, %s18
        %p268 = scmp.lt.s32.totalorder %s17, 0
        %s269 = scalar_select %p268, %s17, 0
        %p270 = scmp.lt.s32.totalorder %s267, 15
        %s271 = scalar_select %p270, %s267, 15
        %s272 = smul.addr %s269, 16
        %s273 = sadd.s32 %s271, %s272
        %s274 = smul.addr %s273, 2
        %s275 = scalar_lea.vmem %s2, %s274
        %s276 = smul.u32 2, %s18
        %v278 = vld [vmem:[%s265] sm:$0x1]
        %v279 = vld [vmem:[%s237] sm:$0xff]
        %v280 = vld [vmem:[%s237 + $0x8] sm:$0xff]
        %v281 = vld [vmem:[%s237 + $0x10] sm:$0xff]
        %v282 = vld [vmem:[%s237 + $0x18] sm:$0xff]
        %v283 = vld [vmem:[%s237 + $0x20] sm:$0xff]
        %v284 = vld [vmem:[%s237 + $0x28] sm:$0xff]
        %v285 = vld [vmem:[%s237 + $0x30] sm:$0xff]
        %v286 = vld [vmem:[%s237 + $0x38] sm:$0xff]
        %v287 = vld [vmem:[%s237 + $0x40] sm:$0xff]
        %v288 = vld [vmem:[%s237 + $0x48] sm:$0xff]
        %v289 = vld [vmem:[%s237 + $0x50] sm:$0xff]
        %v290 = vld [vmem:[%s237 + $0x58] sm:$0xff]
        %v291 = vld [vmem:[%s237 + $0x60] sm:$0xff]
        %v292 = vld [vmem:[%s237 + $0x68] sm:$0xff]
        %v293 = vld [vmem:[%s237 + $0x70] sm:$0xff]
        %v294 = vld [vmem:[%s237 + $0x78] sm:$0xff]
        %v311 = vunpack.c.l.b16 %v279
        %v312 = vunpack.c.h.b16 %v279
        %v313 = vunpack.c.l.b16 %v280
        %v314 = vunpack.c.h.b16 %v280
        %v315 = vunpack.c.l.b16 %v281
        %v316 = vunpack.c.h.b16 %v281
        %v317 = vunpack.c.l.b16 %v282
        %v318 = vunpack.c.h.b16 %v282
        %v319 = vunpack.c.l.b16 %v283
        %v320 = vunpack.c.h.b16 %v283
        %v321 = vunpack.c.l.b16 %v284
        %v322 = vunpack.c.h.b16 %v284
        %v323 = vunpack.c.l.b16 %v285
        %v324 = vunpack.c.h.b16 %v285
        %v325 = vunpack.c.l.b16 %v286
        %v326 = vunpack.c.h.b16 %v286
        %v327 = vunpack.c.l.b16 %v287
        %v328 = vunpack.c.h.b16 %v287
        %v329 = vunpack.c.l.b16 %v288
        %v330 = vunpack.c.h.b16 %v288
        %v331 = vunpack.c.l.b16 %v289
        %v332 = vunpack.c.h.b16 %v289
        %v333 = vunpack.c.l.b16 %v290
        %v334 = vunpack.c.h.b16 %v290
        %v335 = vunpack.c.l.b16 %v291
        %v336 = vunpack.c.h.b16 %v291
        %v337 = vunpack.c.l.b16 %v292
        %v338 = vunpack.c.h.b16 %v292
        %v339 = vunpack.c.l.b16 %v293
        %v340 = vunpack.c.h.b16 %v293
        %v341 = vunpack.c.l.b16 %v294
        %v342 = vunpack.c.h.b16 %v294
        %v343 = vpack.c.b16 %v313, %v311
        %v344 = vpack.c.b16 %v314, %v312
        %v345 = vpack.c.b16 %v317, %v315
        %v346 = vpack.c.b16 %v318, %v316
        %v347 = vpack.c.b16 %v321, %v319
        %v348 = vpack.c.b16 %v322, %v320
        %v349 = vpack.c.b16 %v325, %v323
        %v350 = vpack.c.b16 %v326, %v324
        %v351 = vpack.c.b16 %v329, %v327
        %v352 = vpack.c.b16 %v330, %v328
        %v353 = vpack.c.b16 %v333, %v331
        %v354 = vpack.c.b16 %v334, %v332
        %v355 = vpack.c.b16 %v337, %v335
        %v356 = vpack.c.b16 %v338, %v336
        %v357 = vpack.c.b16 %v341, %v339
        %v358 = vpack.c.b16 %v342, %v340
        %375 = vmatprep.subr.bf16.mxu0 %v344
        %376 = vmatpush1.bf16.msra.mxu0 %v343
        %377 = vmatprep.subr.bf16.mxu0 %v346
        %378 = vmatpush1.bf16.msra.mxu0 %v345
        %379 = vmatprep.subr.bf16.mxu0 %v348
        %380 = vmatpush1.bf16.msra.mxu0 %v347
        %381 = vmatprep.subr.bf16.mxu0 %v350
        %382 = vmatpush1.bf16.msra.mxu0 %v349
        %383 = vmatprep.subr.bf16.mxu0 %v352
        %384 = vmatpush1.bf16.msra.mxu0 %v351
        %385 = vmatprep.subr.bf16.mxu0 %v354
        %386 = vmatpush1.bf16.msra.mxu0 %v353
        %387 = vmatprep.subr.bf16.mxu0 %v356
        %388 = vmatpush1.bf16.msra.mxu0 %v355
        %389 = vmatprep.subr.bf16.mxu0 %v358
        %390 = vmatpush1.bf16.msra.mxu0 %v357
        %391 = vmatprep.subr.bf16.mxu0 0
        %392 = vmatpush1.bf16.msra.mxu0 0
        %393 = vmatprep.subr.bf16.mxu0 0
        %394 = vmatpush1.bf16.msra.mxu0 0
        %395 = vmatprep.subr.bf16.mxu0 0
        %396 = vmatpush1.bf16.msra.mxu0 0
        %397 = vmatprep.subr.bf16.mxu0 0
        %398 = vmatpush1.bf16.msra.mxu0 0
        %399 = vmatprep.subr.bf16.mxu0 0
        %400 = vmatpush1.bf16.msra.mxu0 0
        %401 = vmatprep.subr.bf16.mxu0 0
        %402 = vmatpush1.bf16.msra.mxu0 0
        %403 = vmatprep.subr.bf16.mxu0 0
        %404 = vmatpush1.bf16.msra.mxu0 0
        %405 = vmatprep.subr.bf16.mxu0 0
        %406 = vmatpush1.bf16.msra.mxu0 0
        %407 = vmatprep.mubr.bf16.mxu0 0
        %408 = vmatmul.mubr.bf16.gmra.mrb[0].mxu0 %v278
        %v409 = vpop.f32.mrb[0].mxu0
        %v410 = vadd.f32 0.0, %v409
        %v411 = vpop.f32.mrb[0].mxu0
        %v412 = vadd.f32 0.0, %v411
        %v413 = vpop.f32.mrb[0].mxu0
        %v414 = vpop.f32.mrb[0].mxu0
        %415 = vdwg.mxu0
        %v418 = vcombine.low %v410, %v412
        %v420 = vunpack.c.l.s4 1983009808
        %v421 = vunpack.c.0.s8 %v420
        %v422 = vlaneseq
        %v423 = vshrl.u32 %v422, 7
        %v424 = vsub.s32 %v421, %v423
        %v425 = vrot.slane %v418, %v424
        %427 = vst [vmem:[%s275] sm:$0xf] %v425
        %s428 = smul.u32 2, %s18
        %p429 = scmp.lt.s32.totalorder %s17, 0
        %s430 = scalar_select %p429, %s17, 0
        %p431 = scmp.lt.s32.totalorder %s428, 15
        %s432 = scalar_select %p431, %s428, 15
        %s433 = smul.addr %s430, 16
        %s434 = sadd.s32 %s432, %s433
        %s435 = smul.addr %s434, 2
        %s436 = scalar_lea.vmem %s2, %s435
        // Predicated region
        $region67: #{generator_forward.14} parent=61 // pred_check
          %p437 = pneg %p97
        $region68: #{generator_forward.14} parent=61 // pred_check_branch
          %439 = sbr.rel (%p437) target = $region70
        $region69: #{generator_forward.14} parent=61 // pred_region
          %s440 = smul.u32 2, %s18
        $region70: #{generator_forward.14} parent=61 // pred_fallthru
          _
      $region62: #{generator_forward.14} parent=5 // pred_fallthru
        _
      %p441 = scmp.le.s32.totalorder 2, %s8
      // Predicated region
      $region71: #{generator_forward.14} parent=5 // pred_check
        %p442 = pneg %p441
      $region72: #{generator_forward.14} parent=5 // pred_check_branch
        %444 = sbr.rel (%p442) target = $region74
      $region73: #{generator_forward.14} parent=5 // pred_region
        %s445 = ssub.s32 %s8, 2
        // Predicated region
        $region75: #{generator_forward.14} parent=73 // pred_check
          %p446 = pneg %p103
        $region76: #{generator_forward.14} parent=73 // pred_check_branch
          %448 = sbr.rel (%p446) target = $region78
        $region77: #{generator_forward.14} parent=73 // pred_region
          %s449 = smul.u32 2, %s20
          %p450 = scmp.lt.s32.totalorder %s19, 0
          %s451 = scalar_select %p450, %s19, 0
          %p452 = scmp.lt.s32.totalorder %s449, 15
          %s453 = scalar_select %p452, %s449, 15
          %s454 = smul.addr %s451, 16
          %s455 = sadd.s32 %s453, %s454
          %s456 = smul.addr %s455, 2
          %s457 = scalar_lea.vmem %s2, %s456
        $region78: #{generator_forward.14} parent=73 // pred_fallthru
          _
      $region74: #{generator_forward.14} parent=5 // pred_fallthru
        _
    $region6: #{generator_forward.14} parent=1 // loop_footer
      %s12 = sadd.s32 1, %s8
    $region7: #{generator_forward.14} parent=1 // loop_footer_branch
      %7 = sbr.rel target = $region3
    $region8: #{generator_forward.14} parent=1 // loop_exit
      _

// kernel: generator_forward.15
$region0: #{generator_forward.15}
  #allocation0 [shape = 'u32[]', space=smem, size = 0x4, offset = 0x4, fixed_abs, tag = 'smem constant byte address 0x4 - core index']
  #allocation1 [shape = 'u32[144,128]{1,0:T(1,128)}', space=vmem, size = 0x12000, scoped, tag = 'internal scratch']
  %s0 = inlined_call_operand.vmem [shape: f32[8,512], index: 0, kind: input, shape index: {}]
  %s1 = inlined_call_operand.vmem [shape: f32[1,512], index: 1, kind: output, shape index: {0}]
  %s2 = inlined_call_operand.vmem [shape: f32[1,512], index: 2, kind: output, shape index: {1}]
  %3 = xla_tuple %s1, %s2
  %s4 = sld [smem:[#allocation0]]
  $region26: #{generator_forward.15} parent=0
    _
  %s6 = ssub.s32 1, %s4
  %s7 = scalar_select 0, %s6, %s4
  // Predicated region
  $region2: #{generator_forward.15} parent=0 // pred_check
    _
  $region3: #{generator_forward.15} parent=0 // pred_check_branch
    %9 = sbr.rel (0) target = $region5
  $region4: #{generator_forward.15} parent=0 // pred_region
    _
  $region5: #{generator_forward.15} parent=0 // pred_fallthru
    _
  %p10 = scmp.eq.s32.totalorder 0, 0
  // Predicated region
  $region6: #{generator_forward.15} parent=0 // pred_check
    %p11 = pneg %p10
  $region7: #{generator_forward.15} parent=0 // pred_check_branch
    %13 = sbr.rel (%p11) target = $region9
  $region8: #{generator_forward.15} parent=0 // pred_region
    %v14 = vlaneseq
    %vm15 = vcmp.ge.s32.totalorder %v14, 0
    %vm16 = vcmp.lt.s32.totalorder %v14, 512
    %vm17 = vmand %vm15, %vm16
    %18 = vst.msk [vmem:[%s1] sm:$0xf] %vm17, 0.0
    %19 = vst.msk [vmem:[%s2] sm:$0xf] %vm17, 0.0
  $region9: #{generator_forward.15} parent=0 // pred_fallthru
    _
  %v20 = vld [vmem:[%s0] sm:$0xff]
  %v21 = vld [vmem:[%s0 + $0x8] sm:$0xff]
  %v22 = vld [vmem:[%s0 + $0x10] sm:$0xff]
  %v23 = vld [vmem:[%s0 + $0x18] sm:$0xff]
  %v24 = vld [vmem:[%s1] sm:$0xf]
  %v25 = vrot.slane %v20, 4
  %v26 = vadd.f32 %v20, %v25
  %v27 = vrot.slane %v26, 2
  %v28 = vadd.f32 %v26, %v27
  %v29 = vrot.slane %v28, 1
  %v30 = vadd.f32 %v28, %v29
  %v31 = vrot.slane %v21, 4
  %v32 = vadd.f32 %v21, %v31
  %v33 = vrot.slane %v32, 2
  %v34 = vadd.f32 %v32, %v33
  %v35 = vrot.slane %v34, 1
  %v36 = vadd.f32 %v34, %v35
  %v37 = vrot.slane %v22, 4
  %v38 = vadd.f32 %v22, %v37
  %v39 = vrot.slane %v38, 2
  %v40 = vadd.f32 %v38, %v39
  %v41 = vrot.slane %v40, 1
  %v42 = vadd.f32 %v40, %v41
  %v43 = vrot.slane %v23, 4
  %v44 = vadd.f32 %v23, %v43
  %v45 = vrot.slane %v44, 2
  %v46 = vadd.f32 %v44, %v45
  %v47 = vrot.slane %v46, 1
  %v48 = vadd.f32 %v46, %v47
  %v53 = vcombine.low %v30, %v36
  %v54 = vcombine.low %v42, %v48
  %v56 = vunpack.c.l.s4 1966171168
  %v57 = vunpack.c.0.s8 %v56
  %v58 = vlaneseq
  %v59 = vshrl.u32 %v58, 7
  %v60 = vsub.s32 %v57, %v59
  %v61 = vrot.slane %v53, %v60
  %v63 = vunpack.c.l.s4 1966171168
  %v64 = vunpack.c.0.s8 %v63
  %v65 = vlaneseq
  %v66 = vshrl.u32 %v65, 7
  %v67 = vsub.s32 %v64, %v66
  %v68 = vrot.slane %v54, %v67
  %v69 = vcombine.low %v61, %v68
  %v71 = vunpack.c.l.s4 1966171168
  %v72 = vunpack.c.0.s8 %v71
  %v73 = vlaneseq
  %v74 = vshrl.u32 %v73, 7
  %v75 = vsub.s32 %v72, %v74
  %v76 = vrot.slane %v69, %v75
  %v78 = vadd.f32 %v24, %v76
  %v79 = vlaneseq
  %vm80 = vcmp.ge.s32.totalorder %v79, 0
  %vm81 = vcmp.lt.s32.totalorder %v79, 512
  %vm82 = vmand %vm80, %vm81
  %83 = vst.msk [vmem:[%s1] sm:$0xf] %vm82, %v78
  %v84 = vld [vmem:[%s2] sm:$0xf]
  %v85 = vmul.f32 %v20, %v20
  %v86 = vmul.f32 %v21, %v21
  %v87 = vmul.f32 %v22, %v22
  %v88 = vmul.f32 %v23, %v23
  %v89 = vrot.slane %v85, 4
  %v90 = vadd.f32 %v85, %v89
  %v91 = vrot.slane %v90, 2
  %v92 = vadd.f32 %v90, %v91
  %v93 = vrot.slane %v92, 1
  %v94 = vadd.f32 %v92, %v93
  %v95 = vrot.slane %v86, 4
  %v96 = vadd.f32 %v86, %v95
  %v97 = vrot.slane %v96, 2
  %v98 = vadd.f32 %v96, %v97
  %v99 = vrot.slane %v98, 1
  %v100 = vadd.f32 %v98, %v99
  %v101 = vrot.slane %v87, 4
  %v102 = vadd.f32 %v87, %v101
  %v103 = vrot.slane %v102, 2
  %v104 = vadd.f32 %v102, %v103
  %v105 = vrot.slane %v104, 1
  %v106 = vadd.f32 %v104, %v105
  %v107 = vrot.slane %v88, 4
  %v108 = vadd.f32 %v88, %v107
  %v109 = vrot.slane %v108, 2
  %v110 = vadd.f32 %v108, %v109
  %v111 = vrot.slane %v110, 1
  %v112 = vadd.f32 %v110, %v111
  %v117 = vcombine.low %v94, %v100
  %v118 = vcombine.low %v106, %v112
  %v120 = vunpack.c.l.s4 1966171168
  %v121 = vunpack.c.0.s8 %v120
  %v122 = vlaneseq
  %v123 = vshrl.u32 %v122, 7
  %v124 = vsub.s32 %v121, %v123
  %v125 = vrot.slane %v117, %v124
  %v127 = vunpack.c.l.s4 1966171168
  %v128 = vunpack.c.0.s8 %v127
  %v129 = vlaneseq
  %v130 = vshrl.u32 %v129, 7
  %v131 = vsub.s32 %v128, %v130
  %v132 = vrot.slane %v118, %v131
  %v133 = vcombine.low %v125, %v132
  %v135 = vunpack.c.l.s4 1966171168
  %v136 = vunpack.c.0.s8 %v135
  %v137 = vlaneseq
  %v138 = vshrl.u32 %v137, 7
  %v139 = vsub.s32 %v136, %v138
  %v140 = vrot.slane %v133, %v139
  %v142 = vadd.f32 %v84, %v140
  %143 = vst.msk [vmem:[%s2] sm:$0xf] %vm82, %v142
  // Predicated region
  $region10: #{generator_forward.15} parent=0 // pred_check
    _
  $region11: #{generator_forward.15} parent=0 // pred_check_branch
    %145 = sbr.rel (0) target = $region13
  $region12: #{generator_forward.15} parent=0 // pred_region
    _
  $region13: #{generator_forward.15} parent=0 // pred_fallthru
    _
  // Predicated region
  $region14: #{generator_forward.15} parent=0 // pred_check
    _
  $region15: #{generator_forward.15} parent=0 // pred_check_branch
    %147 = sbr.rel (0) target = $region17
  $region16: #{generator_forward.15} parent=0 // pred_region
    _
  $region17: #{generator_forward.15} parent=0 // pred_fallthru
    _
  // Predicated region
  $region18: #{generator_forward.15} parent=0 // pred_check
    _
  $region19: #{generator_forward.15} parent=0 // pred_check_branch
    %149 = sbr.rel (0) target = $region21
  $region20: #{generator_forward.15} parent=0 // pred_region
    _
  $region21: #{generator_forward.15} parent=0 // pred_fallthru
    _
  // Predicated region
  $region22: #{generator_forward.15} parent=0 // pred_check
    _
  $region23: #{generator_forward.15} parent=0 // pred_check_branch
    %151 = sbr.rel (0) target = $region25
  $region24: #{generator_forward.15} parent=0 // pred_region
    _
  $region25: #{generator_forward.15} parent=0 // pred_fallthru
    _

// kernel: generator_forward.16
$region0: #{generator_forward.16}
  #allocation0 [shape = 'u32[]', space=smem, size = 0x4, offset = 0x4, fixed_abs, tag = 'smem constant byte address 0x4 - core index']
  #allocation1 [shape = 'u32[144,128]{1,0:T(1,128)}', space=vmem, size = 0x12000, scoped, tag = 'internal scratch']
  %s0 = inlined_call_operand.vmem [shape: f32[8,512], index: 0, kind: input, shape index: {}]
  %s1 = inlined_call_operand.vmem [shape: f32[1,512], index: 1, kind: input, shape index: {}]
  %s2 = inlined_call_operand.vmem [shape: f32[1,512], index: 2, kind: input, shape index: {}]
  %s3 = inlined_call_operand.vmem [shape: bf16[8,512], index: 3, kind: output, shape index: {}]
  %s4 = sld [smem:[#allocation0]]
  $region22: #{generator_forward.16} parent=0
    _
  %s6 = ssub.s32 1, %s4
  %s7 = scalar_select 0, %s6, %s4
  // Predicated region
  $region2: #{generator_forward.16} parent=0 // pred_check
    _
  $region3: #{generator_forward.16} parent=0 // pred_check_branch
    %9 = sbr.rel (0) target = $region5
  $region4: #{generator_forward.16} parent=0 // pred_region
    _
  $region5: #{generator_forward.16} parent=0 // pred_fallthru
    _
  // Predicated region
  $region6: #{generator_forward.16} parent=0 // pred_check
    _
  $region7: #{generator_forward.16} parent=0 // pred_check_branch
    %11 = sbr.rel (0) target = $region9
  $region8: #{generator_forward.16} parent=0 // pred_region
    _
  $region9: #{generator_forward.16} parent=0 // pred_fallthru
    _
  // Predicated region
  $region10: #{generator_forward.16} parent=0 // pred_check
    _
  $region11: #{generator_forward.16} parent=0 // pred_check_branch
    %13 = sbr.rel (0) target = $region13
  $region12: #{generator_forward.16} parent=0 // pred_region
    _
  $region13: #{generator_forward.16} parent=0 // pred_fallthru
    _
  %v14 = vld [vmem:[%s0] sm:$0xff]
  %v15 = vld [vmem:[%s0 + $0x8] sm:$0xff]
  %v16 = vld [vmem:[%s0 + $0x10] sm:$0xff]
  %v17 = vld [vmem:[%s0 + $0x18] sm:$0xff]
  %v18 = vld [vmem:[%s1] sm:$0xf]
  %v20 = vlaneseq
  %v21 = vshrl.u32 %v20, 7
  %v22 = vsub.s32 0, %v21
  %v23 = vrot.slane %v18, %v22
  %v24 = vlaneseq
  %v25 = vshrl.u32 %v24, 7
  %v26 = vsub.s32 1, %v25
  %v27 = vrot.slane %v18, %v26
  %v28 = vlaneseq
  %v29 = vshrl.u32 %v28, 7
  %v30 = vsub.s32 2, %v29
  %v31 = vrot.slane %v18, %v30
  %v32 = vlaneseq
  %v33 = vshrl.u32 %v32, 7
  %v34 = vsub.s32 3, %v33
  %v35 = vrot.slane %v18, %v34
  %v40 = vmul.f32 %v14, %v23
  %v41 = vmul.f32 %v15, %v27
  %v42 = vmul.f32 %v16, %v31
  %v43 = vmul.f32 %v17, %v35
  %v44 = vld [vmem:[%s2] sm:$0xf]
  %v46 = vlaneseq
  %v47 = vshrl.u32 %v46, 7
  %v48 = vsub.s32 0, %v47
  %v49 = vrot.slane %v44, %v48
  %v50 = vlaneseq
  %v51 = vshrl.u32 %v50, 7
  %v52 = vsub.s32 1, %v51
  %v53 = vrot.slane %v44, %v52
  %v54 = vlaneseq
  %v55 = vshrl.u32 %v54, 7
  %v56 = vsub.s32 2, %v55
  %v57 = vrot.slane %v44, %v56
  %v58 = vlaneseq
  %v59 = vshrl.u32 %v58, 7
  %v60 = vsub.s32 3, %v59
  %v61 = vrot.slane %v44, %v60
  %v66 = vadd.f32 %v40, %v49
  %v67 = vadd.f32 %v41, %v53
  %v68 = vadd.f32 %v42, %v57
  %v69 = vadd.f32 %v43, %v61
  %v70 = vmax.f32 %v66, 0.0
  %v71 = vmax.f32 %v67, 0.0
  %v72 = vmax.f32 %v68, 0.0
  %v73 = vmax.f32 %v69, 0.0
  %v74 = vpack.c.bf16 %v70, %v70
  %v75 = vpack.c.bf16 %v71, %v71
  %v76 = vpack.c.bf16 %v72, %v72
  %v77 = vpack.c.bf16 %v73, %v73
  %v82 = vunpack.c.l.b16 %v74
  %v83 = vunpack.c.l.b16 %v75
  %v84 = vunpack.c.l.b16 %v76
  %v85 = vunpack.c.l.b16 %v77
  %v86 = vpack.c.b16 %v83, %v82
  %v87 = vpack.c.b16 %v85, %v84
  %90 = vst [vmem:[%s3] sm:$0xff] %v86
  %91 = vst [vmem:[%s3 + $0x8] sm:$0xff] %v87
  // Predicated region
  $region14: #{generator_forward.16} parent=0 // pred_check
    _
  $region15: #{generator_forward.16} parent=0 // pred_check_branch
    %93 = sbr.rel (0) target = $region17
  $region16: #{generator_forward.16} parent=0 // pred_region
    _
  $region17: #{generator_forward.16} parent=0 // pred_fallthru
    _
  // Predicated region
  $region18: #{generator_forward.16} parent=0 // pred_check
    _
  $region19: #{generator_forward.16} parent=0 // pred_check_branch
    %95 = sbr.rel (0) target = $region21
  $region20: #{generator_forward.16} parent=0 // pred_region
    _
  $region21: #{generator_forward.16} parent=0 // pred_fallthru
    _

// kernel: generator_forward.17
$region0: #{generator_forward.17}
  #allocation0 [shape = 'u32[]', space=smem, size = 0x4, offset = 0x4, fixed_abs, tag = 'smem constant byte address 0x4 - core index']
  #allocation1 [shape = 'u32[144,128]{1,0:T(1,128)}', space=vmem, size = 0x12000, scoped, tag = 'internal scratch']
  %s0 = inlined_call_operand.vmem [shape: bf16[32,128], index: 0, kind: input, shape index: {}]
  %s1 = inlined_call_operand.vmem [shape: bf16[128,1024], index: 1, kind: input, shape index: {}]
  %s2 = inlined_call_operand.vmem [shape: f32[32,1024], index: 2, kind: output, shape index: {}]
  %s3 = sld [smem:[#allocation0]]
  $region98: #{generator_forward.17} parent=0
    _
  %s5 = ssub.s32 1, %s3
  %s6 = scalar_select 0, %s5, %s3
  $region1: #{generator_forward.17} parent=0
    #allocation2 [shape = 'u8[131072]{0}', space=vmem, size = 0x20000, scoped, tag = 'input window, operand 1']
    #allocation3 [shape = 'u8[65536]{0}', space=vmem, size = 0x10000, scoped, tag = 'output window, operand 0']
    loop: start=0, step=1, limit=6
    $region2: #{generator_forward.17} parent=1 // loop_pre_header
      _
    $region3: #{generator_forward.17} parent=1 // loop_header
      %s8 = sphi 0, %s12
      %p9 = scmp.ge.s32.totalorder %s8, 6
      %s15 = sphi 0, %s27
      %s16 = sphi 0, %s23
      %s17 = sphi 0, %s15
      %s18 = sphi 0, %s16
      %s19 = sphi 0, %s17
      %s20 = sphi 0, %s18
      %s30 = sphi 0, %s32
      %s33 = sphi 0, %s30
      %s34 = sphi 0, %s33
      %s50 = sphi 0, %s34
      %s56 = sphi 0, %s58
      %s59 = sphi 0, %s56
      %s60 = sphi 0, %s59
      %s76 = sphi 0, %s60
      %s84 = sphi 0, %s86
      %s87 = sphi 0, %s84
      %s88 = sphi 0, %s87
      %s104 = sphi 0, %s88
    $region4: #{generator_forward.17} parent=1 // loop_header_branch
      %11 = sbr.rel (%p9) target = $region8
    $region5: #{generator_forward.17} parent=1 // loop_body
      %s13 = ssub.s32 %s8, 1
      %s14 = ssub.s32 %s8, 2
      %s21 = sadd.s32 1, %s16
      %p22 = scmp.ge.s32.totalorder %s21, 4
      %s23 = scalar_select %p22, 0, %s21
      %s24 = sadd.s32 1, %s15
      %s25 = scalar_select %p22, %s24, %s15
      %p26 = scmp.ge.s32.totalorder %s25, 1
      %s27 = scalar_select %p26, 0, %s25
      %s28 = ssub.s32 %s15, %s27
      %p29 = scmp.eq.s32.totalorder %s28, 0
      %s31 = sadd.s32 %s30, 1
      %s32 = scalar_select %p29, %s30, %s31
      %p35 = pneg %p29
      %p36 = scmp.eq.s32.totalorder %s8, 3
      %p37 = por %p35, %p36
      %p38 = scmp.ne.s32.totalorder %s30, %s33
      %p39 = scmp.eq.s32.totalorder %s8, 0
      %p40 = por %p38, %p39
      %p41 = scmp.ne.s32.totalorder %s30, %s33
      %p42 = scmp.eq.s32.totalorder %s13, 3
      %p43 = por %p41, %p42
      %p44 = scmp.ne.s32.totalorder %s33, %s34
      %p45 = scmp.eq.s32.totalorder %s13, 0
      %p46 = por %p44, %p45
      %p47 = scmp.ne.s32.totalorder %s33, %s34
      %p48 = scmp.eq.s32.totalorder %s14, 3
      %p49 = por %p47, %p48
      %p51 = scmp.ne.s32.totalorder %s34, %s50
      %p52 = scmp.eq.s32.totalorder %s14, 0
      %p53 = por %p51, %p52
      %s54 = ssub.s32 %s16, %s23
      %p55 = scmp.eq.s32.totalorder %s54, 0
      %s57 = sadd.s32 %s56, 1
      %s58 = scalar_select %p55, %s56, %s57
      %p61 = pneg %p55
      %p62 = scmp.eq.s32.totalorder %s8, 3
      %p63 = por %p61, %p62
      %p64 = scmp.ne.s32.totalorder %s56, %s59
      %p65 = scmp.eq.s32.totalorder %s8, 0
      %p66 = por %p64, %p65
      %p67 = scmp.ne.s32.totalorder %s56, %s59
      %p68 = scmp.eq.s32.totalorder %s13, 3
      %p69 = por %p67, %p68
      %p70 = scmp.ne.s32.totalorder %s59, %s60
      %p71 = scmp.eq.s32.totalorder %s13, 0
      %p72 = por %p70, %p71
      %p73 = scmp.ne.s32.totalorder %s59, %s60
      %p74 = scmp.eq.s32.totalorder %s14, 3
      %p75 = por %p73, %p74
      %p77 = scmp.ne.s32.totalorder %s60, %s76
      %p78 = scmp.eq.s32.totalorder %s14, 0
      %p79 = por %p77, %p78
      %s80 = ssub.s32 %s15, %s27
      %s81 = ssub.s32 %s16, %s23
      %s82 = sor.u32 %s80, %s81
      %p83 = scmp.eq.s32.totalorder %s82, 0
      %s85 = sadd.s32 %s84, 1
      %s86 = scalar_select %p83, %s84, %s85
      %p89 = pneg %p83
      %p90 = scmp.eq.s32.totalorder %s8, 3
      %p91 = por %p89, %p90
      %p92 = scmp.ne.s32.totalorder %s84, %s87
      %p93 = scmp.eq.s32.totalorder %s8, 0
      %p94 = por %p92, %p93
      %p95 = scmp.ne.s32.totalorder %s84, %s87
      %p96 = scmp.eq.s32.totalorder %s13, 3
      %p97 = por %p95, %p96
      %p98 = scmp.ne.s32.totalorder %s87, %s88
      %p99 = scmp.eq.s32.totalorder %s13, 0
      %p100 = por %p98, %p99
      %p101 = scmp.ne.s32.totalorder %s87, %s88
      %p102 = scmp.eq.s32.totalorder %s14, 3
      %p103 = por %p101, %p102
      %p105 = scmp.ne.s32.totalorder %s88, %s104
      %p106 = scmp.eq.s32.totalorder %s14, 0
      %p107 = por %p105, %p106
      %p108 = scmp.le.s32.totalorder 1, %s8
      %p109 = scmp.lt.s32.totalorder %s8, 5
      %p110 = pnand %p108, %p109
      %p111 = pneg %p110
      // Predicated region
      $region9: #{generator_forward.17} parent=5 // pred_check
        _
      $region10: #{generator_forward.17} parent=5 // pred_check_branch
        %113 = sbr.rel (%p110) target = $region12
      $region11: #{generator_forward.17} parent=5 // pred_region
        %s114 = ssub.s32 %s8, 1
        // Predicated region
        $region13: #{generator_forward.17} parent=11 // pred_check
          %p115 = pneg %p46
        $region14: #{generator_forward.17} parent=11 // pred_check_branch
          %117 = sbr.rel (%p115) target = $region16
        $region15: #{generator_forward.17} parent=11 // pred_region
          %s118 = smul.u32 4, %s17
          %p119 = scmp.lt.s32.totalorder %s118, 3
          %s120 = scalar_select %p119, %s118, 3
          %s121 = smul.addr %s120, 4
          %s122 = scalar_lea.vmem %s0, %s121
          %s123 = smul.u32 4, %s17
        $region16: #{generator_forward.17} parent=11 // pred_fallthru
          _
      $region12: #{generator_forward.17} parent=5 // pred_fallthru
        _
      %p124 = scmp.lt.s32.totalorder %s8, 4
      // Predicated region
      $region17: #{generator_forward.17} parent=5 // pred_check
        %p125 = pneg %p124
      $region18: #{generator_forward.17} parent=5 // pred_check_branch
        %127 = sbr.rel (%p125) target = $region20
      $region19: #{generator_forward.17} parent=5 // pred_region
        // Predicated region
        $region21: #{generator_forward.17} parent=19 // pred_check
          %p128 = pneg %p66
        $region22: #{generator_forward.17} parent=19 // pred_check_branch
          %130 = sbr.rel (%p128) target = $region24
        $region23: #{generator_forward.17} parent=19 // pred_region
          %s131 = sand.u32 %s56, 1
          %s132 = sand.u32 %s56, 1
          %s133 = smul.addr %s132, 128
          %s134 = scalar_lea.vmem [#allocation2], %s133
          %s135 = smul.u32 2, %s16
          %s136 = smul.addr %s135, 4
          %s137 = scalar_lea.vmem %s1, %s136
          // Predicated region
          $region25: #{generator_forward.17} parent=23 // pred_check
            _
          $region26: #{generator_forward.17} parent=23 // pred_check_branch
            %139 = sbr.rel (0) target = $region28
          $region27: #{generator_forward.17} parent=23 // pred_region
            // Predicated region
            $region29: #{generator_forward.17} parent=27 // pred_check
              _
            $region30: #{generator_forward.17} parent=27 // pred_check_branch
              %141 = sbr.rel (0) target = $region32
            $region31: #{generator_forward.17} parent=27 // pred_region
              // Predicated region
              $region44: #{generator_forward.17} parent=31 // pred_check
                _
              $region45: #{generator_forward.17} parent=31 // pred_check_branch
                %186 = sbr.rel (0) target = $region47
              $region46: #{generator_forward.17} parent=31 // pred_region
                loop: start=0, step=1, limit=1
                $region48: #{generator_forward.17} parent=46 // loop_pre_header
                  _
                $region49: #{generator_forward.17} parent=46 // loop_header
                  %s188 = sphi 0, %s192
                  %p189 = scmp.ge.s32.totalorder %s188, 1
                  %s193 = sphi %s137, %s137
                  %s194 = sphi %s134, %s134
                $region50: #{generator_forward.17} parent=46 // loop_header_branch
                  %191 = sbr.rel (%p189) target = $region54
                $region51: #{generator_forward.17} parent=46 // loop_body
                  %v195 = vld [vmem:[%s193] sm:$0xff]
                  %196 = vst [vmem:[%s194] sm:$0xff] %v195
                  %v197 = vld [vmem:[%s193 + $0x20] sm:$0xff]
                  %198 = vst [vmem:[%s194 + $0x8] sm:$0xff] %v197
                  %v199 = vld [vmem:[%s193 + $0x40] sm:$0xff]
                  %200 = vst [vmem:[%s194 + $0x10] sm:$0xff] %v199
                  %v201 = vld [vmem:[%s193 + $0x60] sm:$0xff]
                  %202 = vst [vmem:[%s194 + $0x18] sm:$0xff] %v201
                  %v203 = vld [vmem:[%s193 + $0x80] sm:$0xff]
                  %204 = vst [vmem:[%s194 + $0x20] sm:$0xff] %v203
                  %v205 = vld [vmem:[%s193 + $0xa0] sm:$0xff]
                  %206 = vst [vmem:[%s194 + $0x28] sm:$0xff] %v205
                  %v207 = vld [vmem:[%s193 + $0xc0] sm:$0xff]
                  %208 = vst [vmem:[%s194 + $0x30] sm:$0xff] %v207
                  %v209 = vld [vmem:[%s193 + $0xe0] sm:$0xff]
                  %210 = vst [vmem:[%s194 + $0x38] sm:$0xff] %v209
                  %v211 = vld [vmem:[%s193 + $0x100] sm:$0xff]
                  %212 = vst [vmem:[%s194 + $0x40] sm:$0xff] %v211
                  %v213 = vld [vmem:[%s193 + $0x120] sm:$0xff]
                  %214 = vst [vmem:[%s194 + $0x48] sm:$0xff] %v213
                  %v215 = vld [vmem:[%s193 + $0x140] sm:$0xff]
                  %216 = vst [vmem:[%s194 + $0x50] sm:$0xff] %v215
                  %v217 = vld [vmem:[%s193 + $0x160] sm:$0xff]
                  %218 = vst [vmem:[%s194 + $0x58] sm:$0xff] %v217
                  %v219 = vld [vmem:[%s193 + $0x180] sm:$0xff]
                  %220 = vst [vmem:[%s194 + $0x60] sm:$0xff] %v219
                  %v221 = vld [vmem:[%s193 + $0x1a0] sm:$0xff]
                  %222 = vst [vmem:[%s194 + $0x68] sm:$0xff] %v221
                  %v223 = vld [vmem:[%s193 + $0x1c0] sm:$0xff]
                  %224 = vst [vmem:[%s194 + $0x70] sm:$0xff] %v223
                  %v225 = vld [vmem:[%s193 + $0x1e0] sm:$0xff]
                  %226 = vst [vmem:[%s194 + $0x78] sm:$0xff] %v225
                $region52: #{generator_forward.17} parent=46 // loop_footer
                  %s192 = sadd.s32 1, %s188
                $region53: #{generator_forward.17} parent=46 // loop_footer_branch
                  %187 = sbr.rel target = $region49
                $region54: #{generator_forward.17} parent=46 // loop_exit
                  _
              $region47: #{generator_forward.17} parent=31 // pred_fallthru
                _
              // Predicated region
              $region55: #{generator_forward.17} parent=31 // pred_check
                _
              $region56: #{generator_forward.17} parent=31 // pred_check_branch
                %228 = sbr.rel target = $region58
              $region57: #{generator_forward.17} parent=31 // pred_region
                _
              $region58: #{generator_forward.17} parent=31 // pred_fallthru
                _
            $region32: #{generator_forward.17} parent=27 // pred_fallthru
              _
            // Predicated region
            $region33: #{generator_forward.17} parent=27 // pred_check
              _
            $region34: #{generator_forward.17} parent=27 // pred_check_branch
              %143 = sbr.rel target = $region36
            $region35: #{generator_forward.17} parent=27 // pred_region
              loop: start=0, step=1, limit=1
              $region37: #{generator_forward.17} parent=35 // loop_pre_header
                _
              $region38: #{generator_forward.17} parent=35 // loop_header
                %s146 = sphi 0, %s150
                %p147 = scmp.ge.s32.totalorder %s146, 1
                %s151 = sphi %s137, %s137
                %s152 = sphi %s134, %s134
              $region39: #{generator_forward.17} parent=35 // loop_header_branch
                %149 = sbr.rel (%p147) target = $region43
              $region40: #{generator_forward.17} parent=35 // loop_body
                %v153 = vld [vmem:[%s151] sm:$0xff]
                %154 = vst [vmem:[%s152] sm:$0xff] %v153
                %v155 = vld [vmem:[%s151 + $0x20] sm:$0xff]
                %156 = vst [vmem:[%s152 + $0x8] sm:$0xff] %v155
                %v157 = vld [vmem:[%s151 + $0x40] sm:$0xff]
                %158 = vst [vmem:[%s152 + $0x10] sm:$0xff] %v157
                %v159 = vld [vmem:[%s151 + $0x60] sm:$0xff]
                %160 = vst [vmem:[%s152 + $0x18] sm:$0xff] %v159
                %v161 = vld [vmem:[%s151 + $0x80] sm:$0xff]
                %162 = vst [vmem:[%s152 + $0x20] sm:$0xff] %v161
                %v163 = vld [vmem:[%s151 + $0xa0] sm:$0xff]
                %164 = vst [vmem:[%s152 + $0x28] sm:$0xff] %v163
                %v165 = vld [vmem:[%s151 + $0xc0] sm:$0xff]
                %166 = vst [vmem:[%s152 + $0x30] sm:$0xff] %v165
                %v167 = vld [vmem:[%s151 + $0xe0] sm:$0xff]
                %168 = vst [vmem:[%s152 + $0x38] sm:$0xff] %v167
                %v169 = vld [vmem:[%s151 + $0x100] sm:$0xff]
                %170 = vst [vmem:[%s152 + $0x40] sm:$0xff] %v169
                %v171 = vld [vmem:[%s151 + $0x120] sm:$0xff]
                %172 = vst [vmem:[%s152 + $0x48] sm:$0xff] %v171
                %v173 = vld [vmem:[%s151 + $0x140] sm:$0xff]
                %174 = vst [vmem:[%s152 + $0x50] sm:$0xff] %v173
                %v175 = vld [vmem:[%s151 + $0x160] sm:$0xff]
                %176 = vst [vmem:[%s152 + $0x58] sm:$0xff] %v175
                %v177 = vld [vmem:[%s151 + $0x180] sm:$0xff]
                %178 = vst [vmem:[%s152 + $0x60] sm:$0xff] %v177
                %v179 = vld [vmem:[%s151 + $0x1a0] sm:$0xff]
                %180 = vst [vmem:[%s152 + $0x68] sm:$0xff] %v179
                %v181 = vld [vmem:[%s151 + $0x1c0] sm:$0xff]
                %182 = vst [vmem:[%s152 + $0x70] sm:$0xff] %v181
                %v183 = vld [vmem:[%s151 + $0x1e0] sm:$0xff]
                %184 = vst [vmem:[%s152 + $0x78] sm:$0xff] %v183
              $region41: #{generator_forward.17} parent=35 // loop_footer
                %s150 = sadd.s32 1, %s146
              $region42: #{generator_forward.17} parent=35 // loop_footer_branch
                %145 = sbr.rel target = $region38
              $region43: #{generator_forward.17} parent=35 // loop_exit
                _
            $region36: #{generator_forward.17} parent=27 // pred_fallthru
              _
          $region28: #{generator_forward.17} parent=23 // pred_fallthru
            _
          %229 = vnop
        $region24: #{generator_forward.17} parent=19 // pred_fallthru
          _
      $region20: #{generator_forward.17} parent=5 // pred_fallthru
        _
      %p230 = scmp.le.s32.totalorder 1, %s8
      %p231 = scmp.lt.s32.totalorder %s8, 5
      %p232 = pnand %p230, %p231
      %p233 = pneg %p232
      // Predicated region
      $region59: #{generator_forward.17} parent=5 // pred_check
        _
      $region60: #{generator_forward.17} parent=5 // pred_check_branch
        %235 = sbr.rel (%p232) target = $region62
      $region61: #{generator_forward.17} parent=5 // pred_region
        %s236 = ssub.s32 %s8, 1
        %s237 = sand.u32 %s59, 1
        %s238 = sand.u32 %s59, 1
        %s239 = smul.addr %s238, 128
        %s240 = scalar_lea.vmem [#allocation2], %s239
        // Predicated region
        $region63: #{generator_forward.17} parent=61 // pred_check
          %p241 = pneg %p72
        $region64: #{generator_forward.17} parent=61 // pred_check_branch
          %243 = sbr.rel (%p241) target = $region66
        $region65: #{generator_forward.17} parent=61 // pred_region
          _
        $region66: #{generator_forward.17} parent=61 // pred_fallthru
          _
        %s244 = smul.u32 4, %s17
        %p245 = scmp.lt.s32.totalorder %s244, 3
        %s246 = scalar_select %p245, %s244, 3
        %s247 = smul.addr %s246, 4
        %s248 = scalar_lea.vmem %s0, %s247
        %p249 = pneg %p46
        %p250 = pneg %p43
        %s251 = sand.u32 %s59, 1
        %s252 = sand.u32 %s59, 1
        %s253 = smul.addr %s252, 128
        %s254 = scalar_lea.vmem [#allocation2], %s253
        %p255 = pneg %p72
        %p256 = pneg %p69
        %p257 = pneg %p100
        %p258 = pneg %p97
        %s259 = sand.u32 %s87, 1
        %s260 = sand.u32 %s87, 1
        %s261 = smul.addr %s260, 64
        %s262 = scalar_lea.vmem [#allocation3], %s261
        %s263 = smul.u32 4, %s17
        %p264 = scmp.lt.s32.totalorder %s263, 3
        %s265 = scalar_select %p264, %s263, 3
        %s266 = smul.addr %s265, 4
        %s267 = scalar_lea.vmem %s0, %s266
        %s268 = smul.u32 4, %s17
        %s269 = smul.u32 2, %s18
        %s270 = smul.u32 4, %s17
        %s271 = smul.u32 2, %s18
        %v273 = vld [vmem:[%s267] sm:$0xf]
        %v274 = vld [vmem:[%s267 + $0x4] sm:$0xf]
        %v275 = vld [vmem:[%s267 + $0x8] sm:$0xf]
        %v276 = vld [vmem:[%s267 + $0xc] sm:$0xf]
        %v277 = vld [vmem:[%s240] sm:$0xff]
        %v278 = vld [vmem:[%s240 + $0x8] sm:$0xff]
        %v279 = vld [vmem:[%s240 + $0x10] sm:$0xff]
        %v280 = vld [vmem:[%s240 + $0x18] sm:$0xff]
        %v281 = vld [vmem:[%s240 + $0x20] sm:$0xff]
        %v282 = vld [vmem:[%s240 + $0x28] sm:$0xff]
        %v283 = vld [vmem:[%s240 + $0x30] sm:$0xff]
        %v284 = vld [vmem:[%s240 + $0x38] sm:$0xff]
        %v285 = vld [vmem:[%s240 + $0x40] sm:$0xff]
        %v286 = vld [vmem:[%s240 + $0x48] sm:$0xff]
        %v287 = vld [vmem:[%s240 + $0x50] sm:$0xff]
        %v288 = vld [vmem:[%s240 + $0x58] sm:$0xff]
        %v289 = vld [vmem:[%s240 + $0x60] sm:$0xff]
        %v290 = vld [vmem:[%s240 + $0x68] sm:$0xff]
        %v291 = vld [vmem:[%s240 + $0x70] sm:$0xff]
        %v292 = vld [vmem:[%s240 + $0x78] sm:$0xff]
        %v297 = vunpack.c.l.b16 %v273
        %v298 = vunpack.c.l.b16 %v274
        %v299 = vunpack.c.l.b16 %v275
        %v300 = vunpack.c.l.b16 %v276
        %v301 = vpack.c.b16 %v298, %v297
        %v302 = vpack.c.b16 %v300, %v299
        %v321 = vunpack.c.l.b16 %v277
        %v322 = vunpack.c.h.b16 %v277
        %v323 = vunpack.c.l.b16 %v278
        %v324 = vunpack.c.h.b16 %v278
        %v325 = vunpack.c.l.b16 %v279
        %v326 = vunpack.c.h.b16 %v279
        %v327 = vunpack.c.l.b16 %v280
        %v328 = vunpack.c.h.b16 %v280
        %v329 = vunpack.c.l.b16 %v281
        %v330 = vunpack.c.h.b16 %v281
        %v331 = vunpack.c.l.b16 %v282
        %v332 = vunpack.c.h.b16 %v282
        %v333 = vunpack.c.l.b16 %v283
        %v334 = vunpack.c.h.b16 %v283
        %v335 = vunpack.c.l.b16 %v284
        %v336 = vunpack.c.h.b16 %v284
        %v337 = vunpack.c.l.b16 %v285
        %v338 = vunpack.c.h.b16 %v285
        %v339 = vunpack.c.l.b16 %v286
        %v340 = vunpack.c.h.b16 %v286
        %v341 = vunpack.c.l.b16 %v287
        %v342 = vunpack.c.h.b16 %v287
        %v343 = vunpack.c.l.b16 %v288
        %v344 = vunpack.c.h.b16 %v288
        %v345 = vunpack.c.l.b16 %v289
        %v346 = vunpack.c.h.b16 %v289
        %v347 = vunpack.c.l.b16 %v290
        %v348 = vunpack.c.h.b16 %v290
        %v349 = vunpack.c.l.b16 %v291
        %v350 = vunpack.c.h.b16 %v291
        %v351 = vunpack.c.l.b16 %v292
        %v352 = vunpack.c.h.b16 %v292
        %v353 = vpack.c.b16 %v323, %v321
        %v354 = vpack.c.b16 %v324, %v322
        %v355 = vpack.c.b16 %v327, %v325
        %v356 = vpack.c.b16 %v328, %v326
        %v357 = vpack.c.b16 %v331, %v329
        %v358 = vpack.c.b16 %v332, %v330
        %v359 = vpack.c.b16 %v335, %v333
        %v360 = vpack.c.b16 %v336, %v334
        %v361 = vpack.c.b16 %v339, %v337
        %v362 = vpack.c.b16 %v340, %v338
        %v363 = vpack.c.b16 %v343, %v341
        %v364 = vpack.c.b16 %v344, %v342
        %v365 = vpack.c.b16 %v347, %v345
        %v366 = vpack.c.b16 %v348, %v346
        %v367 = vpack.c.b16 %v351, %v349
        %v368 = vpack.c.b16 %v352, %v350
        %385 = vmatprep.subr.bf16.mxu0 %v354
        %386 = vmatpush1.bf16.msra.mxu0 %v353
        %387 = vmatprep.subr.bf16.mxu0 %v356
        %388 = vmatpush1.bf16.msra.mxu0 %v355
        %389 = vmatprep.subr.bf16.mxu0 %v358
        %390 = vmatpush1.bf16.msra.mxu0 %v357
        %391 = vmatprep.subr.bf16.mxu0 %v360
        %392 = vmatpush1.bf16.msra.mxu0 %v359
        %393 = vmatprep.subr.bf16.mxu0 %v362
        %394 = vmatpush1.bf16.msra.mxu0 %v361
        %395 = vmatprep.subr.bf16.mxu0 %v364
        %396 = vmatpush1.bf16.msra.mxu0 %v363
        %397 = vmatprep.subr.bf16.mxu0 %v366
        %398 = vmatpush1.bf16.msra.mxu0 %v365
        %399 = vmatprep.subr.bf16.mxu0 %v368
        %400 = vmatpush1.bf16.msra.mxu0 %v367
        %401 = vmatprep.subr.bf16.mxu0 0
        %402 = vmatpush1.bf16.msra.mxu0 0
        %403 = vmatprep.subr.bf16.mxu0 0
        %404 = vmatpush1.bf16.msra.mxu0 0
        %405 = vmatprep.subr.bf16.mxu0 0
        %406 = vmatpush1.bf16.msra.mxu0 0
        %407 = vmatprep.subr.bf16.mxu0 0
        %408 = vmatpush1.bf16.msra.mxu0 0
        %409 = vmatprep.subr.bf16.mxu0 0
        %410 = vmatpush1.bf16.msra.mxu0 0
        %411 = vmatprep.subr.bf16.mxu0 0
        %412 = vmatpush1.bf16.msra.mxu0 0
        %413 = vmatprep.subr.bf16.mxu0 0
        %414 = vmatpush1.bf16.msra.mxu0 0
        %415 = vmatprep.subr.bf16.mxu0 0
        %416 = vmatpush1.bf16.msra.mxu0 0
        %417 = vmatprep.mubr.bf16.mxu0 0
        %418 = vmatmul.mubr.bf16.gmra.mrb[0].mxu0 %v301
        %v419 = vpop.f32.mrb[0].mxu0
        %v420 = vadd.f32 0.0, %v419
        %v421 = vpop.f32.mrb[0].mxu0
        %v422 = vadd.f32 0.0, %v421
        %v423 = vpop.f32.mrb[0].mxu0
        %v424 = vadd.f32 0.0, %v423
        %v425 = vpop.f32.mrb[0].mxu0
        %v426 = vadd.f32 0.0, %v425
        %427 = vmatprep.mubr.bf16.mxu0 0
        %428 = vmatmul.mubr.bf16.gmra.mrb[0].mxu0 %v302
        %v429 = vpop.f32.mrb[0].mxu0
        %v430 = vadd.f32 0.0, %v429
        %v431 = vpop.f32.mrb[0].mxu0
        %v432 = vadd.f32 0.0, %v431
        %v433 = vpop.f32.mrb[0].mxu0
        %v434 = vadd.f32 0.0, %v433
        %v435 = vpop.f32.mrb[0].mxu0
        %v436 = vadd.f32 0.0, %v435
        %437 = vdwg.mxu0
        %438 = vst [vmem:[%s262] sm:$0xff] %v420
        %439 = vst [vmem:[%s262 + $0x8] sm:$0xff] %v422
        %440 = vst [vmem:[%s262 + $0x10] sm:$0xff] %v424
        %441 = vst [vmem:[%s262 + $0x18] sm:$0xff] %v426
        %442 = vst [vmem:[%s262 + $0x20] sm:$0xff] %v430
        %443 = vst [vmem:[%s262 + $0x28] sm:$0xff] %v432
        %444 = vst [vmem:[%s262 + $0x30] sm:$0xff] %v434
        %445 = vst [vmem:[%s262 + $0x38] sm:$0xff] %v436
        %s446 = sand.u32 %s87, 1
        %s447 = sand.u32 %s87, 1
        %s448 = smul.addr %s447, 64
        %s449 = scalar_lea.vmem [#allocation3], %s448
        // Predicated region
        $region67: #{generator_forward.17} parent=61 // pred_check
          %p450 = pneg %p97
        $region68: #{generator_forward.17} parent=61 // pred_check_branch
          %452 = sbr.rel (%p450) target = $region70
        $region69: #{generator_forward.17} parent=61 // pred_region
          %s453 = smul.u32 4, %s17
          %s454 = smul.u32 2, %s18
          %s455 = smul.addr %s453, 8
          %s456 = sadd.s32 %s454, %s455
          %s457 = smul.addr %s456, 8
          %s458 = scalar_lea.vmem %s2, %s457
          // Predicated region
          $region71: #{generator_forward.17} parent=69 // pred_check
            _
          $region72: #{generator_forward.17} parent=69 // pred_check_branch
            %460 = sbr.rel (0) target = $region74
          $region73: #{generator_forward.17} parent=69 // pred_region
            // Predicated region
            $region75: #{generator_forward.17} parent=73 // pred_check
              _
            $region76: #{generator_forward.17} parent=73 // pred_check_branch
              %462 = sbr.rel (0) target = $region78
            $region77: #{generator_forward.17} parent=73 // pred_region
              loop: start=0, step=1, limit=1
              $region79: #{generator_forward.17} parent=77 // loop_pre_header
                _
              $region80: #{generator_forward.17} parent=77 // loop_header
                %s464 = sphi 0, %s468
                %p465 = scmp.ge.s32.totalorder %s464, 1
                %s469 = sphi %s449, %s449
                %s470 = sphi %s458, %s458
              $region81: #{generator_forward.17} parent=77 // loop_header_branch
                %467 = sbr.rel (%p465) target = $region85
              $region82: #{generator_forward.17} parent=77 // loop_body
                %v471 = vld [vmem:[%s469] sm:$0xff]
                %472 = vst [vmem:[%s470] sm:$0xff] %v471
                %v473 = vld [vmem:[%s469 + $0x8] sm:$0xff]
                %474 = vst [vmem:[%s470 + $0x8] sm:$0xff] %v473
                %v475 = vld [vmem:[%s469 + $0x10] sm:$0xff]
                %476 = vst [vmem:[%s470 + $0x40] sm:$0xff] %v475
                %v477 = vld [vmem:[%s469 + $0x18] sm:$0xff]
                %478 = vst [vmem:[%s470 + $0x48] sm:$0xff] %v477
                %v479 = vld [vmem:[%s469 + $0x20] sm:$0xff]
                %480 = vst [vmem:[%s470 + $0x80] sm:$0xff] %v479
                %v481 = vld [vmem:[%s469 + $0x28] sm:$0xff]
                %482 = vst [vmem:[%s470 + $0x88] sm:$0xff] %v481
                %v483 = vld [vmem:[%s469 + $0x30] sm:$0xff]
                %484 = vst [vmem:[%s470 + $0xc0] sm:$0xff] %v483
                %v485 = vld [vmem:[%s469 + $0x38] sm:$0xff]
                %486 = vst [vmem:[%s470 + $0xc8] sm:$0xff] %v485
              $region83: #{generator_forward.17} parent=77 // loop_footer
                %s468 = sadd.s32 1, %s464
              $region84: #{generator_forward.17} parent=77 // loop_footer_branch
                %463 = sbr.rel target = $region80
              $region85: #{generator_forward.17} parent=77 // loop_exit
                _
            $region78: #{generator_forward.17} parent=73 // pred_fallthru
              _
            // Predicated region
            $region86: #{generator_forward.17} parent=73 // pred_check
              _
            $region87: #{generator_forward.17} parent=73 // pred_check_branch
              %488 = sbr.rel target = $region89
            $region88: #{generator_forward.17} parent=73 // pred_region
              _
            $region89: #{generator_forward.17} parent=73 // pred_fallthru
              _
          $region74: #{generator_forward.17} parent=69 // pred_fallthru
            _
          %489 = vnop
        $region70: #{generator_forward.17} parent=61 // pred_fallthru
          _
      $region62: #{generator_forward.17} parent=5 // pred_fallthru
        _
      %p490 = scmp.le.s32.totalorder 2, %s8
      // Predicated region
      $region90: #{generator_forward.17} parent=5 // pred_check
        %p491 = pneg %p490
      $region91: #{generator_forward.17} parent=5 // pred_check_branch
        %493 = sbr.rel (%p491) target = $region93
      $region92: #{generator_forward.17} parent=5 // pred_region
        %s494 = ssub.s32 %s8, 2
        // Predicated region
        $region94: #{generator_forward.17} parent=92 // pred_check
          %p495 = pneg %p103
        $region95: #{generator_forward.17} parent=92 // pred_check_branch
          %497 = sbr.rel (%p495) target = $region97
        $region96: #{generator_forward.17} parent=92 // pred_region
          %s498 = sand.u32 %s88, 1
          %s499 = sand.u32 %s88, 1
          %s500 = smul.addr %s499, 64
          %s501 = scalar_lea.vmem [#allocation3], %s500
        $region97: #{generator_forward.17} parent=92 // pred_fallthru
          _
      $region93: #{generator_forward.17} parent=5 // pred_fallthru
        _
    $region6: #{generator_forward.17} parent=1 // loop_footer
      %s12 = sadd.s32 1, %s8
    $region7: #{generator_forward.17} parent=1 // loop_footer_branch
      %7 = sbr.rel target = $region3
    $region8: #{generator_forward.17} parent=1 // loop_exit
      _

// kernel: tile.58
$region0: #{tile.58}
  #allocation0 [shape = 's32[1]{0}', space=sflag, size = 0x4, scoped, tag = 'scoped memory for tile.58']
  %s0 = inlined_call_operand.vmem [shape: f32[64], index: 0, kind: input, shape index: {}]
  %s1 = inlined_call_operand.vmem [shape: f32[8,64], index: 1, kind: output, shape index: {}]
  // Predicated region
  $region2: #{tile.58} parent=0 // pred_check
    _
  $region3: #{tile.58} parent=0 // pred_check_branch
    %3 = sbr.rel (0) target = $region5
  $region4: #{tile.58} parent=0 // pred_region
    _
  $region5: #{tile.58} parent=0 // pred_fallthru
    _
  %v4 = vld [vmem:[%s0] ss:$0 sm:$0xff]
  %5 = vst [vmem:[%s1] sm:$0xff] %v4

// kernel: tile.59
$region0: #{tile.59}
  %s0 = inlined_call_operand.vmem [shape: f32[8,64], index: 0, kind: input, shape index: {}]
  %s1 = inlined_call_operand.vmem [shape: f32[1,512], index: 1, kind: output, shape index: {}]
  $region1: #{tile.59} parent=0
    #allocation0 [shape = 'u8[16384]{0}', space=vmem, size = 0x4000, scoped, tag = 'scoped mem for output reshape']
    %v2 = vld [vmem:[%s0] ss:$2 sm:$0xf]
    %vm3 = vcmask 523264
    %4 = vst.msk [vmem:[#allocation0] ss:$8 sm:$0xf] %vm3, %v2
    %s5 = scalar_lea.vmem %s0, 1
    %v6 = vld [vmem:[%s5] ss:$2 sm:$0xf]
    %7 = vrot.lane.b32.xlu0 %v6, 64
    %v8 = vpop.permute.xlu0 %7
    %vm9 = vcmask 1048064
    %10 = vst.msk [vmem:[#allocation0] ss:$8 sm:$0xf] %vm9, %v8
    %s12 = sshllo.u32 0, 1
    %v14 = vld [vmem:[#allocation0] sm:%s12]
    %s15 = sshllo.u32 0, 1
    %16 = vst [vmem:[%s1] sm:%s15] %v14
    %s17 = scalar_lea.vmem [#allocation0], 8
    %v18 = vld [vmem:[%s17] sm:%s12]
    %s19 = sshllo.u32 0, 1
    %s20 = scalar_lea.vmem %s1, 1
    %21 = vst [vmem:[%s20] sm:%s19] %v18
    %s22 = scalar_lea.vmem [#allocation0], 16
    %v23 = vld [vmem:[%s22] sm:%s12]
    %s24 = sshllo.u32 0, 1
    %s25 = smul.addr 1, 2
    %s26 = scalar_lea.vmem %s1, %s25
    %27 = vst [vmem:[%s26] sm:%s24] %v23
    %s28 = scalar_lea.vmem [#allocation0], 24
    %v29 = vld [vmem:[%s28] sm:%s12]
    %s30 = sshllo.u32 0, 1
    %s31 = smul.addr 1, 3
    %s32 = scalar_lea.vmem %s1, %s31
    %33 = vst [vmem:[%s32] sm:%s30] %v29

// kernel: generator_forward.18
$region0: #{generator_forward.18}
  #allocation0 [shape = 'u32[]', space=smem, size = 0x4, offset = 0x4, fixed_abs, tag = 'smem constant byte address 0x4 - core index']
  #allocation1 [shape = 'u32[144,128]{1,0:T(1,128)}', space=vmem, size = 0x12000, scoped, tag = 'internal scratch']
  %s0 = inlined_call_operand.vmem [shape: f32[16,512], index: 0, kind: input, shape index: {}]
  %s1 = inlined_call_operand.vmem [shape: f32[1,512], index: 1, kind: output, shape index: {0}]
  %s2 = inlined_call_operand.vmem [shape: f32[1,512], index: 2, kind: output, shape index: {1}]
  %3 = xla_tuple %s1, %s2
  %s4 = sld [smem:[#allocation0]]
  $region26: #{generator_forward.18} parent=0
    _
  %s6 = ssub.s32 1, %s4
  %s7 = scalar_select 0, %s6, %s4
  // Predicated region
  $region2: #{generator_forward.18} parent=0 // pred_check
    _
  $region3: #{generator_forward.18} parent=0 // pred_check_branch
    %9 = sbr.rel (0) target = $region5
  $region4: #{generator_forward.18} parent=0 // pred_region
    _
  $region5: #{generator_forward.18} parent=0 // pred_fallthru
    _
  %p10 = scmp.eq.s32.totalorder 0, 0
  // Predicated region
  $region6: #{generator_forward.18} parent=0 // pred_check
    %p11 = pneg %p10
  $region7: #{generator_forward.18} parent=0 // pred_check_branch
    %13 = sbr.rel (%p11) target = $region9
  $region8: #{generator_forward.18} parent=0 // pred_region
    %v14 = vlaneseq
    %vm15 = vcmp.ge.s32.totalorder %v14, 0
    %vm16 = vcmp.lt.s32.totalorder %v14, 512
    %vm17 = vmand %vm15, %vm16
    %18 = vst.msk [vmem:[%s1] sm:$0xf] %vm17, 0.0
    %19 = vst.msk [vmem:[%s2] sm:$0xf] %vm17, 0.0
  $region9: #{generator_forward.18} parent=0 // pred_fallthru
    _
  %v20 = vld [vmem:[%s0] sm:$0xff]
  %v21 = vld [vmem:[%s0 + $0x8] sm:$0xff]
  %v22 = vld [vmem:[%s0 + $0x10] sm:$0xff]
  %v23 = vld [vmem:[%s0 + $0x18] sm:$0xff]
  %v24 = vld [vmem:[%s0 + $0x20] sm:$0xff]
  %v25 = vld [vmem:[%s0 + $0x28] sm:$0xff]
  %v26 = vld [vmem:[%s0 + $0x30] sm:$0xff]
  %v27 = vld [vmem:[%s0 + $0x38] sm:$0xff]
  %v28 = vld [vmem:[%s1] sm:$0xf]
  %v29 = vadd.f32 %v20, %v24
  %v30 = vrot.slane %v29, 4
  %v31 = vadd.f32 %v29, %v30
  %v32 = vrot.slane %v31, 2
  %v33 = vadd.f32 %v31, %v32
  %v34 = vrot.slane %v33, 1
  %v35 = vadd.f32 %v33, %v34
  %v36 = vadd.f32 %v21, %v25
  %v37 = vrot.slane %v36, 4
  %v38 = vadd.f32 %v36, %v37
  %v39 = vrot.slane %v38, 2
  %v40 = vadd.f32 %v38, %v39
  %v41 = vrot.slane %v40, 1
  %v42 = vadd.f32 %v40, %v41
  %v43 = vadd.f32 %v22, %v26
  %v44 = vrot.slane %v43, 4
  %v45 = vadd.f32 %v43, %v44
  %v46 = vrot.slane %v45, 2
  %v47 = vadd.f32 %v45, %v46
  %v48 = vrot.slane %v47, 1
  %v49 = vadd.f32 %v47, %v48
  %v50 = vadd.f32 %v23, %v27
  %v51 = vrot.slane %v50, 4
  %v52 = vadd.f32 %v50, %v51
  %v53 = vrot.slane %v52, 2
  %v54 = vadd.f32 %v52, %v53
  %v55 = vrot.slane %v54, 1
  %v56 = vadd.f32 %v54, %v55
  %v61 = vcombine.low %v35, %v42
  %v62 = vcombine.low %v49, %v56
  %v64 = vunpack.c.l.s4 1966171168
  %v65 = vunpack.c.0.s8 %v64
  %v66 = vlaneseq
  %v67 = vshrl.u32 %v66, 7
  %v68 = vsub.s32 %v65, %v67
  %v69 = vrot.slane %v61, %v68
  %v71 = vunpack.c.l.s4 1966171168
  %v72 = vunpack.c.0.s8 %v71
  %v73 = vlaneseq
  %v74 = vshrl.u32 %v73, 7
  %v75 = vsub.s32 %v72, %v74
  %v76 = vrot.slane %v62, %v75
  %v77 = vcombine.low %v69, %v76
  %v79 = vunpack.c.l.s4 1966171168
  %v80 = vunpack.c.0.s8 %v79
  %v81 = vlaneseq
  %v82 = vshrl.u32 %v81, 7
  %v83 = vsub.s32 %v80, %v82
  %v84 = vrot.slane %v77, %v83
  %v86 = vadd.f32 %v28, %v84
  %v87 = vlaneseq
  %vm88 = vcmp.ge.s32.totalorder %v87, 0
  %vm89 = vcmp.lt.s32.totalorder %v87, 512
  %vm90 = vmand %vm88, %vm89
  %91 = vst.msk [vmem:[%s1] sm:$0xf] %vm90, %v86
  %v92 = vld [vmem:[%s2] sm:$0xf]
  %v93 = vmul.f32 %v20, %v20
  %v94 = vmul.f32 %v21, %v21
  %v95 = vmul.f32 %v22, %v22
  %v96 = vmul.f32 %v23, %v23
  %v97 = vmul.f32 %v24, %v24
  %v98 = vmul.f32 %v25, %v25
  %v99 = vmul.f32 %v26, %v26
  %v100 = vmul.f32 %v27, %v27
  %v101 = vadd.f32 %v93, %v97
  %v102 = vrot.slane %v101, 4
  %v103 = vadd.f32 %v101, %v102
  %v104 = vrot.slane %v103, 2
  %v105 = vadd.f32 %v103, %v104
  %v106 = vrot.slane %v105, 1
  %v107 = vadd.f32 %v105, %v106
  %v108 = vadd.f32 %v94, %v98
  %v109 = vrot.slane %v108, 4
  %v110 = vadd.f32 %v108, %v109
  %v111 = vrot.slane %v110, 2
  %v112 = vadd.f32 %v110, %v111
  %v113 = vrot.slane %v112, 1
  %v114 = vadd.f32 %v112, %v113
  %v115 = vadd.f32 %v95, %v99
  %v116 = vrot.slane %v115, 4
  %v117 = vadd.f32 %v115, %v116
  %v118 = vrot.slane %v117, 2
  %v119 = vadd.f32 %v117, %v118
  %v120 = vrot.slane %v119, 1
  %v121 = vadd.f32 %v119, %v120
  %v122 = vadd.f32 %v96, %v100
  %v123 = vrot.slane %v122, 4
  %v124 = vadd.f32 %v122, %v123
  %v125 = vrot.slane %v124, 2
  %v126 = vadd.f32 %v124, %v125
  %v127 = vrot.slane %v126, 1
  %v128 = vadd.f32 %v126, %v127
  %v133 = vcombine.low %v107, %v114
  %v134 = vcombine.low %v121, %v128
  %v136 = vunpack.c.l.s4 1966171168
  %v137 = vunpack.c.0.s8 %v136
  %v138 = vlaneseq
  %v139 = vshrl.u32 %v138, 7
  %v140 = vsub.s32 %v137, %v139
  %v141 = vrot.slane %v133, %v140
  %v143 = vunpack.c.l.s4 1966171168
  %v144 = vunpack.c.0.s8 %v143
  %v145 = vlaneseq
  %v146 = vshrl.u32 %v145, 7
  %v147 = vsub.s32 %v144, %v146
  %v148 = vrot.slane %v134, %v147
  %v149 = vcombine.low %v141, %v148
  %v151 = vunpack.c.l.s4 1966171168
  %v152 = vunpack.c.0.s8 %v151
  %v153 = vlaneseq
  %v154 = vshrl.u32 %v153, 7
  %v155 = vsub.s32 %v152, %v154
  %v156 = vrot.slane %v149, %v155
  %v158 = vadd.f32 %v92, %v156
  %159 = vst.msk [vmem:[%s2] sm:$0xf] %vm90, %v158
  // Predicated region
  $region10: #{generator_forward.18} parent=0 // pred_check
    _
  $region11: #{generator_forward.18} parent=0 // pred_check_branch
    %161 = sbr.rel (0) target = $region13
  $region12: #{generator_forward.18} parent=0 // pred_region
    _
  $region13: #{generator_forward.18} parent=0 // pred_fallthru
    _
  // Predicated region
  $region14: #{generator_forward.18} parent=0 // pred_check
    _
  $region15: #{generator_forward.18} parent=0 // pred_check_branch
    %163 = sbr.rel (0) target = $region17
  $region16: #{generator_forward.18} parent=0 // pred_region
    _
  $region17: #{generator_forward.18} parent=0 // pred_fallthru
    _
  // Predicated region
  $region18: #{generator_forward.18} parent=0 // pred_check
    _
  $region19: #{generator_forward.18} parent=0 // pred_check_branch
    %165 = sbr.rel (0) target = $region21
  $region20: #{generator_forward.18} parent=0 // pred_region
    _
  $region21: #{generator_forward.18} parent=0 // pred_fallthru
    _
  // Predicated region
  $region22: #{generator_forward.18} parent=0 // pred_check
    _
  $region23: #{generator_forward.18} parent=0 // pred_check_branch
    %167 = sbr.rel (0) target = $region25
  $region24: #{generator_forward.18} parent=0 // pred_region
    _
  $region25: #{generator_forward.18} parent=0 // pred_fallthru
    _

// kernel: generator_forward.19
$region0: #{generator_forward.19}
  #allocation0 [shape = 'u32[]', space=smem, size = 0x4, offset = 0x4, fixed_abs, tag = 'smem constant byte address 0x4 - core index']
  #allocation1 [shape = 'u32[144,128]{1,0:T(1,128)}', space=vmem, size = 0x12000, scoped, tag = 'internal scratch']
  %s0 = inlined_call_operand.vmem [shape: f32[16,512], index: 0, kind: input, shape index: {}]
  %s1 = inlined_call_operand.vmem [shape: f32[1,512], index: 1, kind: input, shape index: {}]
  %s2 = inlined_call_operand.vmem [shape: f32[1,512], index: 2, kind: input, shape index: {}]
  %s3 = inlined_call_operand.vmem [shape: bf16[16,512], index: 3, kind: output, shape index: {}]
  %s4 = sld [smem:[#allocation0]]
  $region22: #{generator_forward.19} parent=0
    _
  %s6 = ssub.s32 1, %s4
  %s7 = scalar_select 0, %s6, %s4
  // Predicated region
  $region2: #{generator_forward.19} parent=0 // pred_check
    _
  $region3: #{generator_forward.19} parent=0 // pred_check_branch
    %9 = sbr.rel (0) target = $region5
  $region4: #{generator_forward.19} parent=0 // pred_region
    _
  $region5: #{generator_forward.19} parent=0 // pred_fallthru
    _
  // Predicated region
  $region6: #{generator_forward.19} parent=0 // pred_check
    _
  $region7: #{generator_forward.19} parent=0 // pred_check_branch
    %11 = sbr.rel (0) target = $region9
  $region8: #{generator_forward.19} parent=0 // pred_region
    _
  $region9: #{generator_forward.19} parent=0 // pred_fallthru
    _
  // Predicated region
  $region10: #{generator_forward.19} parent=0 // pred_check
    _
  $region11: #{generator_forward.19} parent=0 // pred_check_branch
    %13 = sbr.rel (0) target = $region13
  $region12: #{generator_forward.19} parent=0 // pred_region
    _
  $region13: #{generator_forward.19} parent=0 // pred_fallthru
    _
  %v14 = vld [vmem:[%s0] sm:$0xff]
  %v15 = vld [vmem:[%s0 + $0x8] sm:$0xff]
  %v16 = vld [vmem:[%s0 + $0x10] sm:$0xff]
  %v17 = vld [vmem:[%s0 + $0x18] sm:$0xff]
  %v18 = vld [vmem:[%s0 + $0x20] sm:$0xff]
  %v19 = vld [vmem:[%s0 + $0x28] sm:$0xff]
  %v20 = vld [vmem:[%s0 + $0x30] sm:$0xff]
  %v21 = vld [vmem:[%s0 + $0x38] sm:$0xff]
  %v22 = vld [vmem:[%s1] sm:$0xf]
  %v24 = vlaneseq
  %v25 = vshrl.u32 %v24, 7
  %v26 = vsub.s32 0, %v25
  %v27 = vrot.slane %v22, %v26
  %v28 = vlaneseq
  %v29 = vshrl.u32 %v28, 7
  %v30 = vsub.s32 1, %v29
  %v31 = vrot.slane %v22, %v30
  %v32 = vlaneseq
  %v33 = vshrl.u32 %v32, 7
  %v34 = vsub.s32 2, %v33
  %v35 = vrot.slane %v22, %v34
  %v36 = vlaneseq
  %v37 = vshrl.u32 %v36, 7
  %v38 = vsub.s32 3, %v37
  %v39 = vrot.slane %v22, %v38
  %v44 = vmul.f32 %v14, %v27
  %v45 = vmul.f32 %v15, %v31
  %v46 = vmul.f32 %v16, %v35
  %v47 = vmul.f32 %v17, %v39
  %v48 = vmul.f32 %v18, %v27
  %v49 = vmul.f32 %v19, %v31
  %v50 = vmul.f32 %v20, %v35
  %v51 = vmul.f32 %v21, %v39
  %v52 = vld [vmem:[%s2] sm:$0xf]
  %v54 = vlaneseq
  %v55 = vshrl.u32 %v54, 7
  %v56 = vsub.s32 0, %v55
  %v57 = vrot.slane %v52, %v56
  %v58 = vlaneseq
  %v59 = vshrl.u32 %v58, 7
  %v60 = vsub.s32 1, %v59
  %v61 = vrot.slane %v52, %v60
  %v62 = vlaneseq
  %v63 = vshrl.u32 %v62, 7
  %v64 = vsub.s32 2, %v63
  %v65 = vrot.slane %v52, %v64
  %v66 = vlaneseq
  %v67 = vshrl.u32 %v66, 7
  %v68 = vsub.s32 3, %v67
  %v69 = vrot.slane %v52, %v68
  %v74 = vadd.f32 %v44, %v57
  %v75 = vadd.f32 %v45, %v61
  %v76 = vadd.f32 %v46, %v65
  %v77 = vadd.f32 %v47, %v69
  %v78 = vadd.f32 %v48, %v57
  %v79 = vadd.f32 %v49, %v61
  %v80 = vadd.f32 %v50, %v65
  %v81 = vadd.f32 %v51, %v69
  %v82 = vmax.f32 %v74, 0.0
  %v83 = vmax.f32 %v75, 0.0
  %v84 = vmax.f32 %v76, 0.0
  %v85 = vmax.f32 %v77, 0.0
  %v86 = vmax.f32 %v78, 0.0
  %v87 = vmax.f32 %v79, 0.0
  %v88 = vmax.f32 %v80, 0.0
  %v89 = vmax.f32 %v81, 0.0
  %v90 = vpack.c.bf16 %v86, %v82
  %v91 = vpack.c.bf16 %v87, %v83
  %v92 = vpack.c.bf16 %v88, %v84
  %v93 = vpack.c.bf16 %v89, %v85
  %v98 = vunpack.c.l.b16 %v90
  %v99 = vunpack.c.l.b16 %v91
  %v100 = vunpack.c.l.b16 %v92
  %v101 = vunpack.c.l.b16 %v93
  %v102 = vunpack.c.h.b16 %v90
  %v103 = vunpack.c.h.b16 %v91
  %v104 = vunpack.c.h.b16 %v92
  %v105 = vunpack.c.h.b16 %v93
  %v106 = vpack.c.b16 %v99, %v98
  %v107 = vpack.c.b16 %v101, %v100
  %v108 = vpack.c.b16 %v103, %v102
  %v109 = vpack.c.b16 %v105, %v104
  %114 = vst [vmem:[%s3] sm:$0xff] %v106
  %115 = vst [vmem:[%s3 + $0x8] sm:$0xff] %v107
  %116 = vst [vmem:[%s3 + $0x10] sm:$0xff] %v108
  %117 = vst [vmem:[%s3 + $0x18] sm:$0xff] %v109
  // Predicated region
  $region14: #{generator_forward.19} parent=0 // pred_check
    _
  $region15: #{generator_forward.19} parent=0 // pred_check_branch
    %119 = sbr.rel (0) target = $region17
  $region16: #{generator_forward.19} parent=0 // pred_region
    _
  $region17: #{generator_forward.19} parent=0 // pred_fallthru
    _
  // Predicated region
  $region18: #{generator_forward.19} parent=0 // pred_check
    _
  $region19: #{generator_forward.19} parent=0 // pred_check_branch
    %121 = sbr.rel (0) target = $region21
  $region20: #{generator_forward.19} parent=0 // pred_region
    _
  $region21: #{generator_forward.19} parent=0 // pred_fallthru
    _

// kernel: generator_forward.20
$region0: #{generator_forward.20}
  #allocation0 [shape = 'u32[]', space=smem, size = 0x4, offset = 0x4, fixed_abs, tag = 'smem constant byte address 0x4 - core index']
  #allocation1 [shape = 'u32[144,128]{1,0:T(1,128)}', space=vmem, size = 0x12000, scoped, tag = 'internal scratch']
  %s0 = inlined_call_operand.vmem [shape: bf16[128,64], index: 0, kind: input, shape index: {}]
  %s1 = inlined_call_operand.vmem [shape: bf16[64,512], index: 1, kind: input, shape index: {}]
  %s2 = inlined_call_operand.vmem [shape: f32[128,512], index: 2, kind: output, shape index: {}]
  %s3 = sld [smem:[#allocation0]]
  $region98: #{generator_forward.20} parent=0
    _
  %s5 = ssub.s32 1, %s3
  %s6 = scalar_select 0, %s5, %s3
  $region1: #{generator_forward.20} parent=0
    #allocation2 [shape = 'u8[65536]{0}', space=vmem, size = 0x10000, scoped, tag = 'input window, operand 1']
    #allocation3 [shape = 'u8[262144]{0}', space=vmem, size = 0x40000, scoped, tag = 'output window, operand 0']
    loop: start=0, step=1, limit=4
    $region2: #{generator_forward.20} parent=1 // loop_pre_header
      _
    $region3: #{generator_forward.20} parent=1 // loop_header
      %s8 = sphi 0, %s12
      %p9 = scmp.ge.s32.totalorder %s8, 4
      %s15 = sphi 0, %s27
      %s16 = sphi 0, %s23
      %s17 = sphi 0, %s15
      %s18 = sphi 0, %s16
      %s19 = sphi 0, %s17
      %s20 = sphi 0, %s18
      %s30 = sphi 0, %s32
      %s33 = sphi 0, %s30
      %s34 = sphi 0, %s33
      %s50 = sphi 0, %s34
      %s56 = sphi 0, %s58
      %s59 = sphi 0, %s56
      %s60 = sphi 0, %s59
      %s76 = sphi 0, %s60
      %s84 = sphi 0, %s86
      %s87 = sphi 0, %s84
      %s88 = sphi 0, %s87
      %s104 = sphi 0, %s88
    $region4: #{generator_forward.20} parent=1 // loop_header_branch
      %11 = sbr.rel (%p9) target = $region8
    $region5: #{generator_forward.20} parent=1 // loop_body
      %s13 = ssub.s32 %s8, 1
      %s14 = ssub.s32 %s8, 2
      %s21 = sadd.s32 1, %s16
      %p22 = scmp.ge.s32.totalorder %s21, 2
      %s23 = scalar_select %p22, 0, %s21
      %s24 = sadd.s32 1, %s15
      %s25 = scalar_select %p22, %s24, %s15
      %p26 = scmp.ge.s32.totalorder %s25, 1
      %s27 = scalar_select %p26, 0, %s25
      %s28 = ssub.s32 %s15, %s27
      %p29 = scmp.eq.s32.totalorder %s28, 0
      %s31 = sadd.s32 %s30, 1
      %s32 = scalar_select %p29, %s30, %s31
      %p35 = pneg %p29
      %p36 = scmp.eq.s32.totalorder %s8, 1
      %p37 = por %p35, %p36
      %p38 = scmp.ne.s32.totalorder %s30, %s33
      %p39 = scmp.eq.s32.totalorder %s8, 0
      %p40 = por %p38, %p39
      %p41 = scmp.ne.s32.totalorder %s30, %s33
      %p42 = scmp.eq.s32.totalorder %s13, 1
      %p43 = por %p41, %p42
      %p44 = scmp.ne.s32.totalorder %s33, %s34
      %p45 = scmp.eq.s32.totalorder %s13, 0
      %p46 = por %p44, %p45
      %p47 = scmp.ne.s32.totalorder %s33, %s34
      %p48 = scmp.eq.s32.totalorder %s14, 1
      %p49 = por %p47, %p48
      %p51 = scmp.ne.s32.totalorder %s34, %s50
      %p52 = scmp.eq.s32.totalorder %s14, 0
      %p53 = por %p51, %p52
      %s54 = ssub.s32 %s16, %s23
      %p55 = scmp.eq.s32.totalorder %s54, 0
      %s57 = sadd.s32 %s56, 1
      %s58 = scalar_select %p55, %s56, %s57
      %p61 = pneg %p55
      %p62 = scmp.eq.s32.totalorder %s8, 1
      %p63 = por %p61, %p62
      %p64 = scmp.ne.s32.totalorder %s56, %s59
      %p65 = scmp.eq.s32.totalorder %s8, 0
      %p66 = por %p64, %p65
      %p67 = scmp.ne.s32.totalorder %s56, %s59
      %p68 = scmp.eq.s32.totalorder %s13, 1
      %p69 = por %p67, %p68
      %p70 = scmp.ne.s32.totalorder %s59, %s60
      %p71 = scmp.eq.s32.totalorder %s13, 0
      %p72 = por %p70, %p71
      %p73 = scmp.ne.s32.totalorder %s59, %s60
      %p74 = scmp.eq.s32.totalorder %s14, 1
      %p75 = por %p73, %p74
      %p77 = scmp.ne.s32.totalorder %s60, %s76
      %p78 = scmp.eq.s32.totalorder %s14, 0
      %p79 = por %p77, %p78
      %s80 = ssub.s32 %s15, %s27
      %s81 = ssub.s32 %s16, %s23
      %s82 = sor.u32 %s80, %s81
      %p83 = scmp.eq.s32.totalorder %s82, 0
      %s85 = sadd.s32 %s84, 1
      %s86 = scalar_select %p83, %s84, %s85
      %p89 = pneg %p83
      %p90 = scmp.eq.s32.totalorder %s8, 1
      %p91 = por %p89, %p90
      %p92 = scmp.ne.s32.totalorder %s84, %s87
      %p93 = scmp.eq.s32.totalorder %s8, 0
      %p94 = por %p92, %p93
      %p95 = scmp.ne.s32.totalorder %s84, %s87
      %p96 = scmp.eq.s32.totalorder %s13, 1
      %p97 = por %p95, %p96
      %p98 = scmp.ne.s32.totalorder %s87, %s88
      %p99 = scmp.eq.s32.totalorder %s13, 0
      %p100 = por %p98, %p99
      %p101 = scmp.ne.s32.totalorder %s87, %s88
      %p102 = scmp.eq.s32.totalorder %s14, 1
      %p103 = por %p101, %p102
      %p105 = scmp.ne.s32.totalorder %s88, %s104
      %p106 = scmp.eq.s32.totalorder %s14, 0
      %p107 = por %p105, %p106
      %p108 = scmp.le.s32.totalorder 1, %s8
      %p109 = scmp.lt.s32.totalorder %s8, 3
      %p110 = pnand %p108, %p109
      %p111 = pneg %p110
      // Predicated region
      $region9: #{generator_forward.20} parent=5 // pred_check
        _
      $region10: #{generator_forward.20} parent=5 // pred_check_branch
        %113 = sbr.rel (%p110) target = $region12
      $region11: #{generator_forward.20} parent=5 // pred_region
        %s114 = ssub.s32 %s8, 1
        // Predicated region
        $region13: #{generator_forward.20} parent=11 // pred_check
          %p115 = pneg %p46
        $region14: #{generator_forward.20} parent=11 // pred_check_branch
          %117 = sbr.rel (%p115) target = $region16
        $region15: #{generator_forward.20} parent=11 // pred_region
          %s118 = smul.u32 16, %s17
          %p119 = scmp.lt.s32.totalorder %s118, 15
          %s120 = scalar_select %p119, %s118, 15
          %s121 = smul.addr %s120, 4
          %s122 = scalar_lea.vmem %s0, %s121
          %s123 = smul.u32 16, %s17
        $region16: #{generator_forward.20} parent=11 // pred_fallthru
          _
      $region12: #{generator_forward.20} parent=5 // pred_fallthru
        _
      %p124 = scmp.lt.s32.totalorder %s8, 2
      // Predicated region
      $region17: #{generator_forward.20} parent=5 // pred_check
        %p125 = pneg %p124
      $region18: #{generator_forward.20} parent=5 // pred_check_branch
        %127 = sbr.rel (%p125) target = $region20
      $region19: #{generator_forward.20} parent=5 // pred_region
        // Predicated region
        $region21: #{generator_forward.20} parent=19 // pred_check
          %p128 = pneg %p66
        $region22: #{generator_forward.20} parent=19 // pred_check_branch
          %130 = sbr.rel (%p128) target = $region24
        $region23: #{generator_forward.20} parent=19 // pred_region
          %s131 = sand.u32 %s56, 1
          %s132 = sand.u32 %s56, 1
          %s133 = smul.addr %s132, 64
          %s134 = scalar_lea.vmem [#allocation2], %s133
          %s135 = smul.u32 2, %s16
          %s136 = smul.addr %s135, 4
          %s137 = scalar_lea.vmem %s1, %s136
          // Predicated region
          $region25: #{generator_forward.20} parent=23 // pred_check
            _
          $region26: #{generator_forward.20} parent=23 // pred_check_branch
            %139 = sbr.rel (0) target = $region28
          $region27: #{generator_forward.20} parent=23 // pred_region
            // Predicated region
            $region29: #{generator_forward.20} parent=27 // pred_check
              _
            $region30: #{generator_forward.20} parent=27 // pred_check_branch
              %141 = sbr.rel (0) target = $region32
            $region31: #{generator_forward.20} parent=27 // pred_region
              // Predicated region
              $region44: #{generator_forward.20} parent=31 // pred_check
                _
              $region45: #{generator_forward.20} parent=31 // pred_check_branch
                %170 = sbr.rel (0) target = $region47
              $region46: #{generator_forward.20} parent=31 // pred_region
                loop: start=0, step=1, limit=1
                $region48: #{generator_forward.20} parent=46 // loop_pre_header
                  _
                $region49: #{generator_forward.20} parent=46 // loop_header
                  %s172 = sphi 0, %s176
                  %p173 = scmp.ge.s32.totalorder %s172, 1
                  %s177 = sphi %s137, %s137
                  %s178 = sphi %s134, %s134
                $region50: #{generator_forward.20} parent=46 // loop_header_branch
                  %175 = sbr.rel (%p173) target = $region54
                $region51: #{generator_forward.20} parent=46 // loop_body
                  %v179 = vld [vmem:[%s177] sm:$0xff]
                  %180 = vst [vmem:[%s178] sm:$0xff] %v179
                  %v181 = vld [vmem:[%s177 + $0x10] sm:$0xff]
                  %182 = vst [vmem:[%s178 + $0x8] sm:$0xff] %v181
                  %v183 = vld [vmem:[%s177 + $0x20] sm:$0xff]
                  %184 = vst [vmem:[%s178 + $0x10] sm:$0xff] %v183
                  %v185 = vld [vmem:[%s177 + $0x30] sm:$0xff]
                  %186 = vst [vmem:[%s178 + $0x18] sm:$0xff] %v185
                  %v187 = vld [vmem:[%s177 + $0x40] sm:$0xff]
                  %188 = vst [vmem:[%s178 + $0x20] sm:$0xff] %v187
                  %v189 = vld [vmem:[%s177 + $0x50] sm:$0xff]
                  %190 = vst [vmem:[%s178 + $0x28] sm:$0xff] %v189
                  %v191 = vld [vmem:[%s177 + $0x60] sm:$0xff]
                  %192 = vst [vmem:[%s178 + $0x30] sm:$0xff] %v191
                  %v193 = vld [vmem:[%s177 + $0x70] sm:$0xff]
                  %194 = vst [vmem:[%s178 + $0x38] sm:$0xff] %v193
                $region52: #{generator_forward.20} parent=46 // loop_footer
                  %s176 = sadd.s32 1, %s172
                $region53: #{generator_forward.20} parent=46 // loop_footer_branch
                  %171 = sbr.rel target = $region49
                $region54: #{generator_forward.20} parent=46 // loop_exit
                  _
              $region47: #{generator_forward.20} parent=31 // pred_fallthru
                _
              // Predicated region
              $region55: #{generator_forward.20} parent=31 // pred_check
                _
              $region56: #{generator_forward.20} parent=31 // pred_check_branch
                %196 = sbr.rel target = $region58
              $region57: #{generator_forward.20} parent=31 // pred_region
                _
              $region58: #{generator_forward.20} parent=31 // pred_fallthru
                _
            $region32: #{generator_forward.20} parent=27 // pred_fallthru
              _
            // Predicated region
            $region33: #{generator_forward.20} parent=27 // pred_check
              _
            $region34: #{generator_forward.20} parent=27 // pred_check_branch
              %143 = sbr.rel target = $region36
            $region35: #{generator_forward.20} parent=27 // pred_region
              loop: start=0, step=1, limit=1
              $region37: #{generator_forward.20} parent=35 // loop_pre_header
                _
              $region38: #{generator_forward.20} parent=35 // loop_header
                %s146 = sphi 0, %s150
                %p147 = scmp.ge.s32.totalorder %s146, 1
                %s151 = sphi %s137, %s137
                %s152 = sphi %s134, %s134
              $region39: #{generator_forward.20} parent=35 // loop_header_branch
                %149 = sbr.rel (%p147) target = $region43
              $region40: #{generator_forward.20} parent=35 // loop_body
                %v153 = vld [vmem:[%s151] sm:$0xff]
                %154 = vst [vmem:[%s152] sm:$0xff] %v153
                %v155 = vld [vmem:[%s151 + $0x10] sm:$0xff]
                %156 = vst [vmem:[%s152 + $0x8] sm:$0xff] %v155
                %v157 = vld [vmem:[%s151 + $0x20] sm:$0xff]
                %158 = vst [vmem:[%s152 + $0x10] sm:$0xff] %v157
                %v159 = vld [vmem:[%s151 + $0x30] sm:$0xff]
                %160 = vst [vmem:[%s152 + $0x18] sm:$0xff] %v159
                %v161 = vld [vmem:[%s151 + $0x40] sm:$0xff]
                %162 = vst [vmem:[%s152 + $0x20] sm:$0xff] %v161
                %v163 = vld [vmem:[%s151 + $0x50] sm:$0xff]
                %164 = vst [vmem:[%s152 + $0x28] sm:$0xff] %v163
                %v165 = vld [vmem:[%s151 + $0x60] sm:$0xff]
                %166 = vst [vmem:[%s152 + $0x30] sm:$0xff] %v165
                %v167 = vld [vmem:[%s151 + $0x70] sm:$0xff]
                %168 = vst [vmem:[%s152 + $0x38] sm:$0xff] %v167
              $region41: #{generator_forward.20} parent=35 // loop_footer
                %s150 = sadd.s32 1, %s146
              $region42: #{generator_forward.20} parent=35 // loop_footer_branch
                %145 = sbr.rel target = $region38
              $region43: #{generator_forward.20} parent=35 // loop_exit
                _
            $region36: #{generator_forward.20} parent=27 // pred_fallthru
              _
          $region28: #{generator_forward.20} parent=23 // pred_fallthru
            _
          %197 = vnop
        $region24: #{generator_forward.20} parent=19 // pred_fallthru
          _
      $region20: #{generator_forward.20} parent=5 // pred_fallthru
        _
      %p198 = scmp.le.s32.totalorder 1, %s8
      %p199 = scmp.lt.s32.totalorder %s8, 3
      %p200 = pnand %p198, %p199
      %p201 = pneg %p200
      // Predicated region
      $region59: #{generator_forward.20} parent=5 // pred_check
        _
      $region60: #{generator_forward.20} parent=5 // pred_check_branch
        %203 = sbr.rel (%p200) target = $region62
      $region61: #{generator_forward.20} parent=5 // pred_region
        %s204 = ssub.s32 %s8, 1
        %s205 = sand.u32 %s59, 1
        %s206 = sand.u32 %s59, 1
        %s207 = smul.addr %s206, 64
        %s208 = scalar_lea.vmem [#allocation2], %s207
        // Predicated region
        $region63: #{generator_forward.20} parent=61 // pred_check
          %p209 = pneg %p72
        $region64: #{generator_forward.20} parent=61 // pred_check_branch
          %211 = sbr.rel (%p209) target = $region66
        $region65: #{generator_forward.20} parent=61 // pred_region
          _
        $region66: #{generator_forward.20} parent=61 // pred_fallthru
          _
        %s212 = smul.u32 16, %s17
        %p213 = scmp.lt.s32.totalorder %s212, 15
        %s214 = scalar_select %p213, %s212, 15
        %s215 = smul.addr %s214, 4
        %s216 = scalar_lea.vmem %s0, %s215
        %p217 = pneg %p46
        %p218 = pneg %p43
        %s219 = sand.u32 %s59, 1
        %s220 = sand.u32 %s59, 1
        %s221 = smul.addr %s220, 64
        %s222 = scalar_lea.vmem [#allocation2], %s221
        %p223 = pneg %p72
        %p224 = pneg %p69
        %p225 = pneg %p100
        %p226 = pneg %p97
        %s227 = sand.u32 %s87, 1
        %s228 = sand.u32 %s87, 1
        %s229 = smul.addr %s228, 256
        %s230 = scalar_lea.vmem [#allocation3], %s229
        %s231 = smul.u32 16, %s17
        %p232 = scmp.lt.s32.totalorder %s231, 15
        %s233 = scalar_select %p232, %s231, 15
        %s234 = smul.addr %s233, 4
        %s235 = scalar_lea.vmem %s0, %s234
        %s236 = smul.u32 16, %s17
        %s237 = smul.u32 2, %s18
        %s238 = smul.u32 16, %s17
        %s239 = smul.u32 2, %s18
        %v241 = vld [vmem:[%s235] sm:$0xf]
        %v242 = vld [vmem:[%s235 + $0x4] sm:$0xf]
        %v243 = vld [vmem:[%s235 + $0x8] sm:$0xf]
        %v244 = vld [vmem:[%s235 + $0xc] sm:$0xf]
        %v245 = vld [vmem:[%s235 + $0x10] sm:$0xf]
        %v246 = vld [vmem:[%s235 + $0x14] sm:$0xf]
        %v247 = vld [vmem:[%s235 + $0x18] sm:$0xf]
        %v248 = vld [vmem:[%s235 + $0x1c] sm:$0xf]
        %v249 = vld [vmem:[%s235 + $0x20] sm:$0xf]
        %v250 = vld [vmem:[%s235 + $0x24] sm:$0xf]
        %v251 = vld [vmem:[%s235 + $0x28] sm:$0xf]
        %v252 = vld [vmem:[%s235 + $0x2c] sm:$0xf]
        %v253 = vld [vmem:[%s235 + $0x30] sm:$0xf]
        %v254 = vld [vmem:[%s235 + $0x34] sm:$0xf]
        %v255 = vld [vmem:[%s235 + $0x38] sm:$0xf]
        %v256 = vld [vmem:[%s235 + $0x3c] sm:$0xf]
        %v257 = vld [vmem:[%s208] sm:$0xff]
        %v258 = vld [vmem:[%s208 + $0x8] sm:$0xff]
        %v259 = vld [vmem:[%s208 + $0x10] sm:$0xff]
        %v260 = vld [vmem:[%s208 + $0x18] sm:$0xff]
        %v261 = vld [vmem:[%s208 + $0x20] sm:$0xff]
        %v262 = vld [vmem:[%s208 + $0x28] sm:$0xff]
        %v263 = vld [vmem:[%s208 + $0x30] sm:$0xff]
        %v264 = vld [vmem:[%s208 + $0x38] sm:$0xff]
        %v281 = vunpack.c.l.b16 %v241
        %v282 = vunpack.c.l.b16 %v242
        %v283 = vunpack.c.l.b16 %v243
        %v284 = vunpack.c.l.b16 %v244
        %v285 = vunpack.c.l.b16 %v245
        %v286 = vunpack.c.l.b16 %v246
        %v287 = vunpack.c.l.b16 %v247
        %v288 = vunpack.c.l.b16 %v248
        %v289 = vunpack.c.l.b16 %v249
        %v290 = vunpack.c.l.b16 %v250
        %v291 = vunpack.c.l.b16 %v251
        %v292 = vunpack.c.l.b16 %v252
        %v293 = vunpack.c.l.b16 %v253
        %v294 = vunpack.c.l.b16 %v254
        %v295 = vunpack.c.l.b16 %v255
        %v296 = vunpack.c.l.b16 %v256
        %v297 = vpack.c.b16 %v282, %v281
        %v298 = vpack.c.b16 %v284, %v283
        %v299 = vpack.c.b16 %v286, %v285
        %v300 = vpack.c.b16 %v288, %v287
        %v301 = vpack.c.b16 %v290, %v289
        %v302 = vpack.c.b16 %v292, %v291
        %v303 = vpack.c.b16 %v294, %v293
        %v304 = vpack.c.b16 %v296, %v295
        %v313 = vunpack.c.l.b16 %v257
        %v314 = vunpack.c.h.b16 %v257
        %v315 = vunpack.c.l.b16 %v258
        %v316 = vunpack.c.h.b16 %v258
        %v317 = vunpack.c.l.b16 %v259
        %v318 = vunpack.c.h.b16 %v259
        %v319 = vunpack.c.l.b16 %v260
        %v320 = vunpack.c.h.b16 %v260
        %v321 = vunpack.c.l.b16 %v261
        %v322 = vunpack.c.h.b16 %v261
        %v323 = vunpack.c.l.b16 %v262
        %v324 = vunpack.c.h.b16 %v262
        %v325 = vunpack.c.l.b16 %v263
        %v326 = vunpack.c.h.b16 %v263
        %v327 = vunpack.c.l.b16 %v264
        %v328 = vunpack.c.h.b16 %v264
        %v329 = vpack.c.b16 %v315, %v313
        %v330 = vpack.c.b16 %v316, %v314
        %v331 = vpack.c.b16 %v319, %v317
        %v332 = vpack.c.b16 %v320, %v318
        %v333 = vpack.c.b16 %v323, %v321
        %v334 = vpack.c.b16 %v324, %v322
        %v335 = vpack.c.b16 %v327, %v325
        %v336 = vpack.c.b16 %v328, %v326
        %vm345 = vcmask 523264
        %v347 = vsel %vm345, %v297, 0
        %v350 = vsel %vm345, %v298, 0
        %v353 = vsel %vm345, %v299, 0
        %v356 = vsel %vm345, %v300, 0
        %v359 = vsel %vm345, %v301, 0
        %v362 = vsel %vm345, %v302, 0
        %v365 = vsel %vm345, %v303, 0
        %v368 = vsel %vm345, %v304, 0
        %370 = vmatprep.subr.bf16.mxu0 %v330
        %371 = vmatpush1.bf16.msra.mxu0 %v329
        %372 = vmatprep.subr.bf16.mxu0 %v332
        %373 = vmatpush1.bf16.msra.mxu0 %v331
        %374 = vmatprep.subr.bf16.mxu0 %v334
        %375 = vmatpush1.bf16.msra.mxu0 %v333
        %376 = vmatprep.subr.bf16.mxu0 %v336
        %377 = vmatpush1.bf16.msra.mxu0 %v335
        %378 = vmatprep.subr.bf16.mxu0 0
        %379 = vmatpush1.bf16.msra.mxu0 0
        %380 = vmatprep.subr.bf16.mxu0 0
        %381 = vmatpush1.bf16.msra.mxu0 0
        %382 = vmatprep.subr.bf16.mxu0 0
        %383 = vmatpush1.bf16.msra.mxu0 0
        %384 = vmatprep.subr.bf16.mxu0 0
        %385 = vmatpush1.bf16.msra.mxu0 0
        %386 = vmatprep.subr.bf16.mxu0 0
        %387 = vmatpush1.bf16.msra.mxu0 0
        %388 = vmatprep.subr.bf16.mxu0 0
        %389 = vmatpush1.bf16.msra.mxu0 0
        %390 = vmatprep.subr.bf16.mxu0 0
        %391 = vmatpush1.bf16.msra.mxu0 0
        %392 = vmatprep.subr.bf16.mxu0 0
        %393 = vmatpush1.bf16.msra.mxu0 0
        %394 = vmatprep.subr.bf16.mxu0 0
        %395 = vmatpush1.bf16.msra.mxu0 0
        %396 = vmatprep.subr.bf16.mxu0 0
        %397 = vmatpush1.bf16.msra.mxu0 0
        %398 = vmatprep.subr.bf16.mxu0 0
        %399 = vmatpush1.bf16.msra.mxu0 0
        %400 = vmatprep.subr.bf16.mxu0 0
        %401 = vmatpush1.bf16.msra.mxu0 0
        %402 = vmatprep.mubr.bf16.mxu0 0
        %403 = vmatmul.mubr.bf16.gmra.mrb[0].mxu0 %v347
        %v404 = vpop.f32.mrb[0].mxu0
        %v405 = vadd.f32 0.0, %v404
        %v406 = vpop.f32.mrb[0].mxu0
        %v407 = vadd.f32 0.0, %v406
        %v408 = vpop.f32.mrb[0].mxu0
        %v409 = vadd.f32 0.0, %v408
        %v410 = vpop.f32.mrb[0].mxu0
        %v411 = vadd.f32 0.0, %v410
        %412 = vmatprep.mubr.bf16.mxu0 0
        %413 = vmatmul.mubr.bf16.gmra.mrb[0].mxu0 %v350
        %v414 = vpop.f32.mrb[0].mxu0
        %v415 = vadd.f32 0.0, %v414
        %v416 = vpop.f32.mrb[0].mxu0
        %v417 = vadd.f32 0.0, %v416
        %v418 = vpop.f32.mrb[0].mxu0
        %v419 = vadd.f32 0.0, %v418
        %v420 = vpop.f32.mrb[0].mxu0
        %v421 = vadd.f32 0.0, %v420
        %422 = vmatprep.mubr.bf16.mxu0 0
        %423 = vmatmul.mubr.bf16.gmra.mrb[0].mxu0 %v353
        %v424 = vpop.f32.mrb[0].mxu0
        %v425 = vadd.f32 0.0, %v424
        %v426 = vpop.f32.mrb[0].mxu0
        %v427 = vadd.f32 0.0, %v426
        %v428 = vpop.f32.mrb[0].mxu0
        %v429 = vadd.f32 0.0, %v428
        %v430 = vpop.f32.mrb[0].mxu0
        %v431 = vadd.f32 0.0, %v430
        %432 = vmatprep.mubr.bf16.mxu0 0
        %433 = vmatmul.mubr.bf16.gmra.mrb[0].mxu0 %v356
        %v434 = vpop.f32.mrb[0].mxu0
        %v435 = vadd.f32 0.0, %v434
        %v436 = vpop.f32.mrb[0].mxu0
        %v437 = vadd.f32 0.0, %v436
        %v438 = vpop.f32.mrb[0].mxu0
        %v439 = vadd.f32 0.0, %v438
        %v440 = vpop.f32.mrb[0].mxu0
        %v441 = vadd.f32 0.0, %v440
        %442 = vmatprep.mubr.bf16.mxu0 0
        %443 = vmatmul.mubr.bf16.gmra.mrb[0].mxu0 %v359
        %v444 = vpop.f32.mrb[0].mxu0
        %v445 = vadd.f32 0.0, %v444
        %v446 = vpop.f32.mrb[0].mxu0
        %v447 = vadd.f32 0.0, %v446
        %v448 = vpop.f32.mrb[0].mxu0
        %v449 = vadd.f32 0.0, %v448
        %v450 = vpop.f32.mrb[0].mxu0
        %v451 = vadd.f32 0.0, %v450
        %452 = vmatprep.mubr.bf16.mxu0 0
        %453 = vmatmul.mubr.bf16.gmra.mrb[0].mxu0 %v362
        %v454 = vpop.f32.mrb[0].mxu0
        %v455 = vadd.f32 0.0, %v454
        %v456 = vpop.f32.mrb[0].mxu0
        %v457 = vadd.f32 0.0, %v456
        %v458 = vpop.f32.mrb[0].mxu0
        %v459 = vadd.f32 0.0, %v458
        %v460 = vpop.f32.mrb[0].mxu0
        %v461 = vadd.f32 0.0, %v460
        %462 = vmatprep.mubr.bf16.mxu0 0
        %463 = vmatmul.mubr.bf16.gmra.mrb[0].mxu0 %v365
        %v464 = vpop.f32.mrb[0].mxu0
        %v465 = vadd.f32 0.0, %v464
        %v466 = vpop.f32.mrb[0].mxu0
        %v467 = vadd.f32 0.0, %v466
        %v468 = vpop.f32.mrb[0].mxu0
        %v469 = vadd.f32 0.0, %v468
        %v470 = vpop.f32.mrb[0].mxu0
        %v471 = vadd.f32 0.0, %v470
        %472 = vmatprep.mubr.bf16.mxu0 0
        %473 = vmatmul.mubr.bf16.gmra.mrb[0].mxu0 %v368
        %v474 = vpop.f32.mrb[0].mxu0
        %v475 = vadd.f32 0.0, %v474
        %v476 = vpop.f32.mrb[0].mxu0
        %v477 = vadd.f32 0.0, %v476
        %v478 = vpop.f32.mrb[0].mxu0
        %v479 = vadd.f32 0.0, %v478
        %v480 = vpop.f32.mrb[0].mxu0
        %v481 = vadd.f32 0.0, %v480
        %482 = vdwg.mxu0
        %483 = vst [vmem:[%s230] sm:$0xff] %v405
        %484 = vst [vmem:[%s230 + $0x8] sm:$0xff] %v407
        %485 = vst [vmem:[%s230 + $0x10] sm:$0xff] %v409
        %486 = vst [vmem:[%s230 + $0x18] sm:$0xff] %v411
        %487 = vst [vmem:[%s230 + $0x20] sm:$0xff] %v415
        %488 = vst [vmem:[%s230 + $0x28] sm:$0xff] %v417
        %489 = vst [vmem:[%s230 + $0x30] sm:$0xff] %v419
        %490 = vst [vmem:[%s230 + $0x38] sm:$0xff] %v421
        %491 = vst [vmem:[%s230 + $0x40] sm:$0xff] %v425
        %492 = vst [vmem:[%s230 + $0x48] sm:$0xff] %v427
        %493 = vst [vmem:[%s230 + $0x50] sm:$0xff] %v429
        %494 = vst [vmem:[%s230 + $0x58] sm:$0xff] %v431
        %495 = vst [vmem:[%s230 + $0x60] sm:$0xff] %v435
        %496 = vst [vmem:[%s230 + $0x68] sm:$0xff] %v437
        %497 = vst [vmem:[%s230 + $0x70] sm:$0xff] %v439
        %498 = vst [vmem:[%s230 + $0x78] sm:$0xff] %v441
        %499 = vst [vmem:[%s230 + $0x80] sm:$0xff] %v445
        %500 = vst [vmem:[%s230 + $0x88] sm:$0xff] %v447
        %501 = vst [vmem:[%s230 + $0x90] sm:$0xff] %v449
        %502 = vst [vmem:[%s230 + $0x98] sm:$0xff] %v451
        %503 = vst [vmem:[%s230 + $0xa0] sm:$0xff] %v455
        %504 = vst [vmem:[%s230 + $0xa8] sm:$0xff] %v457
        %505 = vst [vmem:[%s230 + $0xb0] sm:$0xff] %v459
        %506 = vst [vmem:[%s230 + $0xb8] sm:$0xff] %v461
        %507 = vst [vmem:[%s230 + $0xc0] sm:$0xff] %v465
        %508 = vst [vmem:[%s230 + $0xc8] sm:$0xff] %v467
        %509 = vst [vmem:[%s230 + $0xd0] sm:$0xff] %v469
        %510 = vst [vmem:[%s230 + $0xd8] sm:$0xff] %v471
        %511 = vst [vmem:[%s230 + $0xe0] sm:$0xff] %v475
        %512 = vst [vmem:[%s230 + $0xe8] sm:$0xff] %v477
        %513 = vst [vmem:[%s230 + $0xf0] sm:$0xff] %v479
        %514 = vst [vmem:[%s230 + $0xf8] sm:$0xff] %v481
        %s515 = sand.u32 %s87, 1
        %s516 = sand.u32 %s87, 1
        %s517 = smul.addr %s516, 256
        %s518 = scalar_lea.vmem [#allocation3], %s517
        // Predicated region
        $region67: #{generator_forward.20} parent=61 // pred_check
          %p519 = pneg %p97
        $region68: #{generator_forward.20} parent=61 // pred_check_branch
          %521 = sbr.rel (%p519) target = $region70
        $region69: #{generator_forward.20} parent=61 // pred_region
          %s522 = smul.u32 16, %s17
          %s523 = smul.u32 2, %s18
          %s524 = smul.addr %s522, 4
          %s525 = sadd.s32 %s523, %s524
          %s526 = smul.addr %s525, 8
          %s527 = scalar_lea.vmem %s2, %s526
          // Predicated region
          $region71: #{generator_forward.20} parent=69 // pred_check
            _
          $region72: #{generator_forward.20} parent=69 // pred_check_branch
            %529 = sbr.rel (0) target = $region74
          $region73: #{generator_forward.20} parent=69 // pred_region
            // Predicated region
            $region75: #{generator_forward.20} parent=73 // pred_check
              _
            $region76: #{generator_forward.20} parent=73 // pred_check_branch
              %531 = sbr.rel (0) target = $region78
            $region77: #{generator_forward.20} parent=73 // pred_region
              loop: start=0, step=1, limit=1
              $region79: #{generator_forward.20} parent=77 // loop_pre_header
                _
              $region80: #{generator_forward.20} parent=77 // loop_header
                %s533 = sphi 0, %s537
                %p534 = scmp.ge.s32.totalorder %s533, 1
                %s538 = sphi %s518, %s518
                %s539 = sphi %s527, %s527
              $region81: #{generator_forward.20} parent=77 // loop_header_branch
                %536 = sbr.rel (%p534) target = $region85
              $region82: #{generator_forward.20} parent=77 // loop_body
                %v540 = vld [vmem:[%s538] sm:$0xff]
                %541 = vst [vmem:[%s539] sm:$0xff] %v540
                %v542 = vld [vmem:[%s538 + $0x8] sm:$0xff]
                %543 = vst [vmem:[%s539 + $0x8] sm:$0xff] %v542
                %v544 = vld [vmem:[%s538 + $0x10] sm:$0xff]
                %545 = vst [vmem:[%s539 + $0x20] sm:$0xff] %v544
                %v546 = vld [vmem:[%s538 + $0x18] sm:$0xff]
                %547 = vst [vmem:[%s539 + $0x28] sm:$0xff] %v546
                %v548 = vld [vmem:[%s538 + $0x20] sm:$0xff]
                %549 = vst [vmem:[%s539 + $0x40] sm:$0xff] %v548
                %v550 = vld [vmem:[%s538 + $0x28] sm:$0xff]
                %551 = vst [vmem:[%s539 + $0x48] sm:$0xff] %v550
                %v552 = vld [vmem:[%s538 + $0x30] sm:$0xff]
                %553 = vst [vmem:[%s539 + $0x60] sm:$0xff] %v552
                %v554 = vld [vmem:[%s538 + $0x38] sm:$0xff]
                %555 = vst [vmem:[%s539 + $0x68] sm:$0xff] %v554
                %v556 = vld [vmem:[%s538 + $0x40] sm:$0xff]
                %557 = vst [vmem:[%s539 + $0x80] sm:$0xff] %v556
                %v558 = vld [vmem:[%s538 + $0x48] sm:$0xff]
                %559 = vst [vmem:[%s539 + $0x88] sm:$0xff] %v558
                %v560 = vld [vmem:[%s538 + $0x50] sm:$0xff]
                %561 = vst [vmem:[%s539 + $0xa0] sm:$0xff] %v560
                %v562 = vld [vmem:[%s538 + $0x58] sm:$0xff]
                %563 = vst [vmem:[%s539 + $0xa8] sm:$0xff] %v562
                %v564 = vld [vmem:[%s538 + $0x60] sm:$0xff]
                %565 = vst [vmem:[%s539 + $0xc0] sm:$0xff] %v564
                %v566 = vld [vmem:[%s538 + $0x68] sm:$0xff]
                %567 = vst [vmem:[%s539 + $0xc8] sm:$0xff] %v566
                %v568 = vld [vmem:[%s538 + $0x70] sm:$0xff]
                %569 = vst [vmem:[%s539 + $0xe0] sm:$0xff] %v568
                %v570 = vld [vmem:[%s538 + $0x78] sm:$0xff]
                %571 = vst [vmem:[%s539 + $0xe8] sm:$0xff] %v570
                %v572 = vld [vmem:[%s538 + $0x80] sm:$0xff]
                %573 = vst [vmem:[%s539 + $0x100] sm:$0xff] %v572
                %v574 = vld [vmem:[%s538 + $0x88] sm:$0xff]
                %575 = vst [vmem:[%s539 + $0x108] sm:$0xff] %v574
                %v576 = vld [vmem:[%s538 + $0x90] sm:$0xff]
                %577 = vst [vmem:[%s539 + $0x120] sm:$0xff] %v576
                %v578 = vld [vmem:[%s538 + $0x98] sm:$0xff]
                %579 = vst [vmem:[%s539 + $0x128] sm:$0xff] %v578
                %v580 = vld [vmem:[%s538 + $0xa0] sm:$0xff]
                %581 = vst [vmem:[%s539 + $0x140] sm:$0xff] %v580
                %v582 = vld [vmem:[%s538 + $0xa8] sm:$0xff]
                %583 = vst [vmem:[%s539 + $0x148] sm:$0xff] %v582
                %v584 = vld [vmem:[%s538 + $0xb0] sm:$0xff]
                %585 = vst [vmem:[%s539 + $0x160] sm:$0xff] %v584
                %v586 = vld [vmem:[%s538 + $0xb8] sm:$0xff]
                %587 = vst [vmem:[%s539 + $0x168] sm:$0xff] %v586
                %v588 = vld [vmem:[%s538 + $0xc0] sm:$0xff]
                %589 = vst [vmem:[%s539 + $0x180] sm:$0xff] %v588
                %v590 = vld [vmem:[%s538 + $0xc8] sm:$0xff]
                %591 = vst [vmem:[%s539 + $0x188] sm:$0xff] %v590
                %v592 = vld [vmem:[%s538 + $0xd0] sm:$0xff]
                %593 = vst [vmem:[%s539 + $0x1a0] sm:$0xff] %v592
                %v594 = vld [vmem:[%s538 + $0xd8] sm:$0xff]
                %595 = vst [vmem:[%s539 + $0x1a8] sm:$0xff] %v594
                %v596 = vld [vmem:[%s538 + $0xe0] sm:$0xff]
                %597 = vst [vmem:[%s539 + $0x1c0] sm:$0xff] %v596
                %v598 = vld [vmem:[%s538 + $0xe8] sm:$0xff]
                %599 = vst [vmem:[%s539 + $0x1c8] sm:$0xff] %v598
                %v600 = vld [vmem:[%s538 + $0xf0] sm:$0xff]
                %601 = vst [vmem:[%s539 + $0x1e0] sm:$0xff] %v600
                %v602 = vld [vmem:[%s538 + $0xf8] sm:$0xff]
                %603 = vst [vmem:[%s539 + $0x1e8] sm:$0xff] %v602
              $region83: #{generator_forward.20} parent=77 // loop_footer
                %s537 = sadd.s32 1, %s533
              $region84: #{generator_forward.20} parent=77 // loop_footer_branch
                %532 = sbr.rel target = $region80
              $region85: #{generator_forward.20} parent=77 // loop_exit
                _
            $region78: #{generator_forward.20} parent=73 // pred_fallthru
              _
            // Predicated region
            $region86: #{generator_forward.20} parent=73 // pred_check
              _
            $region87: #{generator_forward.20} parent=73 // pred_check_branch
              %605 = sbr.rel target = $region89
            $region88: #{generator_forward.20} parent=73 // pred_region
              _
            $region89: #{generator_forward.20} parent=73 // pred_fallthru
              _
          $region74: #{generator_forward.20} parent=69 // pred_fallthru
            _
          %606 = vnop
        $region70: #{generator_forward.20} parent=61 // pred_fallthru
          _
      $region62: #{generator_forward.20} parent=5 // pred_fallthru
        _
      %p607 = scmp.le.s32.totalorder 2, %s8
      // Predicated region
      $region90: #{generator_forward.20} parent=5 // pred_check
        %p608 = pneg %p607
      $region91: #{generator_forward.20} parent=5 // pred_check_branch
        %610 = sbr.rel (%p608) target = $region93
      $region92: #{generator_forward.20} parent=5 // pred_region
        %s611 = ssub.s32 %s8, 2
        // Predicated region
        $region94: #{generator_forward.20} parent=92 // pred_check
          %p612 = pneg %p103
        $region95: #{generator_forward.20} parent=92 // pred_check_branch
          %614 = sbr.rel (%p612) target = $region97
        $region96: #{generator_forward.20} parent=92 // pred_region
          %s615 = sand.u32 %s88, 1
          %s616 = sand.u32 %s88, 1
          %s617 = smul.addr %s616, 256
          %s618 = scalar_lea.vmem [#allocation3], %s617
        $region97: #{generator_forward.20} parent=92 // pred_fallthru
          _
      $region93: #{generator_forward.20} parent=5 // pred_fallthru
        _
    $region6: #{generator_forward.20} parent=1 // loop_footer
      %s12 = sadd.s32 1, %s8
    $region7: #{generator_forward.20} parent=1 // loop_footer_branch
      %7 = sbr.rel target = $region3
    $region8: #{generator_forward.20} parent=1 // loop_exit
      _

// kernel: generator_forward.21
$region0: #{generator_forward.21}
  #allocation0 [shape = 'u32[]', space=smem, size = 0x4, offset = 0x4, fixed_abs, tag = 'smem constant byte address 0x4 - core index']
  #allocation1 [shape = 'u32[144,128]{1,0:T(1,128)}', space=vmem, size = 0x12000, scoped, tag = 'internal scratch']
  %s0 = inlined_call_operand.vmem [shape: f32[32,512], index: 0, kind: input, shape index: {}]
  %s1 = inlined_call_operand.vmem [shape: f32[1,512], index: 1, kind: output, shape index: {0}]
  %s2 = inlined_call_operand.vmem [shape: f32[1,512], index: 2, kind: output, shape index: {1}]
  %3 = xla_tuple %s1, %s2
  %s4 = sld [smem:[#allocation0]]
  $region26: #{generator_forward.21} parent=0
    _
  %s6 = ssub.s32 1, %s4
  %s7 = scalar_select 0, %s6, %s4
  // Predicated region
  $region2: #{generator_forward.21} parent=0 // pred_check
    _
  $region3: #{generator_forward.21} parent=0 // pred_check_branch
    %9 = sbr.rel (0) target = $region5
  $region4: #{generator_forward.21} parent=0 // pred_region
    _
  $region5: #{generator_forward.21} parent=0 // pred_fallthru
    _
  %p10 = scmp.eq.s32.totalorder 0, 0
  // Predicated region
  $region6: #{generator_forward.21} parent=0 // pred_check
    %p11 = pneg %p10
  $region7: #{generator_forward.21} parent=0 // pred_check_branch
    %13 = sbr.rel (%p11) target = $region9
  $region8: #{generator_forward.21} parent=0 // pred_region
    %v14 = vlaneseq
    %vm15 = vcmp.ge.s32.totalorder %v14, 0
    %vm16 = vcmp.lt.s32.totalorder %v14, 512
    %vm17 = vmand %vm15, %vm16
    %18 = vst.msk [vmem:[%s1] sm:$0xf] %vm17, 0.0
    %19 = vst.msk [vmem:[%s2] sm:$0xf] %vm17, 0.0
  $region9: #{generator_forward.21} parent=0 // pred_fallthru
    _
  %v20 = vld [vmem:[%s0] sm:$0xff]
  %v21 = vld [vmem:[%s0 + $0x8] sm:$0xff]
  %v22 = vld [vmem:[%s0 + $0x10] sm:$0xff]
  %v23 = vld [vmem:[%s0 + $0x18] sm:$0xff]
  %v24 = vld [vmem:[%s0 + $0x20] sm:$0xff]
  %v25 = vld [vmem:[%s0 + $0x28] sm:$0xff]
  %v26 = vld [vmem:[%s0 + $0x30] sm:$0xff]
  %v27 = vld [vmem:[%s0 + $0x38] sm:$0xff]
  %v28 = vld [vmem:[%s0 + $0x40] sm:$0xff]
  %v29 = vld [vmem:[%s0 + $0x48] sm:$0xff]
  %v30 = vld [vmem:[%s0 + $0x50] sm:$0xff]
  %v31 = vld [vmem:[%s0 + $0x58] sm:$0xff]
  %v32 = vld [vmem:[%s0 + $0x60] sm:$0xff]
  %v33 = vld [vmem:[%s0 + $0x68] sm:$0xff]
  %v34 = vld [vmem:[%s0 + $0x70] sm:$0xff]
  %v35 = vld [vmem:[%s0 + $0x78] sm:$0xff]
  %v36 = vld [vmem:[%s1] sm:$0xf]
  %v37 = vadd.f32 %v20, %v24
  %v38 = vadd.f32 %v37, %v28
  %v39 = vadd.f32 %v38, %v32
  %v40 = vrot.slane %v39, 4
  %v41 = vadd.f32 %v39, %v40
  %v42 = vrot.slane %v41, 2
  %v43 = vadd.f32 %v41, %v42
  %v44 = vrot.slane %v43, 1
  %v45 = vadd.f32 %v43, %v44
  %v46 = vadd.f32 %v21, %v25
  %v47 = vadd.f32 %v46, %v29
  %v48 = vadd.f32 %v47, %v33
  %v49 = vrot.slane %v48, 4
  %v50 = vadd.f32 %v48, %v49
  %v51 = vrot.slane %v50, 2
  %v52 = vadd.f32 %v50, %v51
  %v53 = vrot.slane %v52, 1
  %v54 = vadd.f32 %v52, %v53
  %v55 = vadd.f32 %v22, %v26
  %v56 = vadd.f32 %v55, %v30
  %v57 = vadd.f32 %v56, %v34
  %v58 = vrot.slane %v57, 4
  %v59 = vadd.f32 %v57, %v58
  %v60 = vrot.slane %v59, 2
  %v61 = vadd.f32 %v59, %v60
  %v62 = vrot.slane %v61, 1
  %v63 = vadd.f32 %v61, %v62
  %v64 = vadd.f32 %v23, %v27
  %v65 = vadd.f32 %v64, %v31
  %v66 = vadd.f32 %v65, %v35
  %v67 = vrot.slane %v66, 4
  %v68 = vadd.f32 %v66, %v67
  %v69 = vrot.slane %v68, 2
  %v70 = vadd.f32 %v68, %v69
  %v71 = vrot.slane %v70, 1
  %v72 = vadd.f32 %v70, %v71
  %v77 = vcombine.low %v45, %v54
  %v78 = vcombine.low %v63, %v72
  %v80 = vunpack.c.l.s4 1966171168
  %v81 = vunpack.c.0.s8 %v80
  %v82 = vlaneseq
  %v83 = vshrl.u32 %v82, 7
  %v84 = vsub.s32 %v81, %v83
  %v85 = vrot.slane %v77, %v84
  %v87 = vunpack.c.l.s4 1966171168
  %v88 = vunpack.c.0.s8 %v87
  %v89 = vlaneseq
  %v90 = vshrl.u32 %v89, 7
  %v91 = vsub.s32 %v88, %v90
  %v92 = vrot.slane %v78, %v91
  %v93 = vcombine.low %v85, %v92
  %v95 = vunpack.c.l.s4 1966171168
  %v96 = vunpack.c.0.s8 %v95
  %v97 = vlaneseq
  %v98 = vshrl.u32 %v97, 7
  %v99 = vsub.s32 %v96, %v98
  %v100 = vrot.slane %v93, %v99
  %v102 = vadd.f32 %v36, %v100
  %v103 = vlaneseq
  %vm104 = vcmp.ge.s32.totalorder %v103, 0
  %vm105 = vcmp.lt.s32.totalorder %v103, 512
  %vm106 = vmand %vm104, %vm105
  %107 = vst.msk [vmem:[%s1] sm:$0xf] %vm106, %v102
  %v108 = vld [vmem:[%s2] sm:$0xf]
  %v109 = vmul.f32 %v20, %v20
  %v110 = vmul.f32 %v21, %v21
  %v111 = vmul.f32 %v22, %v22
  %v112 = vmul.f32 %v23, %v23
  %v113 = vmul.f32 %v24, %v24
  %v114 = vmul.f32 %v25, %v25
  %v115 = vmul.f32 %v26, %v26
  %v116 = vmul.f32 %v27, %v27
  %v117 = vmul.f32 %v28, %v28
  %v118 = vmul.f32 %v29, %v29
  %v119 = vmul.f32 %v30, %v30
  %v120 = vmul.f32 %v31, %v31
  %v121 = vmul.f32 %v32, %v32
  %v122 = vmul.f32 %v33, %v33
  %v123 = vmul.f32 %v34, %v34
  %v124 = vmul.f32 %v35, %v35
  %v125 = vadd.f32 %v109, %v113
  %v126 = vadd.f32 %v125, %v117
  %v127 = vadd.f32 %v126, %v121
  %v128 = vrot.slane %v127, 4
  %v129 = vadd.f32 %v127, %v128
  %v130 = vrot.slane %v129, 2
  %v131 = vadd.f32 %v129, %v130
  %v132 = vrot.slane %v131, 1
  %v133 = vadd.f32 %v131, %v132
  %v134 = vadd.f32 %v110, %v114
  %v135 = vadd.f32 %v134, %v118
  %v136 = vadd.f32 %v135, %v122
  %v137 = vrot.slane %v136, 4
  %v138 = vadd.f32 %v136, %v137
  %v139 = vrot.slane %v138, 2
  %v140 = vadd.f32 %v138, %v139
  %v141 = vrot.slane %v140, 1
  %v142 = vadd.f32 %v140, %v141
  %v143 = vadd.f32 %v111, %v115
  %v144 = vadd.f32 %v143, %v119
  %v145 = vadd.f32 %v144, %v123
  %v146 = vrot.slane %v145, 4
  %v147 = vadd.f32 %v145, %v146
  %v148 = vrot.slane %v147, 2
  %v149 = vadd.f32 %v147, %v148
  %v150 = vrot.slane %v149, 1
  %v151 = vadd.f32 %v149, %v150
  %v152 = vadd.f32 %v112, %v116
  %v153 = vadd.f32 %v152, %v120
  %v154 = vadd.f32 %v153, %v124
  %v155 = vrot.slane %v154, 4
  %v156 = vadd.f32 %v154, %v155
  %v157 = vrot.slane %v156, 2
  %v158 = vadd.f32 %v156, %v157
  %v159 = vrot.slane %v158, 1
  %v160 = vadd.f32 %v158, %v159
  %v165 = vcombine.low %v133, %v142
  %v166 = vcombine.low %v151, %v160
  %v168 = vunpack.c.l.s4 1966171168
  %v169 = vunpack.c.0.s8 %v168
  %v170 = vlaneseq
  %v171 = vshrl.u32 %v170, 7
  %v172 = vsub.s32 %v169, %v171
  %v173 = vrot.slane %v165, %v172
  %v175 = vunpack.c.l.s4 1966171168
  %v176 = vunpack.c.0.s8 %v175
  %v177 = vlaneseq
  %v178 = vshrl.u32 %v177, 7
  %v179 = vsub.s32 %v176, %v178
  %v180 = vrot.slane %v166, %v179
  %v181 = vcombine.low %v173, %v180
  %v183 = vunpack.c.l.s4 1966171168
  %v184 = vunpack.c.0.s8 %v183
  %v185 = vlaneseq
  %v186 = vshrl.u32 %v185, 7
  %v187 = vsub.s32 %v184, %v186
  %v188 = vrot.slane %v181, %v187
  %v190 = vadd.f32 %v108, %v188
  %191 = vst.msk [vmem:[%s2] sm:$0xf] %vm106, %v190
  // Predicated region
  $region10: #{generator_forward.21} parent=0 // pred_check
    _
  $region11: #{generator_forward.21} parent=0 // pred_check_branch
    %193 = sbr.rel (0) target = $region13
  $region12: #{generator_forward.21} parent=0 // pred_region
    _
  $region13: #{generator_forward.21} parent=0 // pred_fallthru
    _
  // Predicated region
  $region14: #{generator_forward.21} parent=0 // pred_check
    _
  $region15: #{generator_forward.21} parent=0 // pred_check_branch
    %195 = sbr.rel (0) target = $region17
  $region16: #{generator_forward.21} parent=0 // pred_region
    _
  $region17: #{generator_forward.21} parent=0 // pred_fallthru
    _
  // Predicated region
  $region18: #{generator_forward.21} parent=0 // pred_check
    _
  $region19: #{generator_forward.21} parent=0 // pred_check_branch
    %197 = sbr.rel (0) target = $region21
  $region20: #{generator_forward.21} parent=0 // pred_region
    _
  $region21: #{generator_forward.21} parent=0 // pred_fallthru
    _
  // Predicated region
  $region22: #{generator_forward.21} parent=0 // pred_check
    _
  $region23: #{generator_forward.21} parent=0 // pred_check_branch
    %199 = sbr.rel (0) target = $region25
  $region24: #{generator_forward.21} parent=0 // pred_region
    _
  $region25: #{generator_forward.21} parent=0 // pred_fallthru
    _

// kernel: tile.68
$region0: #{tile.68}
  #allocation0 [shape = 's32[1]{0}', space=sflag, size = 0x4, scoped, tag = 'scoped memory for tile.68']
  %s0 = inlined_call_operand.vmem [shape: f32[32], index: 0, kind: input, shape index: {}]
  %s1 = inlined_call_operand.vmem [shape: f32[16,32], index: 1, kind: output, shape index: {}]
  // Predicated region
  $region2: #{tile.68} parent=0 // pred_check
    _
  $region3: #{tile.68} parent=0 // pred_check_branch
    %3 = sbr.rel (0) target = $region5
  $region4: #{tile.68} parent=0 // pred_region
    _
  $region5: #{tile.68} parent=0 // pred_fallthru
    _
  %v4 = vld [vmem:[%s0] ss:$0 sm:$0xff]
  %5 = vst [vmem:[%s1] sm:$0xff] %v4
  %s6 = scalar_lea.vmem %s1, 8
  %7 = vst [vmem:[%s6] sm:$0xff] %v4

// kernel: tile.69
$region0: #{tile.69}
  %s0 = inlined_call_operand.vmem [shape: f32[16,32], index: 0, kind: input, shape index: {}]
  %s1 = inlined_call_operand.vmem [shape: f32[1,512], index: 1, kind: output, shape index: {}]
  $region1: #{tile.69} parent=0
    #allocation0 [shape = 'u8[16384]{0}', space=vmem, size = 0x4000, scoped, tag = 'scoped mem for output reshape']
    %v2 = vld [vmem:[%s0] ss:$4 sm:$0xf]
    %vm3 = vcmask 261120
    %4 = vst.msk [vmem:[#allocation0] ss:$8 sm:$0xf] %vm3, %v2
    %s5 = scalar_lea.vmem %s0, 3
    %v6 = vld [vmem:[%s5] ss:$4 sm:$0xf]
    %7 = vrot.lane.b32.xlu0 %v6, 96
    %v8 = vpop.permute.xlu0 %7
    %vm9 = vcmask 1048320
    %10 = vst.msk [vmem:[#allocation0] ss:$8 sm:$0xf] %vm9, %v8
    %s11 = scalar_lea.vmem %s0, 2
    %v12 = vld [vmem:[%s11] ss:$4 sm:$0xf]
    %13 = vrot.lane.b32.xlu0 %v12, 64
    %v14 = vpop.permute.xlu0 %13
    %vm15 = vcmask 785920
    %16 = vst.msk [vmem:[#allocation0] ss:$8 sm:$0xf] %vm15, %v14
    %s17 = scalar_lea.vmem %s0, 1
    %v18 = vld [vmem:[%s17] ss:$4 sm:$0xf]
    %19 = vrot.lane.b32.xlu0 %v18, 32
    %v20 = vpop.permute.xlu0 %19
    %vm21 = vcmask 523520
    %22 = vst.msk [vmem:[#allocation0] ss:$8 sm:$0xf] %vm21, %v20
    %s24 = sshllo.u32 0, 1
    %v26 = vld [vmem:[#allocation0] sm:%s24]
    %s27 = sshllo.u32 0, 1
    %28 = vst [vmem:[%s1] sm:%s27] %v26
    %s29 = scalar_lea.vmem [#allocation0], 8
    %v30 = vld [vmem:[%s29] sm:%s24]
    %s31 = sshllo.u32 0, 1
    %s32 = scalar_lea.vmem %s1, 1
    %33 = vst [vmem:[%s32] sm:%s31] %v30
    %s34 = scalar_lea.vmem [#allocation0], 16
    %v35 = vld [vmem:[%s34] sm:%s24]
    %s36 = sshllo.u32 0, 1
    %s37 = smul.addr 1, 2
    %s38 = scalar_lea.vmem %s1, %s37
    %39 = vst [vmem:[%s38] sm:%s36] %v35
    %s40 = scalar_lea.vmem [#allocation0], 24
    %v41 = vld [vmem:[%s40] sm:%s24]
    %s42 = sshllo.u32 0, 1
    %s43 = smul.addr 1, 3
    %s44 = scalar_lea.vmem %s1, %s43
    %45 = vst [vmem:[%s44] sm:%s42] %v41

// kernel: generator_forward.22
$region0: #{generator_forward.22}
  #allocation0 [shape = 'u32[]', space=smem, size = 0x4, offset = 0x4, fixed_abs, tag = 'smem constant byte address 0x4 - core index']
  #allocation1 [shape = 'u32[144,128]{1,0:T(1,128)}', space=vmem, size = 0x12000, scoped, tag = 'internal scratch']
  %s0 = inlined_call_operand.vmem [shape: f32[32,512], index: 0, kind: input, shape index: {}]
  %s1 = inlined_call_operand.vmem [shape: f32[1,512], index: 1, kind: input, shape index: {}]
  %s2 = inlined_call_operand.vmem [shape: f32[1,512], index: 2, kind: input, shape index: {}]
  %s3 = inlined_call_operand.vmem [shape: bf16[32,512], index: 3, kind: output, shape index: {}]
  %s4 = sld [smem:[#allocation0]]
  $region22: #{generator_forward.22} parent=0
    _
  %s6 = ssub.s32 1, %s4
  %s7 = scalar_select 0, %s6, %s4
  // Predicated region
  $region2: #{generator_forward.22} parent=0 // pred_check
    _
  $region3: #{generator_forward.22} parent=0 // pred_check_branch
    %9 = sbr.rel (0) target = $region5
  $region4: #{generator_forward.22} parent=0 // pred_region
    _
  $region5: #{generator_forward.22} parent=0 // pred_fallthru
    _
  // Predicated region
  $region6: #{generator_forward.22} parent=0 // pred_check
    _
  $region7: #{generator_forward.22} parent=0 // pred_check_branch
    %11 = sbr.rel (0) target = $region9
  $region8: #{generator_forward.22} parent=0 // pred_region
    _
  $region9: #{generator_forward.22} parent=0 // pred_fallthru
    _
  // Predicated region
  $region10: #{generator_forward.22} parent=0 // pred_check
    _
  $region11: #{generator_forward.22} parent=0 // pred_check_branch
    %13 = sbr.rel (0) target = $region13
  $region12: #{generator_forward.22} parent=0 // pred_region
    _
  $region13: #{generator_forward.22} parent=0 // pred_fallthru
    _
  %v14 = vld [vmem:[%s0] sm:$0xff]
  %v15 = vld [vmem:[%s0 + $0x8] sm:$0xff]
  %v16 = vld [vmem:[%s0 + $0x10] sm:$0xff]
  %v17 = vld [vmem:[%s0 + $0x18] sm:$0xff]
  %v18 = vld [vmem:[%s0 + $0x20] sm:$0xff]
  %v19 = vld [vmem:[%s0 + $0x28] sm:$0xff]
  %v20 = vld [vmem:[%s0 + $0x30] sm:$0xff]
  %v21 = vld [vmem:[%s0 + $0x38] sm:$0xff]
  %v22 = vld [vmem:[%s0 + $0x40] sm:$0xff]
  %v23 = vld [vmem:[%s0 + $0x48] sm:$0xff]
  %v24 = vld [vmem:[%s0 + $0x50] sm:$0xff]
  %v25 = vld [vmem:[%s0 + $0x58] sm:$0xff]
  %v26 = vld [vmem:[%s0 + $0x60] sm:$0xff]
  %v27 = vld [vmem:[%s0 + $0x68] sm:$0xff]
  %v28 = vld [vmem:[%s0 + $0x70] sm:$0xff]
  %v29 = vld [vmem:[%s0 + $0x78] sm:$0xff]
  %v30 = vld [vmem:[%s1] sm:$0xf]
  %v32 = vlaneseq
  %v33 = vshrl.u32 %v32, 7
  %v34 = vsub.s32 0, %v33
  %v35 = vrot.slane %v30, %v34
  %v36 = vlaneseq
  %v37 = vshrl.u32 %v36, 7
  %v38 = vsub.s32 1, %v37
  %v39 = vrot.slane %v30, %v38
  %v40 = vlaneseq
  %v41 = vshrl.u32 %v40, 7
  %v42 = vsub.s32 2, %v41
  %v43 = vrot.slane %v30, %v42
  %v44 = vlaneseq
  %v45 = vshrl.u32 %v44, 7
  %v46 = vsub.s32 3, %v45
  %v47 = vrot.slane %v30, %v46
  %v52 = vmul.f32 %v14, %v35
  %v53 = vmul.f32 %v15, %v39
  %v54 = vmul.f32 %v16, %v43
  %v55 = vmul.f32 %v17, %v47
  %v56 = vmul.f32 %v18, %v35
  %v57 = vmul.f32 %v19, %v39
  %v58 = vmul.f32 %v20, %v43
  %v59 = vmul.f32 %v21, %v47
  %v60 = vmul.f32 %v22, %v35
  %v61 = vmul.f32 %v23, %v39
  %v62 = vmul.f32 %v24, %v43
  %v63 = vmul.f32 %v25, %v47
  %v64 = vmul.f32 %v26, %v35
  %v65 = vmul.f32 %v27, %v39
  %v66 = vmul.f32 %v28, %v43
  %v67 = vmul.f32 %v29, %v47
  %v68 = vld [vmem:[%s2] sm:$0xf]
  %v70 = vlaneseq
  %v71 = vshrl.u32 %v70, 7
  %v72 = vsub.s32 0, %v71
  %v73 = vrot.slane %v68, %v72
  %v74 = vlaneseq
  %v75 = vshrl.u32 %v74, 7
  %v76 = vsub.s32 1, %v75
  %v77 = vrot.slane %v68, %v76
  %v78 = vlaneseq
  %v79 = vshrl.u32 %v78, 7
  %v80 = vsub.s32 2, %v79
  %v81 = vrot.slane %v68, %v80
  %v82 = vlaneseq
  %v83 = vshrl.u32 %v82, 7
  %v84 = vsub.s32 3, %v83
  %v85 = vrot.slane %v68, %v84
  %v90 = vadd.f32 %v52, %v73
  %v91 = vadd.f32 %v53, %v77
  %v92 = vadd.f32 %v54, %v81
  %v93 = vadd.f32 %v55, %v85
  %v94 = vadd.f32 %v56, %v73
  %v95 = vadd.f32 %v57, %v77
  %v96 = vadd.f32 %v58, %v81
  %v97 = vadd.f32 %v59, %v85
  %v98 = vadd.f32 %v60, %v73
  %v99 = vadd.f32 %v61, %v77
  %v100 = vadd.f32 %v62, %v81
  %v101 = vadd.f32 %v63, %v85
  %v102 = vadd.f32 %v64, %v73
  %v103 = vadd.f32 %v65, %v77
  %v104 = vadd.f32 %v66, %v81
  %v105 = vadd.f32 %v67, %v85
  %v106 = vmax.f32 %v90, 0.0
  %v107 = vmax.f32 %v91, 0.0
  %v108 = vmax.f32 %v92, 0.0
  %v109 = vmax.f32 %v93, 0.0
  %v110 = vmax.f32 %v94, 0.0
  %v111 = vmax.f32 %v95, 0.0
  %v112 = vmax.f32 %v96, 0.0
  %v113 = vmax.f32 %v97, 0.0
  %v114 = vmax.f32 %v98, 0.0
  %v115 = vmax.f32 %v99, 0.0
  %v116 = vmax.f32 %v100, 0.0
  %v117 = vmax.f32 %v101, 0.0
  %v118 = vmax.f32 %v102, 0.0
  %v119 = vmax.f32 %v103, 0.0
  %v120 = vmax.f32 %v104, 0.0
  %v121 = vmax.f32 %v105, 0.0
  %v122 = vpack.c.bf16 %v110, %v106
  %v123 = vpack.c.bf16 %v111, %v107
  %v124 = vpack.c.bf16 %v112, %v108
  %v125 = vpack.c.bf16 %v113, %v109
  %v126 = vpack.c.bf16 %v118, %v114
  %v127 = vpack.c.bf16 %v119, %v115
  %v128 = vpack.c.bf16 %v120, %v116
  %v129 = vpack.c.bf16 %v121, %v117
  %v138 = vunpack.c.l.b16 %v122
  %v139 = vunpack.c.l.b16 %v123
  %v140 = vunpack.c.l.b16 %v124
  %v141 = vunpack.c.l.b16 %v125
  %v142 = vunpack.c.h.b16 %v122
  %v143 = vunpack.c.h.b16 %v123
  %v144 = vunpack.c.h.b16 %v124
  %v145 = vunpack.c.h.b16 %v125
  %v146 = vunpack.c.l.b16 %v126
  %v147 = vunpack.c.l.b16 %v127
  %v148 = vunpack.c.l.b16 %v128
  %v149 = vunpack.c.l.b16 %v129
  %v150 = vunpack.c.h.b16 %v126
  %v151 = vunpack.c.h.b16 %v127
  %v152 = vunpack.c.h.b16 %v128
  %v153 = vunpack.c.h.b16 %v129
  %v154 = vpack.c.b16 %v139, %v138
  %v155 = vpack.c.b16 %v141, %v140
  %v156 = vpack.c.b16 %v143, %v142
  %v157 = vpack.c.b16 %v145, %v144
  %v158 = vpack.c.b16 %v147, %v146
  %v159 = vpack.c.b16 %v149, %v148
  %v160 = vpack.c.b16 %v151, %v150
  %v161 = vpack.c.b16 %v153, %v152
  %170 = vst [vmem:[%s3] sm:$0xff] %v154
  %171 = vst [vmem:[%s3 + $0x8] sm:$0xff] %v155
  %172 = vst [vmem:[%s3 + $0x10] sm:$0xff] %v156
  %173 = vst [vmem:[%s3 + $0x18] sm:$0xff] %v157
  %174 = vst [vmem:[%s3 + $0x20] sm:$0xff] %v158
  %175 = vst [vmem:[%s3 + $0x28] sm:$0xff] %v159
  %176 = vst [vmem:[%s3 + $0x30] sm:$0xff] %v160
  %177 = vst [vmem:[%s3 + $0x38] sm:$0xff] %v161
  // Predicated region
  $region14: #{generator_forward.22} parent=0 // pred_check
    _
  $region15: #{generator_forward.22} parent=0 // pred_check_branch
    %179 = sbr.rel (0) target = $region17
  $region16: #{generator_forward.22} parent=0 // pred_region
    _
  $region17: #{generator_forward.22} parent=0 // pred_fallthru
    _
  // Predicated region
  $region18: #{generator_forward.22} parent=0 // pred_check
    _
  $region19: #{generator_forward.22} parent=0 // pred_check_branch
    %181 = sbr.rel (0) target = $region21
  $region20: #{generator_forward.22} parent=0 // pred_region
    _
  $region21: #{generator_forward.22} parent=0 // pred_fallthru
    _

// kernel: generator_forward.23
$region0: #{generator_forward.23}
  #allocation0 [shape = 'u32[]', space=smem, size = 0x4, offset = 0x4, fixed_abs, tag = 'smem constant byte address 0x4 - core index']
  #allocation1 [shape = 'u32[144,128]{1,0:T(1,128)}', space=vmem, size = 0x12000, scoped, tag = 'internal scratch']
  %s0 = inlined_call_operand.vmem [shape: bf16[512,32], index: 0, kind: input, shape index: {}]
  %s1 = inlined_call_operand.vmem [shape: bf16[32,256], index: 1, kind: input, shape index: {}]
  %s2 = inlined_call_operand.vmem [shape: f32[512,256], index: 2, kind: output, shape index: {}]
  %s3 = sld [smem:[#allocation0]]
  $region41: #{generator_forward.23} parent=0
    _
  %s5 = ssub.s32 1, %s3
  %s6 = scalar_select 0, %s5, %s3
  loop: start=0, step=1, limit=4
  $region2: #{generator_forward.23} parent=0 // loop_pre_header
    _
  $region3: #{generator_forward.23} parent=0 // loop_header
    %s8 = sphi 0, %s12
    %p9 = scmp.ge.s32.totalorder %s8, 4
    %s15 = sphi 0, %s27
    %s16 = sphi 0, %s23
    %s17 = sphi 0, %s15
    %s18 = sphi 0, %s16
    %s19 = sphi 0, %s17
    %s20 = sphi 0, %s18
    %s30 = sphi 0, %s32
    %s33 = sphi 0, %s30
    %s34 = sphi 0, %s33
    %s50 = sphi 0, %s34
    %s56 = sphi 0, %s58
    %s59 = sphi 0, %s56
    %s60 = sphi 0, %s59
    %s76 = sphi 0, %s60
    %s84 = sphi 0, %s86
    %s87 = sphi 0, %s84
    %s88 = sphi 0, %s87
    %s104 = sphi 0, %s88
  $region4: #{generator_forward.23} parent=0 // loop_header_branch
    %11 = sbr.rel (%p9) target = $region8
  $region5: #{generator_forward.23} parent=0 // loop_body
    %s13 = ssub.s32 %s8, 1
    %s14 = ssub.s32 %s8, 2
    %s21 = sadd.s32 1, %s16
    %p22 = scmp.ge.s32.totalorder %s21, 1
    %s23 = scalar_select %p22, 0, %s21
    %s24 = sadd.s32 1, %s15
    %s25 = scalar_select %p22, %s24, %s15
    %p26 = scmp.ge.s32.totalorder %s25, 2
    %s27 = scalar_select %p26, 0, %s25
    %s28 = ssub.s32 %s15, %s27
    %p29 = scmp.eq.s32.totalorder %s28, 0
    %s31 = sadd.s32 %s30, 1
    %s32 = scalar_select %p29, %s30, %s31
    %p35 = pneg %p29
    %p36 = scmp.eq.s32.totalorder %s8, 1
    %p37 = por %p35, %p36
    %p38 = scmp.ne.s32.totalorder %s30, %s33
    %p39 = scmp.eq.s32.totalorder %s8, 0
    %p40 = por %p38, %p39
    %p41 = scmp.ne.s32.totalorder %s30, %s33
    %p42 = scmp.eq.s32.totalorder %s13, 1
    %p43 = por %p41, %p42
    %p44 = scmp.ne.s32.totalorder %s33, %s34
    %p45 = scmp.eq.s32.totalorder %s13, 0
    %p46 = por %p44, %p45
    %p47 = scmp.ne.s32.totalorder %s33, %s34
    %p48 = scmp.eq.s32.totalorder %s14, 1
    %p49 = por %p47, %p48
    %p51 = scmp.ne.s32.totalorder %s34, %s50
    %p52 = scmp.eq.s32.totalorder %s14, 0
    %p53 = por %p51, %p52
    %s54 = ssub.s32 %s16, %s23
    %p55 = scmp.eq.s32.totalorder %s54, 0
    %s57 = sadd.s32 %s56, 1
    %s58 = scalar_select %p55, %s56, %s57
    %p61 = pneg %p55
    %p62 = scmp.eq.s32.totalorder %s8, 1
    %p63 = por %p61, %p62
    %p64 = scmp.ne.s32.totalorder %s56, %s59
    %p65 = scmp.eq.s32.totalorder %s8, 0
    %p66 = por %p64, %p65
    %p67 = scmp.ne.s32.totalorder %s56, %s59
    %p68 = scmp.eq.s32.totalorder %s13, 1
    %p69 = por %p67, %p68
    %p70 = scmp.ne.s32.totalorder %s59, %s60
    %p71 = scmp.eq.s32.totalorder %s13, 0
    %p72 = por %p70, %p71
    %p73 = scmp.ne.s32.totalorder %s59, %s60
    %p74 = scmp.eq.s32.totalorder %s14, 1
    %p75 = por %p73, %p74
    %p77 = scmp.ne.s32.totalorder %s60, %s76
    %p78 = scmp.eq.s32.totalorder %s14, 0
    %p79 = por %p77, %p78
    %s80 = ssub.s32 %s15, %s27
    %s81 = ssub.s32 %s16, %s23
    %s82 = sor.u32 %s80, %s81
    %p83 = scmp.eq.s32.totalorder %s82, 0
    %s85 = sadd.s32 %s84, 1
    %s86 = scalar_select %p83, %s84, %s85
    %p89 = pneg %p83
    %p90 = scmp.eq.s32.totalorder %s8, 1
    %p91 = por %p89, %p90
    %p92 = scmp.ne.s32.totalorder %s84, %s87
    %p93 = scmp.eq.s32.totalorder %s8, 0
    %p94 = por %p92, %p93
    %p95 = scmp.ne.s32.totalorder %s84, %s87
    %p96 = scmp.eq.s32.totalorder %s13, 1
    %p97 = por %p95, %p96
    %p98 = scmp.ne.s32.totalorder %s87, %s88
    %p99 = scmp.eq.s32.totalorder %s13, 0
    %p100 = por %p98, %p99
    %p101 = scmp.ne.s32.totalorder %s87, %s88
    %p102 = scmp.eq.s32.totalorder %s14, 1
    %p103 = por %p101, %p102
    %p105 = scmp.ne.s32.totalorder %s88, %s104
    %p106 = scmp.eq.s32.totalorder %s14, 0
    %p107 = por %p105, %p106
    %p108 = scmp.le.s32.totalorder 1, %s8
    %p109 = scmp.lt.s32.totalorder %s8, 3
    %p110 = pnand %p108, %p109
    %p111 = pneg %p110
    // Predicated region
    $region9: #{generator_forward.23} parent=5 // pred_check
      _
    $region10: #{generator_forward.23} parent=5 // pred_check_branch
      %113 = sbr.rel (%p110) target = $region12
    $region11: #{generator_forward.23} parent=5 // pred_region
      %s114 = ssub.s32 %s8, 1
      // Predicated region
      $region13: #{generator_forward.23} parent=11 // pred_check
        %p115 = pneg %p72
      $region14: #{generator_forward.23} parent=11 // pred_check_branch
        %117 = sbr.rel (%p115) target = $region16
      $region15: #{generator_forward.23} parent=11 // pred_region
        %s118 = smul.u32 2, %s18
        %p119 = scmp.lt.s32.totalorder %s118, 1
        %s120 = scalar_select %p119, %s118, 1
        %s121 = smul.addr %s120, 4
        %s122 = scalar_lea.vmem %s1, %s121
        %s123 = smul.u32 2, %s18
      $region16: #{generator_forward.23} parent=11 // pred_fallthru
        _
    $region12: #{generator_forward.23} parent=5 // pred_fallthru
      _
    %p124 = scmp.lt.s32.totalorder %s8, 2
    // Predicated region
    $region17: #{generator_forward.23} parent=5 // pred_check
      %p125 = pneg %p124
    $region18: #{generator_forward.23} parent=5 // pred_check_branch
      %127 = sbr.rel (%p125) target = $region20
    $region19: #{generator_forward.23} parent=5 // pred_region
      // Predicated region
      $region21: #{generator_forward.23} parent=19 // pred_check
        %p128 = pneg %p40
      $region22: #{generator_forward.23} parent=19 // pred_check_branch
        %130 = sbr.rel (%p128) target = $region24
      $region23: #{generator_forward.23} parent=19 // pred_region
        %s131 = smul.u32 32, %s15
        %p132 = scmp.lt.s32.totalorder %s131, 63
        %s133 = scalar_select %p132, %s131, 63
        %s134 = smul.addr %s133, 4
        %s135 = scalar_lea.vmem %s0, %s134
        %s136 = smul.u32 32, %s15
      $region24: #{generator_forward.23} parent=19 // pred_fallthru
        _
    $region20: #{generator_forward.23} parent=5 // pred_fallthru
      _
    %p137 = scmp.le.s32.totalorder 1, %s8
    %p138 = scmp.lt.s32.totalorder %s8, 3
    %p139 = pnand %p137, %p138
    %p140 = pneg %p139
    // Predicated region
    $region25: #{generator_forward.23} parent=5 // pred_check
      _
    $region26: #{generator_forward.23} parent=5 // pred_check_branch
      %142 = sbr.rel (%p139) target = $region28
    $region27: #{generator_forward.23} parent=5 // pred_region
      %s143 = ssub.s32 %s8, 1
      %s144 = smul.u32 32, %s17
      %p145 = scmp.lt.s32.totalorder %s144, 63
      %s146 = scalar_select %p145, %s144, 63
      %s147 = smul.addr %s146, 4
      %s148 = scalar_lea.vmem %s0, %s147
      %p149 = pneg %p46
      %p150 = pneg %p43
      %s151 = smul.u32 2, %s18
      %p152 = scmp.lt.s32.totalorder %s151, 1
      %s153 = scalar_select %p152, %s151, 1
      %s154 = smul.addr %s153, 4
      %s155 = scalar_lea.vmem %s1, %s154
      %p156 = pneg %p72
      %p157 = pneg %p69
      %p158 = pneg %p100
      %p159 = pneg %p97
      %s160 = smul.u32 32, %s17
      %s161 = smul.u32 2, %s18
      %p162 = scmp.lt.s32.totalorder %s160, 63
      %s163 = scalar_select %p162, %s160, 63
      %p164 = scmp.lt.s32.totalorder %s161, 1
      %s165 = scalar_select %p164, %s161, 1
      %s166 = smul.addr %s163, 2
      %s167 = sadd.s32 %s165, %s166
      %s168 = smul.addr %s167, 8
      %s169 = scalar_lea.vmem %s2, %s168
      %s170 = smul.u32 32, %s17
      %p171 = scmp.lt.s32.totalorder %s170, 63
      %s172 = scalar_select %p171, %s170, 63
      %s173 = smul.addr %s172, 4
      %s174 = scalar_lea.vmem %s0, %s173
      %s175 = smul.u32 32, %s17
      %s176 = smul.u32 2, %s18
      %p177 = scmp.lt.s32.totalorder %s176, 1
      %s178 = scalar_select %p177, %s176, 1
      %s179 = smul.addr %s178, 4
      %s180 = scalar_lea.vmem %s1, %s179
      %s181 = smul.u32 2, %s18
      %s182 = smul.u32 32, %s17
      %s183 = smul.u32 2, %s18
      %p184 = scmp.lt.s32.totalorder %s182, 63
      %s185 = scalar_select %p184, %s182, 63
      %p186 = scmp.lt.s32.totalorder %s183, 1
      %s187 = scalar_select %p186, %s183, 1
      %s188 = smul.addr %s185, 2
      %s189 = sadd.s32 %s187, %s188
      %s190 = smul.addr %s189, 8
      %s191 = scalar_lea.vmem %s2, %s190
      %s192 = smul.u32 32, %s17
      %s193 = smul.u32 2, %s18
      %v195 = vld [vmem:[%s174] sm:$0xf]
      %v196 = vld [vmem:[%s174 + $0x4] sm:$0xf]
      %v197 = vld [vmem:[%s174 + $0x8] sm:$0xf]
      %v198 = vld [vmem:[%s174 + $0xc] sm:$0xf]
      %v199 = vld [vmem:[%s174 + $0x10] sm:$0xf]
      %v200 = vld [vmem:[%s174 + $0x14] sm:$0xf]
      %v201 = vld [vmem:[%s174 + $0x18] sm:$0xf]
      %v202 = vld [vmem:[%s174 + $0x1c] sm:$0xf]
      %v203 = vld [vmem:[%s174 + $0x20] sm:$0xf]
      %v204 = vld [vmem:[%s174 + $0x24] sm:$0xf]
      %v205 = vld [vmem:[%s174 + $0x28] sm:$0xf]
      %v206 = vld [vmem:[%s174 + $0x2c] sm:$0xf]
      %v207 = vld [vmem:[%s174 + $0x30] sm:$0xf]
      %v208 = vld [vmem:[%s174 + $0x34] sm:$0xf]
      %v209 = vld [vmem:[%s174 + $0x38] sm:$0xf]
      %v210 = vld [vmem:[%s174 + $0x3c] sm:$0xf]
      %v211 = vld [vmem:[%s174 + $0x40] sm:$0xf]
      %v212 = vld [vmem:[%s174 + $0x44] sm:$0xf]
      %v213 = vld [vmem:[%s174 + $0x48] sm:$0xf]
      %v214 = vld [vmem:[%s174 + $0x4c] sm:$0xf]
      %v215 = vld [vmem:[%s174 + $0x50] sm:$0xf]
      %v216 = vld [vmem:[%s174 + $0x54] sm:$0xf]
      %v217 = vld [vmem:[%s174 + $0x58] sm:$0xf]
      %v218 = vld [vmem:[%s174 + $0x5c] sm:$0xf]
      %v219 = vld [vmem:[%s174 + $0x60] sm:$0xf]
      %v220 = vld [vmem:[%s174 + $0x64] sm:$0xf]
      %v221 = vld [vmem:[%s174 + $0x68] sm:$0xf]
      %v222 = vld [vmem:[%s174 + $0x6c] sm:$0xf]
      %v223 = vld [vmem:[%s174 + $0x70] sm:$0xf]
      %v224 = vld [vmem:[%s174 + $0x74] sm:$0xf]
      %v225 = vld [vmem:[%s174 + $0x78] sm:$0xf]
      %v226 = vld [vmem:[%s174 + $0x7c] sm:$0xf]
      %v227 = vld [vmem:[%s180] sm:$0xff]
      %v228 = vld [vmem:[%s180 + $0x8] sm:$0xff]
      %v229 = vld [vmem:[%s180 + $0x10] sm:$0xff]
      %v230 = vld [vmem:[%s180 + $0x18] sm:$0xff]
      %v263 = vunpack.c.l.b16 %v195
      %v264 = vunpack.c.l.b16 %v196
      %v265 = vunpack.c.l.b16 %v197
      %v266 = vunpack.c.l.b16 %v198
      %v267 = vunpack.c.l.b16 %v199
      %v268 = vunpack.c.l.b16 %v200
      %v269 = vunpack.c.l.b16 %v201
      %v270 = vunpack.c.l.b16 %v202
      %v271 = vunpack.c.l.b16 %v203
      %v272 = vunpack.c.l.b16 %v204
      %v273 = vunpack.c.l.b16 %v205
      %v274 = vunpack.c.l.b16 %v206
      %v275 = vunpack.c.l.b16 %v207
      %v276 = vunpack.c.l.b16 %v208
      %v277 = vunpack.c.l.b16 %v209
      %v278 = vunpack.c.l.b16 %v210
      %v279 = vunpack.c.l.b16 %v211
      %v280 = vunpack.c.l.b16 %v212
      %v281 = vunpack.c.l.b16 %v213
      %v282 = vunpack.c.l.b16 %v214
      %v283 = vunpack.c.l.b16 %v215
      %v284 = vunpack.c.l.b16 %v216
      %v285 = vunpack.c.l.b16 %v217
      %v286 = vunpack.c.l.b16 %v218
      %v287 = vunpack.c.l.b16 %v219
      %v288 = vunpack.c.l.b16 %v220
      %v289 = vunpack.c.l.b16 %v221
      %v290 = vunpack.c.l.b16 %v222
      %v291 = vunpack.c.l.b16 %v223
      %v292 = vunpack.c.l.b16 %v224
      %v293 = vunpack.c.l.b16 %v225
      %v294 = vunpack.c.l.b16 %v226
      %v295 = vpack.c.b16 %v264, %v263
      %v296 = vpack.c.b16 %v266, %v265
      %v297 = vpack.c.b16 %v268, %v267
      %v298 = vpack.c.b16 %v270, %v269
      %v299 = vpack.c.b16 %v272, %v271
      %v300 = vpack.c.b16 %v274, %v273
      %v301 = vpack.c.b16 %v276, %v275
      %v302 = vpack.c.b16 %v278, %v277
      %v303 = vpack.c.b16 %v280, %v279
      %v304 = vpack.c.b16 %v282, %v281
      %v305 = vpack.c.b16 %v284, %v283
      %v306 = vpack.c.b16 %v286, %v285
      %v307 = vpack.c.b16 %v288, %v287
      %v308 = vpack.c.b16 %v290, %v289
      %v309 = vpack.c.b16 %v292, %v291
      %v310 = vpack.c.b16 %v294, %v293
      %v315 = vunpack.c.l.b16 %v227
      %v316 = vunpack.c.h.b16 %v227
      %v317 = vunpack.c.l.b16 %v228
      %v318 = vunpack.c.h.b16 %v228
      %v319 = vunpack.c.l.b16 %v229
      %v320 = vunpack.c.h.b16 %v229
      %v321 = vunpack.c.l.b16 %v230
      %v322 = vunpack.c.h.b16 %v230
      %v323 = vpack.c.b16 %v317, %v315
      %v324 = vpack.c.b16 %v318, %v316
      %v325 = vpack.c.b16 %v321, %v319
      %v326 = vpack.c.b16 %v322, %v320
      %vm331 = vcmask 261120
      %v333 = vsel %vm331, %v295, 0
      %v336 = vsel %vm331, %v296, 0
      %v339 = vsel %vm331, %v297, 0
      %v342 = vsel %vm331, %v298, 0
      %v345 = vsel %vm331, %v299, 0
      %v348 = vsel %vm331, %v300, 0
      %v351 = vsel %vm331, %v301, 0
      %v354 = vsel %vm331, %v302, 0
      %v357 = vsel %vm331, %v303, 0
      %v360 = vsel %vm331, %v304, 0
      %v363 = vsel %vm331, %v305, 0
      %v366 = vsel %vm331, %v306, 0
      %v369 = vsel %vm331, %v307, 0
      %v372 = vsel %vm331, %v308, 0
      %v375 = vsel %vm331, %v309, 0
      %v378 = vsel %vm331, %v310, 0
      %380 = vmatprep.subr.bf16.mxu0 %v324
      %381 = vmatpush1.bf16.msra.mxu0 %v323
      %382 = vmatprep.subr.bf16.mxu0 %v326
      %383 = vmatpush1.bf16.msra.mxu0 %v325
      %384 = vmatprep.subr.bf16.mxu0 0
      %385 = vmatpush1.bf16.msra.mxu0 0
      %386 = vmatprep.subr.bf16.mxu0 0
      %387 = vmatpush1.bf16.msra.mxu0 0
      %388 = vmatprep.subr.bf16.mxu0 0
      %389 = vmatpush1.bf16.msra.mxu0 0
      %390 = vmatprep.subr.bf16.mxu0 0
      %391 = vmatpush1.bf16.msra.mxu0 0
      %392 = vmatprep.subr.bf16.mxu0 0
      %393 = vmatpush1.bf16.msra.mxu0 0
      %394 = vmatprep.subr.bf16.mxu0 0
      %395 = vmatpush1.bf16.msra.mxu0 0
      %396 = vmatprep.subr.bf16.mxu0 0
      %397 = vmatpush1.bf16.msra.mxu0 0
      %398 = vmatprep.subr.bf16.mxu0 0
      %399 = vmatpush1.bf16.msra.mxu0 0
      %400 = vmatprep.subr.bf16.mxu0 0
      %401 = vmatpush1.bf16.msra.mxu0 0
      %402 = vmatprep.subr.bf16.mxu0 0
      %403 = vmatpush1.bf16.msra.mxu0 0
      %404 = vmatprep.subr.bf16.mxu0 0
      %405 = vmatpush1.bf16.msra.mxu0 0
      %406 = vmatprep.subr.bf16.mxu0 0
      %407 = vmatpush1.bf16.msra.mxu0 0
      %408 = vmatprep.subr.bf16.mxu0 0
      %409 = vmatpush1.bf16.msra.mxu0 0
      %410 = vmatprep.subr.bf16.mxu0 0
      %411 = vmatpush1.bf16.msra.mxu0 0
      %412 = vmatprep.mubr.bf16.mxu0 0
      %413 = vmatmul.mubr.bf16.gmra.mrb[0].mxu0 %v333
      %v414 = vpop.f32.mrb[0].mxu0
      %v415 = vadd.f32 0.0, %v414
      %v416 = vpop.f32.mrb[0].mxu0
      %v417 = vadd.f32 0.0, %v416
      %v418 = vpop.f32.mrb[0].mxu0
      %v419 = vadd.f32 0.0, %v418
      %v420 = vpop.f32.mrb[0].mxu0
      %v421 = vadd.f32 0.0, %v420
      %422 = vmatprep.mubr.bf16.mxu0 0
      %423 = vmatmul.mubr.bf16.gmra.mrb[0].mxu0 %v336
      %v424 = vpop.f32.mrb[0].mxu0
      %v425 = vadd.f32 0.0, %v424
      %v426 = vpop.f32.mrb[0].mxu0
      %v427 = vadd.f32 0.0, %v426
      %v428 = vpop.f32.mrb[0].mxu0
      %v429 = vadd.f32 0.0, %v428
      %v430 = vpop.f32.mrb[0].mxu0
      %v431 = vadd.f32 0.0, %v430
      %432 = vmatprep.mubr.bf16.mxu0 0
      %433 = vmatmul.mubr.bf16.gmra.mrb[0].mxu0 %v339
      %v434 = vpop.f32.mrb[0].mxu0
      %v435 = vadd.f32 0.0, %v434
      %v436 = vpop.f32.mrb[0].mxu0
      %v437 = vadd.f32 0.0, %v436
      %v438 = vpop.f32.mrb[0].mxu0
      %v439 = vadd.f32 0.0, %v438
      %v440 = vpop.f32.mrb[0].mxu0
      %v441 = vadd.f32 0.0, %v440
      %442 = vmatprep.mubr.bf16.mxu0 0
      %443 = vmatmul.mubr.bf16.gmra.mrb[0].mxu0 %v342
      %v444 = vpop.f32.mrb[0].mxu0
      %v445 = vadd.f32 0.0, %v444
      %v446 = vpop.f32.mrb[0].mxu0
      %v447 = vadd.f32 0.0, %v446
      %v448 = vpop.f32.mrb[0].mxu0
      %v449 = vadd.f32 0.0, %v448
      %v450 = vpop.f32.mrb[0].mxu0
      %v451 = vadd.f32 0.0, %v450
      %452 = vmatprep.mubr.bf16.mxu0 0
      %453 = vmatmul.mubr.bf16.gmra.mrb[0].mxu0 %v345
      %v454 = vpop.f32.mrb[0].mxu0
      %v455 = vadd.f32 0.0, %v454
      %v456 = vpop.f32.mrb[0].mxu0
      %v457 = vadd.f32 0.0, %v456
      %v458 = vpop.f32.mrb[0].mxu0
      %v459 = vadd.f32 0.0, %v458
      %v460 = vpop.f32.mrb[0].mxu0
      %v461 = vadd.f32 0.0, %v460
      %462 = vmatprep.mubr.bf16.mxu0 0
      %463 = vmatmul.mubr.bf16.gmra.mrb[0].mxu0 %v348
      %v464 = vpop.f32.mrb[0].mxu0
      %v465 = vadd.f32 0.0, %v464
      %v466 = vpop.f32.mrb[0].mxu0
      %v467 = vadd.f32 0.0, %v466
      %v468 = vpop.f32.mrb[0].mxu0
      %v469 = vadd.f32 0.0, %v468
      %v470 = vpop.f32.mrb[0].mxu0
      %v471 = vadd.f32 0.0, %v470
      %472 = vmatprep.mubr.bf16.mxu0 0
      %473 = vmatmul.mubr.bf16.gmra.mrb[0].mxu0 %v351
      %v474 = vpop.f32.mrb[0].mxu0
      %v475 = vadd.f32 0.0, %v474
      %v476 = vpop.f32.mrb[0].mxu0
      %v477 = vadd.f32 0.0, %v476
      %v478 = vpop.f32.mrb[0].mxu0
      %v479 = vadd.f32 0.0, %v478
      %v480 = vpop.f32.mrb[0].mxu0
      %v481 = vadd.f32 0.0, %v480
      %482 = vmatprep.mubr.bf16.mxu0 0
      %483 = vmatmul.mubr.bf16.gmra.mrb[0].mxu0 %v354
      %v484 = vpop.f32.mrb[0].mxu0
      %v485 = vadd.f32 0.0, %v484
      %v486 = vpop.f32.mrb[0].mxu0
      %v487 = vadd.f32 0.0, %v486
      %v488 = vpop.f32.mrb[0].mxu0
      %v489 = vadd.f32 0.0, %v488
      %v490 = vpop.f32.mrb[0].mxu0
      %v491 = vadd.f32 0.0, %v490
      %492 = vmatprep.mubr.bf16.mxu0 0
      %493 = vmatmul.mubr.bf16.gmra.mrb[0].mxu0 %v357
      %v494 = vpop.f32.mrb[0].mxu0
      %v495 = vadd.f32 0.0, %v494
      %v496 = vpop.f32.mrb[0].mxu0
      %v497 = vadd.f32 0.0, %v496
      %v498 = vpop.f32.mrb[0].mxu0
      %v499 = vadd.f32 0.0, %v498
      %v500 = vpop.f32.mrb[0].mxu0
      %v501 = vadd.f32 0.0, %v500
      %502 = vmatprep.mubr.bf16.mxu0 0
      %503 = vmatmul.mubr.bf16.gmra.mrb[0].mxu0 %v360
      %v504 = vpop.f32.mrb[0].mxu0
      %v505 = vadd.f32 0.0, %v504
      %v506 = vpop.f32.mrb[0].mxu0
      %v507 = vadd.f32 0.0, %v506
      %v508 = vpop.f32.mrb[0].mxu0
      %v509 = vadd.f32 0.0, %v508
      %v510 = vpop.f32.mrb[0].mxu0
      %v511 = vadd.f32 0.0, %v510
      %512 = vmatprep.mubr.bf16.mxu0 0
      %513 = vmatmul.mubr.bf16.gmra.mrb[0].mxu0 %v363
      %v514 = vpop.f32.mrb[0].mxu0
      %v515 = vadd.f32 0.0, %v514
      %v516 = vpop.f32.mrb[0].mxu0
      %v517 = vadd.f32 0.0, %v516
      %v518 = vpop.f32.mrb[0].mxu0
      %v519 = vadd.f32 0.0, %v518
      %v520 = vpop.f32.mrb[0].mxu0
      %v521 = vadd.f32 0.0, %v520
      %522 = vmatprep.mubr.bf16.mxu0 0
      %523 = vmatmul.mubr.bf16.gmra.mrb[0].mxu0 %v366
      %v524 = vpop.f32.mrb[0].mxu0
      %v525 = vadd.f32 0.0, %v524
      %v526 = vpop.f32.mrb[0].mxu0
      %v527 = vadd.f32 0.0, %v526
      %v528 = vpop.f32.mrb[0].mxu0
      %v529 = vadd.f32 0.0, %v528
      %v530 = vpop.f32.mrb[0].mxu0
      %v531 = vadd.f32 0.0, %v530
      %532 = vmatprep.mubr.bf16.mxu0 0
      %533 = vmatmul.mubr.bf16.gmra.mrb[0].mxu0 %v369
      %v534 = vpop.f32.mrb[0].mxu0
      %v535 = vadd.f32 0.0, %v534
      %v536 = vpop.f32.mrb[0].mxu0
      %v537 = vadd.f32 0.0, %v536
      %v538 = vpop.f32.mrb[0].mxu0
      %v539 = vadd.f32 0.0, %v538
      %v540 = vpop.f32.mrb[0].mxu0
      %v541 = vadd.f32 0.0, %v540
      %542 = vmatprep.mubr.bf16.mxu0 0
      %543 = vmatmul.mubr.bf16.gmra.mrb[0].mxu0 %v372
      %v544 = vpop.f32.mrb[0].mxu0
      %v545 = vadd.f32 0.0, %v544
      %v546 = vpop.f32.mrb[0].mxu0
      %v547 = vadd.f32 0.0, %v546
      %v548 = vpop.f32.mrb[0].mxu0
      %v549 = vadd.f32 0.0, %v548
      %v550 = vpop.f32.mrb[0].mxu0
      %v551 = vadd.f32 0.0, %v550
      %552 = vmatprep.mubr.bf16.mxu0 0
      %553 = vmatmul.mubr.bf16.gmra.mrb[0].mxu0 %v375
      %v554 = vpop.f32.mrb[0].mxu0
      %v555 = vadd.f32 0.0, %v554
      %v556 = vpop.f32.mrb[0].mxu0
      %v557 = vadd.f32 0.0, %v556
      %v558 = vpop.f32.mrb[0].mxu0
      %v559 = vadd.f32 0.0, %v558
      %v560 = vpop.f32.mrb[0].mxu0
      %v561 = vadd.f32 0.0, %v560
      %562 = vmatprep.mubr.bf16.mxu0 0
      %563 = vmatmul.mubr.bf16.gmra.mrb[0].mxu0 %v378
      %v564 = vpop.f32.mrb[0].mxu0
      %v565 = vadd.f32 0.0, %v564
      %v566 = vpop.f32.mrb[0].mxu0
      %v567 = vadd.f32 0.0, %v566
      %v568 = vpop.f32.mrb[0].mxu0
      %v569 = vadd.f32 0.0, %v568
      %v570 = vpop.f32.mrb[0].mxu0
      %v571 = vadd.f32 0.0, %v570
      %572 = vdwg.mxu0
      %573 = vst [vmem:[%s191] sm:$0xff] %v415
      %574 = vst [vmem:[%s191 + $0x8] sm:$0xff] %v417
      %575 = vst [vmem:[%s191 + $0x10] sm:$0xff] %v419
      %576 = vst [vmem:[%s191 + $0x18] sm:$0xff] %v421
      %577 = vst [vmem:[%s191 + $0x20] sm:$0xff] %v425
      %578 = vst [vmem:[%s191 + $0x28] sm:$0xff] %v427
      %579 = vst [vmem:[%s191 + $0x30] sm:$0xff] %v429
      %580 = vst [vmem:[%s191 + $0x38] sm:$0xff] %v431
      %581 = vst [vmem:[%s191 + $0x40] sm:$0xff] %v435
      %582 = vst [vmem:[%s191 + $0x48] sm:$0xff] %v437
      %583 = vst [vmem:[%s191 + $0x50] sm:$0xff] %v439
      %584 = vst [vmem:[%s191 + $0x58] sm:$0xff] %v441
      %585 = vst [vmem:[%s191 + $0x60] sm:$0xff] %v445
      %586 = vst [vmem:[%s191 + $0x68] sm:$0xff] %v447
      %587 = vst [vmem:[%s191 + $0x70] sm:$0xff] %v449
      %588 = vst [vmem:[%s191 + $0x78] sm:$0xff] %v451
      %589 = vst [vmem:[%s191 + $0x80] sm:$0xff] %v455
      %590 = vst [vmem:[%s191 + $0x88] sm:$0xff] %v457
      %591 = vst [vmem:[%s191 + $0x90] sm:$0xff] %v459
      %592 = vst [vmem:[%s191 + $0x98] sm:$0xff] %v461
      %593 = vst [vmem:[%s191 + $0xa0] sm:$0xff] %v465
      %594 = vst [vmem:[%s191 + $0xa8] sm:$0xff] %v467
      %595 = vst [vmem:[%s191 + $0xb0] sm:$0xff] %v469
      %596 = vst [vmem:[%s191 + $0xb8] sm:$0xff] %v471
      %597 = vst [vmem:[%s191 + $0xc0] sm:$0xff] %v475
      %598 = vst [vmem:[%s191 + $0xc8] sm:$0xff] %v477
      %599 = vst [vmem:[%s191 + $0xd0] sm:$0xff] %v479
      %600 = vst [vmem:[%s191 + $0xd8] sm:$0xff] %v481
      %601 = vst [vmem:[%s191 + $0xe0] sm:$0xff] %v485
      %602 = vst [vmem:[%s191 + $0xe8] sm:$0xff] %v487
      %603 = vst [vmem:[%s191 + $0xf0] sm:$0xff] %v489
      %604 = vst [vmem:[%s191 + $0xf8] sm:$0xff] %v491
      %605 = vst [vmem:[%s191 + $0x100] sm:$0xff] %v495
      %606 = vst [vmem:[%s191 + $0x108] sm:$0xff] %v497
      %607 = vst [vmem:[%s191 + $0x110] sm:$0xff] %v499
      %608 = vst [vmem:[%s191 + $0x118] sm:$0xff] %v501
      %609 = vst [vmem:[%s191 + $0x120] sm:$0xff] %v505
      %610 = vst [vmem:[%s191 + $0x128] sm:$0xff] %v507
      %611 = vst [vmem:[%s191 + $0x130] sm:$0xff] %v509
      %612 = vst [vmem:[%s191 + $0x138] sm:$0xff] %v511
      %613 = vst [vmem:[%s191 + $0x140] sm:$0xff] %v515
      %614 = vst [vmem:[%s191 + $0x148] sm:$0xff] %v517
      %615 = vst [vmem:[%s191 + $0x150] sm:$0xff] %v519
      %616 = vst [vmem:[%s191 + $0x158] sm:$0xff] %v521
      %617 = vst [vmem:[%s191 + $0x160] sm:$0xff] %v525
      %618 = vst [vmem:[%s191 + $0x168] sm:$0xff] %v527
      %619 = vst [vmem:[%s191 + $0x170] sm:$0xff] %v529
      %620 = vst [vmem:[%s191 + $0x178] sm:$0xff] %v531
      %621 = vst [vmem:[%s191 + $0x180] sm:$0xff] %v535
      %622 = vst [vmem:[%s191 + $0x188] sm:$0xff] %v537
      %623 = vst [vmem:[%s191 + $0x190] sm:$0xff] %v539
      %624 = vst [vmem:[%s191 + $0x198] sm:$0xff] %v541
      %625 = vst [vmem:[%s191 + $0x1a0] sm:$0xff] %v545
      %626 = vst [vmem:[%s191 + $0x1a8] sm:$0xff] %v547
      %627 = vst [vmem:[%s191 + $0x1b0] sm:$0xff] %v549
      %628 = vst [vmem:[%s191 + $0x1b8] sm:$0xff] %v551
      %629 = vst [vmem:[%s191 + $0x1c0] sm:$0xff] %v555
      %630 = vst [vmem:[%s191 + $0x1c8] sm:$0xff] %v557
      %631 = vst [vmem:[%s191 + $0x1d0] sm:$0xff] %v559
      %632 = vst [vmem:[%s191 + $0x1d8] sm:$0xff] %v561
      %633 = vst [vmem:[%s191 + $0x1e0] sm:$0xff] %v565
      %634 = vst [vmem:[%s191 + $0x1e8] sm:$0xff] %v567
      %635 = vst [vmem:[%s191 + $0x1f0] sm:$0xff] %v569
      %636 = vst [vmem:[%s191 + $0x1f8] sm:$0xff] %v571
      %s637 = smul.u32 32, %s17
      %s638 = smul.u32 2, %s18
      %p639 = scmp.lt.s32.totalorder %s637, 63
      %s640 = scalar_select %p639, %s637, 63
      %p641 = scmp.lt.s32.totalorder %s638, 1
      %s642 = scalar_select %p641, %s638, 1
      %s643 = smul.addr %s640, 2
      %s644 = sadd.s32 %s642, %s643
      %s645 = smul.addr %s644, 8
      %s646 = scalar_lea.vmem %s2, %s645
      // Predicated region
      $region29: #{generator_forward.23} parent=27 // pred_check
        %p647 = pneg %p97
      $region30: #{generator_forward.23} parent=27 // pred_check_branch
        %649 = sbr.rel (%p647) target = $region32
      $region31: #{generator_forward.23} parent=27 // pred_region
        %s650 = smul.u32 32, %s17
        %s651 = smul.u32 2, %s18
      $region32: #{generator_forward.23} parent=27 // pred_fallthru
        _
    $region28: #{generator_forward.23} parent=5 // pred_fallthru
      _
    %p652 = scmp.le.s32.totalorder 2, %s8
    // Predicated region
    $region33: #{generator_forward.23} parent=5 // pred_check
      %p653 = pneg %p652
    $region34: #{generator_forward.23} parent=5 // pred_check_branch
      %655 = sbr.rel (%p653) target = $region36
    $region35: #{generator_forward.23} parent=5 // pred_region
      %s656 = ssub.s32 %s8, 2
      // Predicated region
      $region37: #{generator_forward.23} parent=35 // pred_check
        %p657 = pneg %p103
      $region38: #{generator_forward.23} parent=35 // pred_check_branch
        %659 = sbr.rel (%p657) target = $region40
      $region39: #{generator_forward.23} parent=35 // pred_region
        %s660 = smul.u32 32, %s19
        %s661 = smul.u32 2, %s20
        %p662 = scmp.lt.s32.totalorder %s660, 63
        %s663 = scalar_select %p662, %s660, 63
        %p664 = scmp.lt.s32.totalorder %s661, 1
        %s665 = scalar_select %p664, %s661, 1
        %s666 = smul.addr %s663, 2
        %s667 = sadd.s32 %s665, %s666
        %s668 = smul.addr %s667, 8
        %s669 = scalar_lea.vmem %s2, %s668
      $region40: #{generator_forward.23} parent=35 // pred_fallthru
        _
    $region36: #{generator_forward.23} parent=5 // pred_fallthru
      _
  $region6: #{generator_forward.23} parent=0 // loop_footer
    %s12 = sadd.s32 1, %s8
  $region7: #{generator_forward.23} parent=0 // loop_footer_branch
    %7 = sbr.rel target = $region3
  $region8: #{generator_forward.23} parent=0 // loop_exit
    _

// kernel: tile.78
$region0: #{tile.78}
  #allocation0 [shape = 's32[1]{0}', space=sflag, size = 0x4, scoped, tag = 'scoped memory for tile.78']
  %s0 = inlined_call_operand.vmem [shape: f32[16], index: 0, kind: input, shape index: {}]
  %s1 = inlined_call_operand.vmem [shape: f32[32,16], index: 1, kind: output, shape index: {}]
  // Predicated region
  $region2: #{tile.78} parent=0 // pred_check
    _
  $region3: #{tile.78} parent=0 // pred_check_branch
    %3 = sbr.rel (0) target = $region5
  $region4: #{tile.78} parent=0 // pred_region
    _
  $region5: #{tile.78} parent=0 // pred_fallthru
    _
  %v4 = vld [vmem:[%s0] ss:$0 sm:$0xff]
  %5 = vst [vmem:[%s1] sm:$0xff] %v4
  %s6 = scalar_lea.vmem %s1, 8
  %7 = vst [vmem:[%s6] sm:$0xff] %v4
  %s8 = scalar_lea.vmem %s1, 16
  %9 = vst [vmem:[%s8] sm:$0xff] %v4
  %s10 = scalar_lea.vmem %s1, 24
  %11 = vst [vmem:[%s10] sm:$0xff] %v4

// kernel: tile.79
$region0: #{tile.79}
  %s0 = inlined_call_operand.vmem [shape: f32[32,16], index: 0, kind: input, shape index: {}]
  %s1 = inlined_call_operand.vmem [shape: f32[1,512], index: 1, kind: output, shape index: {}]
  $region1: #{tile.79} parent=0
    #allocation0 [shape = 'u8[16384]{0}', space=vmem, size = 0x4000, scoped, tag = 'scoped mem for output reshape']
    %v2 = vld [vmem:[%s0] ss:$8 sm:$0xf]
    %vm3 = vcmask 130048
    %4 = vst.msk [vmem:[#allocation0] ss:$8 sm:$0xf] %vm3, %v2
    %s5 = scalar_lea.vmem %s0, 7
    %v6 = vld [vmem:[%s5] ss:$8 sm:$0xf]
    %7 = vrot.lane.b32.xlu0 %v6, 112
    %v8 = vpop.permute.xlu0 %7
    %vm9 = vcmask 1048448
    %10 = vst.msk [vmem:[#allocation0] ss:$8 sm:$0xf] %vm9, %v8
    %s11 = scalar_lea.vmem %s0, 6
    %v12 = vld [vmem:[%s11] ss:$8 sm:$0xf]
    %13 = vrot.lane.b32.xlu0 %v12, 96
    %v14 = vpop.permute.xlu0 %13
    %vm15 = vcmask 917248
    %16 = vst.msk [vmem:[#allocation0] ss:$8 sm:$0xf] %vm15, %v14
    %s17 = scalar_lea.vmem %s0, 5
    %v18 = vld [vmem:[%s17] ss:$8 sm:$0xf]
    %19 = vrot.lane.b32.xlu0 %v18, 80
    %v20 = vpop.permute.xlu0 %19
    %vm21 = vcmask 786048
    %22 = vst.msk [vmem:[#allocation0] ss:$8 sm:$0xf] %vm21, %v20
    %s23 = scalar_lea.vmem %s0, 4
    %v24 = vld [vmem:[%s23] ss:$8 sm:$0xf]
    %25 = vrot.lane.b32.xlu0 %v24, 64
    %v26 = vpop.permute.xlu0 %25
    %vm27 = vcmask 654848
    %28 = vst.msk [vmem:[#allocation0] ss:$8 sm:$0xf] %vm27, %v26
    %s29 = scalar_lea.vmem %s0, 3
    %v30 = vld [vmem:[%s29] ss:$8 sm:$0xf]
    %31 = vrot.lane.b32.xlu0 %v30, 48
    %v32 = vpop.permute.xlu0 %31
    %vm33 = vcmask 523648
    %34 = vst.msk [vmem:[#allocation0] ss:$8 sm:$0xf] %vm33, %v32
    %s35 = scalar_lea.vmem %s0, 2
    %v36 = vld [vmem:[%s35] ss:$8 sm:$0xf]
    %37 = vrot.lane.b32.xlu0 %v36, 32
    %v38 = vpop.permute.xlu0 %37
    %vm39 = vcmask 392448
    %40 = vst.msk [vmem:[#allocation0] ss:$8 sm:$0xf] %vm39, %v38
    %s41 = scalar_lea.vmem %s0, 1
    %v42 = vld [vmem:[%s41] ss:$8 sm:$0xf]
    %43 = vrot.lane.b32.xlu0 %v42, 16
    %v44 = vpop.permute.xlu0 %43
    %vm45 = vcmask 261248
    %46 = vst.msk [vmem:[#allocation0] ss:$8 sm:$0xf] %vm45, %v44
    %s48 = sshllo.u32 0, 1
    %v50 = vld [vmem:[#allocation0] sm:%s48]
    %s51 = sshllo.u32 0, 1
    %52 = vst [vmem:[%s1] sm:%s51] %v50
    %s53 = scalar_lea.vmem [#allocation0], 8
    %v54 = vld [vmem:[%s53] sm:%s48]
    %s55 = sshllo.u32 0, 1
    %s56 = scalar_lea.vmem %s1, 1
    %57 = vst [vmem:[%s56] sm:%s55] %v54
    %s58 = scalar_lea.vmem [#allocation0], 16
    %v59 = vld [vmem:[%s58] sm:%s48]
    %s60 = sshllo.u32 0, 1
    %s61 = smul.addr 1, 2
    %s62 = scalar_lea.vmem %s1, %s61
    %63 = vst [vmem:[%s62] sm:%s60] %v59
    %s64 = scalar_lea.vmem [#allocation0], 24
    %v65 = vld [vmem:[%s64] sm:%s48]
    %s66 = sshllo.u32 0, 1
    %s67 = smul.addr 1, 3
    %s68 = scalar_lea.vmem %s1, %s67
    %69 = vst [vmem:[%s68] sm:%s66] %v65

// kernel: generator_forward.24
$region0: #{generator_forward.24}
  #allocation0 [shape = 'u32[]', space=smem, size = 0x4, offset = 0x4, fixed_abs, tag = 'smem constant byte address 0x4 - core index']
  #allocation1 [shape = 'u32[144,128]{1,0:T(1,128)}', space=vmem, size = 0x12000, scoped, tag = 'internal scratch']
  %s0 = inlined_call_operand.vmem [shape: f32[64,512], index: 0, kind: input, shape index: {}]
  %s1 = inlined_call_operand.vmem [shape: f32[1,512], index: 1, kind: output, shape index: {0}]
  %s2 = inlined_call_operand.vmem [shape: f32[1,512], index: 2, kind: output, shape index: {1}]
  %3 = xla_tuple %s1, %s2
  %s4 = sld [smem:[#allocation0]]
  $region26: #{generator_forward.24} parent=0
    _
  %s6 = ssub.s32 1, %s4
  %s7 = scalar_select 0, %s6, %s4
  // Predicated region
  $region2: #{generator_forward.24} parent=0 // pred_check
    _
  $region3: #{generator_forward.24} parent=0 // pred_check_branch
    %9 = sbr.rel (0) target = $region5
  $region4: #{generator_forward.24} parent=0 // pred_region
    _
  $region5: #{generator_forward.24} parent=0 // pred_fallthru
    _
  %p10 = scmp.eq.s32.totalorder 0, 0
  // Predicated region
  $region6: #{generator_forward.24} parent=0 // pred_check
    %p11 = pneg %p10
  $region7: #{generator_forward.24} parent=0 // pred_check_branch
    %13 = sbr.rel (%p11) target = $region9
  $region8: #{generator_forward.24} parent=0 // pred_region
    %v14 = vlaneseq
    %vm15 = vcmp.ge.s32.totalorder %v14, 0
    %vm16 = vcmp.lt.s32.totalorder %v14, 512
    %vm17 = vmand %vm15, %vm16
    %18 = vst.msk [vmem:[%s1] sm:$0xf] %vm17, 0.0
    %19 = vst.msk [vmem:[%s2] sm:$0xf] %vm17, 0.0
  $region9: #{generator_forward.24} parent=0 // pred_fallthru
    _
  %v20 = vld [vmem:[%s0] sm:$0xff]
  %v21 = vld [vmem:[%s0 + $0x8] sm:$0xff]
  %v22 = vld [vmem:[%s0 + $0x10] sm:$0xff]
  %v23 = vld [vmem:[%s0 + $0x18] sm:$0xff]
  %v24 = vld [vmem:[%s0 + $0x20] sm:$0xff]
  %v25 = vld [vmem:[%s0 + $0x28] sm:$0xff]
  %v26 = vld [vmem:[%s0 + $0x30] sm:$0xff]
  %v27 = vld [vmem:[%s0 + $0x38] sm:$0xff]
  %v28 = vld [vmem:[%s0 + $0x40] sm:$0xff]
  %v29 = vld [vmem:[%s0 + $0x48] sm:$0xff]
  %v30 = vld [vmem:[%s0 + $0x50] sm:$0xff]
  %v31 = vld [vmem:[%s0 + $0x58] sm:$0xff]
  %v32 = vld [vmem:[%s0 + $0x60] sm:$0xff]
  %v33 = vld [vmem:[%s0 + $0x68] sm:$0xff]
  %v34 = vld [vmem:[%s0 + $0x70] sm:$0xff]
  %v35 = vld [vmem:[%s0 + $0x78] sm:$0xff]
  %v36 = vld [vmem:[%s0 + $0x80] sm:$0xff]
  %v37 = vld [vmem:[%s0 + $0x88] sm:$0xff]
  %v38 = vld [vmem:[%s0 + $0x90] sm:$0xff]
  %v39 = vld [vmem:[%s0 + $0x98] sm:$0xff]
  %v40 = vld [vmem:[%s0 + $0xa0] sm:$0xff]
  %v41 = vld [vmem:[%s0 + $0xa8] sm:$0xff]
  %v42 = vld [vmem:[%s0 + $0xb0] sm:$0xff]
  %v43 = vld [vmem:[%s0 + $0xb8] sm:$0xff]
  %v44 = vld [vmem:[%s0 + $0xc0] sm:$0xff]
  %v45 = vld [vmem:[%s0 + $0xc8] sm:$0xff]
  %v46 = vld [vmem:[%s0 + $0xd0] sm:$0xff]
  %v47 = vld [vmem:[%s0 + $0xd8] sm:$0xff]
  %v48 = vld [vmem:[%s0 + $0xe0] sm:$0xff]
  %v49 = vld [vmem:[%s0 + $0xe8] sm:$0xff]
  %v50 = vld [vmem:[%s0 + $0xf0] sm:$0xff]
  %v51 = vld [vmem:[%s0 + $0xf8] sm:$0xff]
  %v52 = vld [vmem:[%s1] sm:$0xf]
  %v53 = vadd.f32 %v20, %v24
  %v54 = vadd.f32 %v53, %v28
  %v55 = vadd.f32 %v54, %v32
  %v56 = vadd.f32 %v55, %v36
  %v57 = vadd.f32 %v56, %v40
  %v58 = vadd.f32 %v57, %v44
  %v59 = vadd.f32 %v58, %v48
  %v60 = vrot.slane %v59, 4
  %v61 = vadd.f32 %v59, %v60
  %v62 = vrot.slane %v61, 2
  %v63 = vadd.f32 %v61, %v62
  %v64 = vrot.slane %v63, 1
  %v65 = vadd.f32 %v63, %v64
  %v66 = vadd.f32 %v21, %v25
  %v67 = vadd.f32 %v66, %v29
  %v68 = vadd.f32 %v67, %v33
  %v69 = vadd.f32 %v68, %v37
  %v70 = vadd.f32 %v69, %v41
  %v71 = vadd.f32 %v70, %v45
  %v72 = vadd.f32 %v71, %v49
  %v73 = vrot.slane %v72, 4
  %v74 = vadd.f32 %v72, %v73
  %v75 = vrot.slane %v74, 2
  %v76 = vadd.f32 %v74, %v75
  %v77 = vrot.slane %v76, 1
  %v78 = vadd.f32 %v76, %v77
  %v79 = vadd.f32 %v22, %v26
  %v80 = vadd.f32 %v79, %v30
  %v81 = vadd.f32 %v80, %v34
  %v82 = vadd.f32 %v81, %v38
  %v83 = vadd.f32 %v82, %v42
  %v84 = vadd.f32 %v83, %v46
  %v85 = vadd.f32 %v84, %v50
  %v86 = vrot.slane %v85, 4
  %v87 = vadd.f32 %v85, %v86
  %v88 = vrot.slane %v87, 2
  %v89 = vadd.f32 %v87, %v88
  %v90 = vrot.slane %v89, 1
  %v91 = vadd.f32 %v89, %v90
  %v92 = vadd.f32 %v23, %v27
  %v93 = vadd.f32 %v92, %v31
  %v94 = vadd.f32 %v93, %v35
  %v95 = vadd.f32 %v94, %v39
  %v96 = vadd.f32 %v95, %v43
  %v97 = vadd.f32 %v96, %v47
  %v98 = vadd.f32 %v97, %v51
  %v99 = vrot.slane %v98, 4
  %v100 = vadd.f32 %v98, %v99
  %v101 = vrot.slane %v100, 2
  %v102 = vadd.f32 %v100, %v101
  %v103 = vrot.slane %v102, 1
  %v104 = vadd.f32 %v102, %v103
  %v109 = vcombine.low %v65, %v78
  %v110 = vcombine.low %v91, %v104
  %v112 = vunpack.c.l.s4 1966171168
  %v113 = vunpack.c.0.s8 %v112
  %v114 = vlaneseq
  %v115 = vshrl.u32 %v114, 7
  %v116 = vsub.s32 %v113, %v115
  %v117 = vrot.slane %v109, %v116
  %v119 = vunpack.c.l.s4 1966171168
  %v120 = vunpack.c.0.s8 %v119
  %v121 = vlaneseq
  %v122 = vshrl.u32 %v121, 7
  %v123 = vsub.s32 %v120, %v122
  %v124 = vrot.slane %v110, %v123
  %v125 = vcombine.low %v117, %v124
  %v127 = vunpack.c.l.s4 1966171168
  %v128 = vunpack.c.0.s8 %v127
  %v129 = vlaneseq
  %v130 = vshrl.u32 %v129, 7
  %v131 = vsub.s32 %v128, %v130
  %v132 = vrot.slane %v125, %v131
  %v134 = vadd.f32 %v52, %v132
  %v135 = vlaneseq
  %vm136 = vcmp.ge.s32.totalorder %v135, 0
  %vm137 = vcmp.lt.s32.totalorder %v135, 512
  %vm138 = vmand %vm136, %vm137
  %139 = vst.msk [vmem:[%s1] sm:$0xf] %vm138, %v134
  %v140 = vld [vmem:[%s2] sm:$0xf]
  %v141 = vmul.f32 %v20, %v20
  %v142 = vmul.f32 %v21, %v21
  %v143 = vmul.f32 %v22, %v22
  %v144 = vmul.f32 %v23, %v23
  %v145 = vmul.f32 %v24, %v24
  %v146 = vmul.f32 %v25, %v25
  %v147 = vmul.f32 %v26, %v26
  %v148 = vmul.f32 %v27, %v27
  %v149 = vmul.f32 %v28, %v28
  %v150 = vmul.f32 %v29, %v29
  %v151 = vmul.f32 %v30, %v30
  %v152 = vmul.f32 %v31, %v31
  %v153 = vmul.f32 %v32, %v32
  %v154 = vmul.f32 %v33, %v33
  %v155 = vmul.f32 %v34, %v34
  %v156 = vmul.f32 %v35, %v35
  %v157 = vmul.f32 %v36, %v36
  %v158 = vmul.f32 %v37, %v37
  %v159 = vmul.f32 %v38, %v38
  %v160 = vmul.f32 %v39, %v39
  %v161 = vmul.f32 %v40, %v40
  %v162 = vmul.f32 %v41, %v41
  %v163 = vmul.f32 %v42, %v42
  %v164 = vmul.f32 %v43, %v43
  %v165 = vmul.f32 %v44, %v44
  %v166 = vmul.f32 %v45, %v45
  %v167 = vmul.f32 %v46, %v46
  %v168 = vmul.f32 %v47, %v47
  %v169 = vmul.f32 %v48, %v48
  %v170 = vmul.f32 %v49, %v49
  %v171 = vmul.f32 %v50, %v50
  %v172 = vmul.f32 %v51, %v51
  %v173 = vadd.f32 %v141, %v145
  %v174 = vadd.f32 %v173, %v149
  %v175 = vadd.f32 %v174, %v153
  %v176 = vadd.f32 %v175, %v157
  %v177 = vadd.f32 %v176, %v161
  %v178 = vadd.f32 %v177, %v165
  %v179 = vadd.f32 %v178, %v169
  %v180 = vrot.slane %v179, 4
  %v181 = vadd.f32 %v179, %v180
  %v182 = vrot.slane %v181, 2
  %v183 = vadd.f32 %v181, %v182
  %v184 = vrot.slane %v183, 1
  %v185 = vadd.f32 %v183, %v184
  %v186 = vadd.f32 %v142, %v146
  %v187 = vadd.f32 %v186, %v150
  %v188 = vadd.f32 %v187, %v154
  %v189 = vadd.f32 %v188, %v158
  %v190 = vadd.f32 %v189, %v162
  %v191 = vadd.f32 %v190, %v166
  %v192 = vadd.f32 %v191, %v170
  %v193 = vrot.slane %v192, 4
  %v194 = vadd.f32 %v192, %v193
  %v195 = vrot.slane %v194, 2
  %v196 = vadd.f32 %v194, %v195
  %v197 = vrot.slane %v196, 1
  %v198 = vadd.f32 %v196, %v197
  %v199 = vadd.f32 %v143, %v147
  %v200 = vadd.f32 %v199, %v151
  %v201 = vadd.f32 %v200, %v155
  %v202 = vadd.f32 %v201, %v159
  %v203 = vadd.f32 %v202, %v163
  %v204 = vadd.f32 %v203, %v167
  %v205 = vadd.f32 %v204, %v171
  %v206 = vrot.slane %v205, 4
  %v207 = vadd.f32 %v205, %v206
  %v208 = vrot.slane %v207, 2
  %v209 = vadd.f32 %v207, %v208
  %v210 = vrot.slane %v209, 1
  %v211 = vadd.f32 %v209, %v210
  %v212 = vadd.f32 %v144, %v148
  %v213 = vadd.f32 %v212, %v152
  %v214 = vadd.f32 %v213, %v156
  %v215 = vadd.f32 %v214, %v160
  %v216 = vadd.f32 %v215, %v164
  %v217 = vadd.f32 %v216, %v168
  %v218 = vadd.f32 %v217, %v172
  %v219 = vrot.slane %v218, 4
  %v220 = vadd.f32 %v218, %v219
  %v221 = vrot.slane %v220, 2
  %v222 = vadd.f32 %v220, %v221
  %v223 = vrot.slane %v222, 1
  %v224 = vadd.f32 %v222, %v223
  %v229 = vcombine.low %v185, %v198
  %v230 = vcombine.low %v211, %v224
  %v232 = vunpack.c.l.s4 1966171168
  %v233 = vunpack.c.0.s8 %v232
  %v234 = vlaneseq
  %v235 = vshrl.u32 %v234, 7
  %v236 = vsub.s32 %v233, %v235
  %v237 = vrot.slane %v229, %v236
  %v239 = vunpack.c.l.s4 1966171168
  %v240 = vunpack.c.0.s8 %v239
  %v241 = vlaneseq
  %v242 = vshrl.u32 %v241, 7
  %v243 = vsub.s32 %v240, %v242
  %v244 = vrot.slane %v230, %v243
  %v245 = vcombine.low %v237, %v244
  %v247 = vunpack.c.l.s4 1966171168
  %v248 = vunpack.c.0.s8 %v247
  %v249 = vlaneseq
  %v250 = vshrl.u32 %v249, 7
  %v251 = vsub.s32 %v248, %v250
  %v252 = vrot.slane %v245, %v251
  %v254 = vadd.f32 %v140, %v252
  %255 = vst.msk [vmem:[%s2] sm:$0xf] %vm138, %v254
  // Predicated region
  $region10: #{generator_forward.24} parent=0 // pred_check
    _
  $region11: #{generator_forward.24} parent=0 // pred_check_branch
    %257 = sbr.rel (0) target = $region13
  $region12: #{generator_forward.24} parent=0 // pred_region
    _
  $region13: #{generator_forward.24} parent=0 // pred_fallthru
    _
  // Predicated region
  $region14: #{generator_forward.24} parent=0 // pred_check
    _
  $region15: #{generator_forward.24} parent=0 // pred_check_branch
    %259 = sbr.rel (0) target = $region17
  $region16: #{generator_forward.24} parent=0 // pred_region
    _
  $region17: #{generator_forward.24} parent=0 // pred_fallthru
    _
  // Predicated region
  $region18: #{generator_forward.24} parent=0 // pred_check
    _
  $region19: #{generator_forward.24} parent=0 // pred_check_branch
    %261 = sbr.rel (0) target = $region21
  $region20: #{generator_forward.24} parent=0 // pred_region
    _
  $region21: #{generator_forward.24} parent=0 // pred_fallthru
    _
  // Predicated region
  $region22: #{generator_forward.24} parent=0 // pred_check
    _
  $region23: #{generator_forward.24} parent=0 // pred_check_branch
    %263 = sbr.rel (0) target = $region25
  $region24: #{generator_forward.24} parent=0 // pred_region
    _
  $region25: #{generator_forward.24} parent=0 // pred_fallthru
    _

// kernel: generator_forward.25
$region0: #{generator_forward.25}
  #allocation0 [shape = 'u32[]', space=smem, size = 0x4, offset = 0x4, fixed_abs, tag = 'smem constant byte address 0x4 - core index']
  #allocation1 [shape = 'u32[144,128]{1,0:T(1,128)}', space=vmem, size = 0x12000, scoped, tag = 'internal scratch']
  %s0 = inlined_call_operand.vmem [shape: f32[64,512], index: 0, kind: input, shape index: {}]
  %s1 = inlined_call_operand.vmem [shape: f32[1,512], index: 1, kind: input, shape index: {}]
  %s2 = inlined_call_operand.vmem [shape: f32[1,512], index: 2, kind: input, shape index: {}]
  %s3 = inlined_call_operand.vmem [shape: bf16[64,512], index: 3, kind: output, shape index: {}]
  %s4 = sld [smem:[#allocation0]]
  $region22: #{generator_forward.25} parent=0
    _
  %s6 = ssub.s32 1, %s4
  %s7 = scalar_select 0, %s6, %s4
  // Predicated region
  $region2: #{generator_forward.25} parent=0 // pred_check
    _
  $region3: #{generator_forward.25} parent=0 // pred_check_branch
    %9 = sbr.rel (0) target = $region5
  $region4: #{generator_forward.25} parent=0 // pred_region
    _
  $region5: #{generator_forward.25} parent=0 // pred_fallthru
    _
  // Predicated region
  $region6: #{generator_forward.25} parent=0 // pred_check
    _
  $region7: #{generator_forward.25} parent=0 // pred_check_branch
    %11 = sbr.rel (0) target = $region9
  $region8: #{generator_forward.25} parent=0 // pred_region
    _
  $region9: #{generator_forward.25} parent=0 // pred_fallthru
    _
  // Predicated region
  $region10: #{generator_forward.25} parent=0 // pred_check
    _
  $region11: #{generator_forward.25} parent=0 // pred_check_branch
    %13 = sbr.rel (0) target = $region13
  $region12: #{generator_forward.25} parent=0 // pred_region
    _
  $region13: #{generator_forward.25} parent=0 // pred_fallthru
    _
  %v14 = vld [vmem:[%s0] sm:$0xff]
  %v15 = vld [vmem:[%s0 + $0x8] sm:$0xff]
  %v16 = vld [vmem:[%s0 + $0x10] sm:$0xff]
  %v17 = vld [vmem:[%s0 + $0x18] sm:$0xff]
  %v18 = vld [vmem:[%s0 + $0x20] sm:$0xff]
  %v19 = vld [vmem:[%s0 + $0x28] sm:$0xff]
  %v20 = vld [vmem:[%s0 + $0x30] sm:$0xff]
  %v21 = vld [vmem:[%s0 + $0x38] sm:$0xff]
  %v22 = vld [vmem:[%s0 + $0x40] sm:$0xff]
  %v23 = vld [vmem:[%s0 + $0x48] sm:$0xff]
  %v24 = vld [vmem:[%s0 + $0x50] sm:$0xff]
  %v25 = vld [vmem:[%s0 + $0x58] sm:$0xff]
  %v26 = vld [vmem:[%s0 + $0x60] sm:$0xff]
  %v27 = vld [vmem:[%s0 + $0x68] sm:$0xff]
  %v28 = vld [vmem:[%s0 + $0x70] sm:$0xff]
  %v29 = vld [vmem:[%s0 + $0x78] sm:$0xff]
  %v30 = vld [vmem:[%s0 + $0x80] sm:$0xff]
  %v31 = vld [vmem:[%s0 + $0x88] sm:$0xff]
  %v32 = vld [vmem:[%s0 + $0x90] sm:$0xff]
  %v33 = vld [vmem:[%s0 + $0x98] sm:$0xff]
  %v34 = vld [vmem:[%s0 + $0xa0] sm:$0xff]
  %v35 = vld [vmem:[%s0 + $0xa8] sm:$0xff]
  %v36 = vld [vmem:[%s0 + $0xb0] sm:$0xff]
  %v37 = vld [vmem:[%s0 + $0xb8] sm:$0xff]
  %v38 = vld [vmem:[%s0 + $0xc0] sm:$0xff]
  %v39 = vld [vmem:[%s0 + $0xc8] sm:$0xff]
  %v40 = vld [vmem:[%s0 + $0xd0] sm:$0xff]
  %v41 = vld [vmem:[%s0 + $0xd8] sm:$0xff]
  %v42 = vld [vmem:[%s0 + $0xe0] sm:$0xff]
  %v43 = vld [vmem:[%s0 + $0xe8] sm:$0xff]
  %v44 = vld [vmem:[%s0 + $0xf0] sm:$0xff]
  %v45 = vld [vmem:[%s0 + $0xf8] sm:$0xff]
  %v46 = vld [vmem:[%s1] sm:$0xf]
  %v48 = vlaneseq
  %v49 = vshrl.u32 %v48, 7
  %v50 = vsub.s32 0, %v49
  %v51 = vrot.slane %v46, %v50
  %v52 = vlaneseq
  %v53 = vshrl.u32 %v52, 7
  %v54 = vsub.s32 1, %v53
  %v55 = vrot.slane %v46, %v54
  %v56 = vlaneseq
  %v57 = vshrl.u32 %v56, 7
  %v58 = vsub.s32 2, %v57
  %v59 = vrot.slane %v46, %v58
  %v60 = vlaneseq
  %v61 = vshrl.u32 %v60, 7
  %v62 = vsub.s32 3, %v61
  %v63 = vrot.slane %v46, %v62
  %v68 = vmul.f32 %v14, %v51
  %v69 = vmul.f32 %v15, %v55
  %v70 = vmul.f32 %v16, %v59
  %v71 = vmul.f32 %v17, %v63
  %v72 = vmul.f32 %v18, %v51
  %v73 = vmul.f32 %v19, %v55
  %v74 = vmul.f32 %v20, %v59
  %v75 = vmul.f32 %v21, %v63
  %v76 = vmul.f32 %v22, %v51
  %v77 = vmul.f32 %v23, %v55
  %v78 = vmul.f32 %v24, %v59
  %v79 = vmul.f32 %v25, %v63
  %v80 = vmul.f32 %v26, %v51
  %v81 = vmul.f32 %v27, %v55
  %v82 = vmul.f32 %v28, %v59
  %v83 = vmul.f32 %v29, %v63
  %v84 = vmul.f32 %v30, %v51
  %v85 = vmul.f32 %v31, %v55
  %v86 = vmul.f32 %v32, %v59
  %v87 = vmul.f32 %v33, %v63
  %v88 = vmul.f32 %v34, %v51
  %v89 = vmul.f32 %v35, %v55
  %v90 = vmul.f32 %v36, %v59
  %v91 = vmul.f32 %v37, %v63
  %v92 = vmul.f32 %v38, %v51
  %v93 = vmul.f32 %v39, %v55
  %v94 = vmul.f32 %v40, %v59
  %v95 = vmul.f32 %v41, %v63
  %v96 = vmul.f32 %v42, %v51
  %v97 = vmul.f32 %v43, %v55
  %v98 = vmul.f32 %v44, %v59
  %v99 = vmul.f32 %v45, %v63
  %v100 = vld [vmem:[%s2] sm:$0xf]
  %v102 = vlaneseq
  %v103 = vshrl.u32 %v102, 7
  %v104 = vsub.s32 0, %v103
  %v105 = vrot.slane %v100, %v104
  %v106 = vlaneseq
  %v107 = vshrl.u32 %v106, 7
  %v108 = vsub.s32 1, %v107
  %v109 = vrot.slane %v100, %v108
  %v110 = vlaneseq
  %v111 = vshrl.u32 %v110, 7
  %v112 = vsub.s32 2, %v111
  %v113 = vrot.slane %v100, %v112
  %v114 = vlaneseq
  %v115 = vshrl.u32 %v114, 7
  %v116 = vsub.s32 3, %v115
  %v117 = vrot.slane %v100, %v116
  %v122 = vadd.f32 %v68, %v105
  %v123 = vadd.f32 %v69, %v109
  %v124 = vadd.f32 %v70, %v113
  %v125 = vadd.f32 %v71, %v117
  %v126 = vadd.f32 %v72, %v105
  %v127 = vadd.f32 %v73, %v109
  %v128 = vadd.f32 %v74, %v113
  %v129 = vadd.f32 %v75, %v117
  %v130 = vadd.f32 %v76, %v105
  %v131 = vadd.f32 %v77, %v109
  %v132 = vadd.f32 %v78, %v113
  %v133 = vadd.f32 %v79, %v117
  %v134 = vadd.f32 %v80, %v105
  %v135 = vadd.f32 %v81, %v109
  %v136 = vadd.f32 %v82, %v113
  %v137 = vadd.f32 %v83, %v117
  %v138 = vadd.f32 %v84, %v105
  %v139 = vadd.f32 %v85, %v109
  %v140 = vadd.f32 %v86, %v113
  %v141 = vadd.f32 %v87, %v117
  %v142 = vadd.f32 %v88, %v105
  %v143 = vadd.f32 %v89, %v109
  %v144 = vadd.f32 %v90, %v113
  %v145 = vadd.f32 %v91, %v117
  %v146 = vadd.f32 %v92, %v105
  %v147 = vadd.f32 %v93, %v109
  %v148 = vadd.f32 %v94, %v113
  %v149 = vadd.f32 %v95, %v117
  %v150 = vadd.f32 %v96, %v105
  %v151 = vadd.f32 %v97, %v109
  %v152 = vadd.f32 %v98, %v113
  %v153 = vadd.f32 %v99, %v117
  %v154 = vmax.f32 %v122, 0.0
  %v155 = vmax.f32 %v123, 0.0
  %v156 = vmax.f32 %v124, 0.0
  %v157 = vmax.f32 %v125, 0.0
  %v158 = vmax.f32 %v126, 0.0
  %v159 = vmax.f32 %v127, 0.0
  %v160 = vmax.f32 %v128, 0.0
  %v161 = vmax.f32 %v129, 0.0
  %v162 = vmax.f32 %v130, 0.0
  %v163 = vmax.f32 %v131, 0.0
  %v164 = vmax.f32 %v132, 0.0
  %v165 = vmax.f32 %v133, 0.0
  %v166 = vmax.f32 %v134, 0.0
  %v167 = vmax.f32 %v135, 0.0
  %v168 = vmax.f32 %v136, 0.0
  %v169 = vmax.f32 %v137, 0.0
  %v170 = vmax.f32 %v138, 0.0
  %v171 = vmax.f32 %v139, 0.0
  %v172 = vmax.f32 %v140, 0.0
  %v173 = vmax.f32 %v141, 0.0
  %v174 = vmax.f32 %v142, 0.0
  %v175 = vmax.f32 %v143, 0.0
  %v176 = vmax.f32 %v144, 0.0
  %v177 = vmax.f32 %v145, 0.0
  %v178 = vmax.f32 %v146, 0.0
  %v179 = vmax.f32 %v147, 0.0
  %v180 = vmax.f32 %v148, 0.0
  %v181 = vmax.f32 %v149, 0.0
  %v182 = vmax.f32 %v150, 0.0
  %v183 = vmax.f32 %v151, 0.0
  %v184 = vmax.f32 %v152, 0.0
  %v185 = vmax.f32 %v153, 0.0
  %v186 = vpack.c.bf16 %v158, %v154
  %v187 = vpack.c.bf16 %v159, %v155
  %v188 = vpack.c.bf16 %v160, %v156
  %v189 = vpack.c.bf16 %v161, %v157
  %v190 = vpack.c.bf16 %v166, %v162
  %v191 = vpack.c.bf16 %v167, %v163
  %v192 = vpack.c.bf16 %v168, %v164
  %v193 = vpack.c.bf16 %v169, %v165
  %v194 = vpack.c.bf16 %v174, %v170
  %v195 = vpack.c.bf16 %v175, %v171
  %v196 = vpack.c.bf16 %v176, %v172
  %v197 = vpack.c.bf16 %v177, %v173
  %v198 = vpack.c.bf16 %v182, %v178
  %v199 = vpack.c.bf16 %v183, %v179
  %v200 = vpack.c.bf16 %v184, %v180
  %v201 = vpack.c.bf16 %v185, %v181
  %v218 = vunpack.c.l.b16 %v186
  %v219 = vunpack.c.l.b16 %v187
  %v220 = vunpack.c.l.b16 %v188
  %v221 = vunpack.c.l.b16 %v189
  %v222 = vunpack.c.h.b16 %v186
  %v223 = vunpack.c.h.b16 %v187
  %v224 = vunpack.c.h.b16 %v188
  %v225 = vunpack.c.h.b16 %v189
  %v226 = vunpack.c.l.b16 %v190
  %v227 = vunpack.c.l.b16 %v191
  %v228 = vunpack.c.l.b16 %v192
  %v229 = vunpack.c.l.b16 %v193
  %v230 = vunpack.c.h.b16 %v190
  %v231 = vunpack.c.h.b16 %v191
  %v232 = vunpack.c.h.b16 %v192
  %v233 = vunpack.c.h.b16 %v193
  %v234 = vunpack.c.l.b16 %v194
  %v235 = vunpack.c.l.b16 %v195
  %v236 = vunpack.c.l.b16 %v196
  %v237 = vunpack.c.l.b16 %v197
  %v238 = vunpack.c.h.b16 %v194
  %v239 = vunpack.c.h.b16 %v195
  %v240 = vunpack.c.h.b16 %v196
  %v241 = vunpack.c.h.b16 %v197
  %v242 = vunpack.c.l.b16 %v198
  %v243 = vunpack.c.l.b16 %v199
  %v244 = vunpack.c.l.b16 %v200
  %v245 = vunpack.c.l.b16 %v201
  %v246 = vunpack.c.h.b16 %v198
  %v247 = vunpack.c.h.b16 %v199
  %v248 = vunpack.c.h.b16 %v200
  %v249 = vunpack.c.h.b16 %v201
  %v250 = vpack.c.b16 %v219, %v218
  %v251 = vpack.c.b16 %v221, %v220
  %v252 = vpack.c.b16 %v223, %v222
  %v253 = vpack.c.b16 %v225, %v224
  %v254 = vpack.c.b16 %v227, %v226
  %v255 = vpack.c.b16 %v229, %v228
  %v256 = vpack.c.b16 %v231, %v230
  %v257 = vpack.c.b16 %v233, %v232
  %v258 = vpack.c.b16 %v235, %v234
  %v259 = vpack.c.b16 %v237, %v236
  %v260 = vpack.c.b16 %v239, %v238
  %v261 = vpack.c.b16 %v241, %v240
  %v262 = vpack.c.b16 %v243, %v242
  %v263 = vpack.c.b16 %v245, %v244
  %v264 = vpack.c.b16 %v247, %v246
  %v265 = vpack.c.b16 %v249, %v248
  %282 = vst [vmem:[%s3] sm:$0xff] %v250
  %283 = vst [vmem:[%s3 + $0x8] sm:$0xff] %v251
  %284 = vst [vmem:[%s3 + $0x10] sm:$0xff] %v252
  %285 = vst [vmem:[%s3 + $0x18] sm:$0xff] %v253
  %286 = vst [vmem:[%s3 + $0x20] sm:$0xff] %v254
  %287 = vst [vmem:[%s3 + $0x28] sm:$0xff] %v255
  %288 = vst [vmem:[%s3 + $0x30] sm:$0xff] %v256
  %289 = vst [vmem:[%s3 + $0x38] sm:$0xff] %v257
  %290 = vst [vmem:[%s3 + $0x40] sm:$0xff] %v258
  %291 = vst [vmem:[%s3 + $0x48] sm:$0xff] %v259
  %292 = vst [vmem:[%s3 + $0x50] sm:$0xff] %v260
  %293 = vst [vmem:[%s3 + $0x58] sm:$0xff] %v261
  %294 = vst [vmem:[%s3 + $0x60] sm:$0xff] %v262
  %295 = vst [vmem:[%s3 + $0x68] sm:$0xff] %v263
  %296 = vst [vmem:[%s3 + $0x70] sm:$0xff] %v264
  %297 = vst [vmem:[%s3 + $0x78] sm:$0xff] %v265
  // Predicated region
  $region14: #{generator_forward.25} parent=0 // pred_check
    _
  $region15: #{generator_forward.25} parent=0 // pred_check_branch
    %299 = sbr.rel (0) target = $region17
  $region16: #{generator_forward.25} parent=0 // pred_region
    _
  $region17: #{generator_forward.25} parent=0 // pred_fallthru
    _
  // Predicated region
  $region18: #{generator_forward.25} parent=0 // pred_check
    _
  $region19: #{generator_forward.25} parent=0 // pred_check_branch
    %301 = sbr.rel (0) target = $region21
  $region20: #{generator_forward.25} parent=0 // pred_region
    _
  $region21: #{generator_forward.25} parent=0 // pred_fallthru
    _

// kernel: generator_forward.26
$region0: #{generator_forward.26}
  #allocation0 [shape = 'u32[]', space=smem, size = 0x4, offset = 0x4, fixed_abs, tag = 'smem constant byte address 0x4 - core index']
  #allocation1 [shape = 'u32[144,128]{1,0:T(1,128)}', space=vmem, size = 0x12000, scoped, tag = 'internal scratch']
  %s0 = inlined_call_operand.vmem [shape: bf16[2048,16], index: 0, kind: input, shape index: {}]
  %s1 = inlined_call_operand.vmem [shape: bf16[16,128], index: 1, kind: input, shape index: {}]
  %s2 = inlined_call_operand.vmem [shape: f32[2048,128], index: 2, kind: output, shape index: {}]
  %s3 = sld [smem:[#allocation0]]
  $region41: #{generator_forward.26} parent=0
    _
  %s5 = ssub.s32 1, %s3
  %s6 = scalar_select 0, %s5, %s3
  loop: start=0, step=1, limit=6
  $region2: #{generator_forward.26} parent=0 // loop_pre_header
    _
  $region3: #{generator_forward.26} parent=0 // loop_header
    %s8 = sphi 0, %s12
    %p9 = scmp.ge.s32.totalorder %s8, 6
    %s15 = sphi 0, %s27
    %s16 = sphi 0, %s23
    %s17 = sphi 0, %s15
    %s18 = sphi 0, %s16
    %s19 = sphi 0, %s17
    %s20 = sphi 0, %s18
    %s30 = sphi 0, %s32
    %s33 = sphi 0, %s30
    %s34 = sphi 0, %s33
    %s50 = sphi 0, %s34
    %s56 = sphi 0, %s58
    %s59 = sphi 0, %s56
    %s60 = sphi 0, %s59
    %s76 = sphi 0, %s60
    %s84 = sphi 0, %s86
    %s87 = sphi 0, %s84
    %s88 = sphi 0, %s87
    %s104 = sphi 0, %s88
  $region4: #{generator_forward.26} parent=0 // loop_header_branch
    %11 = sbr.rel (%p9) target = $region8
  $region5: #{generator_forward.26} parent=0 // loop_body
    %s13 = ssub.s32 %s8, 1
    %s14 = ssub.s32 %s8, 2
    %s21 = sadd.s32 1, %s16
    %p22 = scmp.ge.s32.totalorder %s21, 1
    %s23 = scalar_select %p22, 0, %s21
    %s24 = sadd.s32 1, %s15
    %s25 = scalar_select %p22, %s24, %s15
    %p26 = scmp.ge.s32.totalorder %s25, 4
    %s27 = scalar_select %p26, 0, %s25
    %s28 = ssub.s32 %s15, %s27
    %p29 = scmp.eq.s32.totalorder %s28, 0
    %s31 = sadd.s32 %s30, 1
    %s32 = scalar_select %p29, %s30, %s31
    %p35 = pneg %p29
    %p36 = scmp.eq.s32.totalorder %s8, 3
    %p37 = por %p35, %p36
    %p38 = scmp.ne.s32.totalorder %s30, %s33
    %p39 = scmp.eq.s32.totalorder %s8, 0
    %p40 = por %p38, %p39
    %p41 = scmp.ne.s32.totalorder %s30, %s33
    %p42 = scmp.eq.s32.totalorder %s13, 3
    %p43 = por %p41, %p42
    %p44 = scmp.ne.s32.totalorder %s33, %s34
    %p45 = scmp.eq.s32.totalorder %s13, 0
    %p46 = por %p44, %p45
    %p47 = scmp.ne.s32.totalorder %s33, %s34
    %p48 = scmp.eq.s32.totalorder %s14, 3
    %p49 = por %p47, %p48
    %p51 = scmp.ne.s32.totalorder %s34, %s50
    %p52 = scmp.eq.s32.totalorder %s14, 0
    %p53 = por %p51, %p52
    %s54 = ssub.s32 %s16, %s23
    %p55 = scmp.eq.s32.totalorder %s54, 0
    %s57 = sadd.s32 %s56, 1
    %s58 = scalar_select %p55, %s56, %s57
    %p61 = pneg %p55
    %p62 = scmp.eq.s32.totalorder %s8, 3
    %p63 = por %p61, %p62
    %p64 = scmp.ne.s32.totalorder %s56, %s59
    %p65 = scmp.eq.s32.totalorder %s8, 0
    %p66 = por %p64, %p65
    %p67 = scmp.ne.s32.totalorder %s56, %s59
    %p68 = scmp.eq.s32.totalorder %s13, 3
    %p69 = por %p67, %p68
    %p70 = scmp.ne.s32.totalorder %s59, %s60
    %p71 = scmp.eq.s32.totalorder %s13, 0
    %p72 = por %p70, %p71
    %p73 = scmp.ne.s32.totalorder %s59, %s60
    %p74 = scmp.eq.s32.totalorder %s14, 3
    %p75 = por %p73, %p74
    %p77 = scmp.ne.s32.totalorder %s60, %s76
    %p78 = scmp.eq.s32.totalorder %s14, 0
    %p79 = por %p77, %p78
    %s80 = ssub.s32 %s15, %s27
    %s81 = ssub.s32 %s16, %s23
    %s82 = sor.u32 %s80, %s81
    %p83 = scmp.eq.s32.totalorder %s82, 0
    %s85 = sadd.s32 %s84, 1
    %s86 = scalar_select %p83, %s84, %s85
    %p89 = pneg %p83
    %p90 = scmp.eq.s32.totalorder %s8, 3
    %p91 = por %p89, %p90
    %p92 = scmp.ne.s32.totalorder %s84, %s87
    %p93 = scmp.eq.s32.totalorder %s8, 0
    %p94 = por %p92, %p93
    %p95 = scmp.ne.s32.totalorder %s84, %s87
    %p96 = scmp.eq.s32.totalorder %s13, 3
    %p97 = por %p95, %p96
    %p98 = scmp.ne.s32.totalorder %s87, %s88
    %p99 = scmp.eq.s32.totalorder %s13, 0
    %p100 = por %p98, %p99
    %p101 = scmp.ne.s32.totalorder %s87, %s88
    %p102 = scmp.eq.s32.totalorder %s14, 3
    %p103 = por %p101, %p102
    %p105 = scmp.ne.s32.totalorder %s88, %s104
    %p106 = scmp.eq.s32.totalorder %s14, 0
    %p107 = por %p105, %p106
    %p108 = scmp.le.s32.totalorder 1, %s8
    %p109 = scmp.lt.s32.totalorder %s8, 5
    %p110 = pnand %p108, %p109
    %p111 = pneg %p110
    // Predicated region
    $region9: #{generator_forward.26} parent=5 // pred_check
      _
    $region10: #{generator_forward.26} parent=5 // pred_check_branch
      %113 = sbr.rel (%p110) target = $region12
    $region11: #{generator_forward.26} parent=5 // pred_region
      %s114 = ssub.s32 %s8, 1
      // Predicated region
      $region13: #{generator_forward.26} parent=11 // pred_check
        %p115 = pneg %p72
      $region14: #{generator_forward.26} parent=11 // pred_check_branch
        %117 = sbr.rel (%p115) target = $region16
      $region15: #{generator_forward.26} parent=11 // pred_region
        %p118 = scmp.lt.s32.totalorder %s18, 0
        %s119 = scalar_select %p118, %s18, 0
        %s120 = smul.addr %s119, 4
        %s121 = scalar_lea.vmem %s1, %s120
      $region16: #{generator_forward.26} parent=11 // pred_fallthru
        _
    $region12: #{generator_forward.26} parent=5 // pred_fallthru
      _
    %p122 = scmp.lt.s32.totalorder %s8, 4
    // Predicated region
    $region17: #{generator_forward.26} parent=5 // pred_check
      %p123 = pneg %p122
    $region18: #{generator_forward.26} parent=5 // pred_check_branch
      %125 = sbr.rel (%p123) target = $region20
    $region19: #{generator_forward.26} parent=5 // pred_region
      // Predicated region
      $region21: #{generator_forward.26} parent=19 // pred_check
        %p126 = pneg %p40
      $region22: #{generator_forward.26} parent=19 // pred_check_branch
        %128 = sbr.rel (%p126) target = $region24
      $region23: #{generator_forward.26} parent=19 // pred_region
        %s129 = smul.u32 64, %s15
        %p130 = scmp.lt.s32.totalorder %s129, 255
        %s131 = scalar_select %p130, %s129, 255
        %s132 = smul.addr %s131, 4
        %s133 = scalar_lea.vmem %s0, %s132
        %s134 = smul.u32 64, %s15
      $region24: #{generator_forward.26} parent=19 // pred_fallthru
        _
    $region20: #{generator_forward.26} parent=5 // pred_fallthru
      _
    %p135 = scmp.le.s32.totalorder 1, %s8
    %p136 = scmp.lt.s32.totalorder %s8, 5
    %p137 = pnand %p135, %p136
    %p138 = pneg %p137
    // Predicated region
    $region25: #{generator_forward.26} parent=5 // pred_check
      _
    $region26: #{generator_forward.26} parent=5 // pred_check_branch
      %140 = sbr.rel (%p137) target = $region28
    $region27: #{generator_forward.26} parent=5 // pred_region
      %s141 = ssub.s32 %s8, 1
      %s142 = smul.u32 64, %s17
      %p143 = scmp.lt.s32.totalorder %s142, 255
      %s144 = scalar_select %p143, %s142, 255
      %s145 = smul.addr %s144, 4
      %s146 = scalar_lea.vmem %s0, %s145
      %p147 = pneg %p46
      %p148 = pneg %p43
      %p149 = scmp.lt.s32.totalorder %s18, 0
      %s150 = scalar_select %p149, %s18, 0
      %s151 = smul.addr %s150, 4
      %s152 = scalar_lea.vmem %s1, %s151
      %p153 = pneg %p72
      %p154 = pneg %p69
      %p155 = pneg %p100
      %p156 = pneg %p97
      %s157 = smul.u32 64, %s17
      %p158 = scmp.lt.s32.totalorder %s157, 255
      %s159 = scalar_select %p158, %s157, 255
      %p160 = scmp.lt.s32.totalorder %s18, 0
      %s161 = scalar_select %p160, %s18, 0
      %s162 = sadd.s32 %s161, %s159
      %s163 = smul.addr %s162, 8
      %s164 = scalar_lea.vmem %s2, %s163
      %s165 = smul.u32 64, %s17
      %p166 = scmp.lt.s32.totalorder %s165, 255
      %s167 = scalar_select %p166, %s165, 255
      %s168 = smul.addr %s167, 4
      %s169 = scalar_lea.vmem %s0, %s168
      %s170 = smul.u32 64, %s17
      %p171 = scmp.lt.s32.totalorder %s18, 0
      %s172 = scalar_select %p171, %s18, 0
      %s173 = smul.addr %s172, 4
      %s174 = scalar_lea.vmem %s1, %s173
      %s175 = smul.u32 64, %s17
      %p176 = scmp.lt.s32.totalorder %s175, 255
      %s177 = scalar_select %p176, %s175, 255
      %p178 = scmp.lt.s32.totalorder %s18, 0
      %s179 = scalar_select %p178, %s18, 0
      %s180 = sadd.s32 %s179, %s177
      %s181 = smul.addr %s180, 8
      %s182 = scalar_lea.vmem %s2, %s181
      %s183 = smul.u32 64, %s17
      %v185 = vld [vmem:[%s169] sm:$0xf]
      %v186 = vld [vmem:[%s169 + $0x4] sm:$0xf]
      %v187 = vld [vmem:[%s169 + $0x8] sm:$0xf]
      %v188 = vld [vmem:[%s169 + $0xc] sm:$0xf]
      %v189 = vld [vmem:[%s169 + $0x10] sm:$0xf]
      %v190 = vld [vmem:[%s169 + $0x14] sm:$0xf]
      %v191 = vld [vmem:[%s169 + $0x18] sm:$0xf]
      %v192 = vld [vmem:[%s169 + $0x1c] sm:$0xf]
      %v193 = vld [vmem:[%s169 + $0x20] sm:$0xf]
      %v194 = vld [vmem:[%s169 + $0x24] sm:$0xf]
      %v195 = vld [vmem:[%s169 + $0x28] sm:$0xf]
      %v196 = vld [vmem:[%s169 + $0x2c] sm:$0xf]
      %v197 = vld [vmem:[%s169 + $0x30] sm:$0xf]
      %v198 = vld [vmem:[%s169 + $0x34] sm:$0xf]
      %v199 = vld [vmem:[%s169 + $0x38] sm:$0xf]
      %v200 = vld [vmem:[%s169 + $0x3c] sm:$0xf]
      %v201 = vld [vmem:[%s169 + $0x40] sm:$0xf]
      %v202 = vld [vmem:[%s169 + $0x44] sm:$0xf]
      %v203 = vld [vmem:[%s169 + $0x48] sm:$0xf]
      %v204 = vld [vmem:[%s169 + $0x4c] sm:$0xf]
      %v205 = vld [vmem:[%s169 + $0x50] sm:$0xf]
      %v206 = vld [vmem:[%s169 + $0x54] sm:$0xf]
      %v207 = vld [vmem:[%s169 + $0x58] sm:$0xf]
      %v208 = vld [vmem:[%s169 + $0x5c] sm:$0xf]
      %v209 = vld [vmem:[%s169 + $0x60] sm:$0xf]
      %v210 = vld [vmem:[%s169 + $0x64] sm:$0xf]
      %v211 = vld [vmem:[%s169 + $0x68] sm:$0xf]
      %v212 = vld [vmem:[%s169 + $0x6c] sm:$0xf]
      %v213 = vld [vmem:[%s169 + $0x70] sm:$0xf]
      %v214 = vld [vmem:[%s169 + $0x74] sm:$0xf]
      %v215 = vld [vmem:[%s169 + $0x78] sm:$0xf]
      %v216 = vld [vmem:[%s169 + $0x7c] sm:$0xf]
      %v217 = vld [vmem:[%s169 + $0x80] sm:$0xf]
      %v218 = vld [vmem:[%s169 + $0x84] sm:$0xf]
      %v219 = vld [vmem:[%s169 + $0x88] sm:$0xf]
      %v220 = vld [vmem:[%s169 + $0x8c] sm:$0xf]
      %v221 = vld [vmem:[%s169 + $0x90] sm:$0xf]
      %v222 = vld [vmem:[%s169 + $0x94] sm:$0xf]
      %v223 = vld [vmem:[%s169 + $0x98] sm:$0xf]
      %v224 = vld [vmem:[%s169 + $0x9c] sm:$0xf]
      %v225 = vld [vmem:[%s169 + $0xa0] sm:$0xf]
      %v226 = vld [vmem:[%s169 + $0xa4] sm:$0xf]
      %v227 = vld [vmem:[%s169 + $0xa8] sm:$0xf]
      %v228 = vld [vmem:[%s169 + $0xac] sm:$0xf]
      %v229 = vld [vmem:[%s169 + $0xb0] sm:$0xf]
      %v230 = vld [vmem:[%s169 + $0xb4] sm:$0xf]
      %v231 = vld [vmem:[%s169 + $0xb8] sm:$0xf]
      %v232 = vld [vmem:[%s169 + $0xbc] sm:$0xf]
      %v233 = vld [vmem:[%s169 + $0xc0] sm:$0xf]
      %v234 = vld [vmem:[%s169 + $0xc4] sm:$0xf]
      %v235 = vld [vmem:[%s169 + $0xc8] sm:$0xf]
      %v236 = vld [vmem:[%s169 + $0xcc] sm:$0xf]
      %v237 = vld [vmem:[%s169 + $0xd0] sm:$0xf]
      %v238 = vld [vmem:[%s169 + $0xd4] sm:$0xf]
      %v239 = vld [vmem:[%s169 + $0xd8] sm:$0xf]
      %v240 = vld [vmem:[%s169 + $0xdc] sm:$0xf]
      %v241 = vld [vmem:[%s169 + $0xe0] sm:$0xf]
      %v242 = vld [vmem:[%s169 + $0xe4] sm:$0xf]
      %v243 = vld [vmem:[%s169 + $0xe8] sm:$0xf]
      %v244 = vld [vmem:[%s169 + $0xec] sm:$0xf]
      %v245 = vld [vmem:[%s169 + $0xf0] sm:$0xf]
      %v246 = vld [vmem:[%s169 + $0xf4] sm:$0xf]
      %v247 = vld [vmem:[%s169 + $0xf8] sm:$0xf]
      %v248 = vld [vmem:[%s169 + $0xfc] sm:$0xf]
      %v249 = vld [vmem:[%s174] sm:$0xf]
      %v250 = vld [vmem:[%s174 + $0x4] sm:$0xf]
      %v315 = vunpack.c.l.b16 %v185
      %v316 = vunpack.c.l.b16 %v186
      %v317 = vunpack.c.l.b16 %v187
      %v318 = vunpack.c.l.b16 %v188
      %v319 = vunpack.c.l.b16 %v189
      %v320 = vunpack.c.l.b16 %v190
      %v321 = vunpack.c.l.b16 %v191
      %v322 = vunpack.c.l.b16 %v192
      %v323 = vunpack.c.l.b16 %v193
      %v324 = vunpack.c.l.b16 %v194
      %v325 = vunpack.c.l.b16 %v195
      %v326 = vunpack.c.l.b16 %v196
      %v327 = vunpack.c.l.b16 %v197
      %v328 = vunpack.c.l.b16 %v198
      %v329 = vunpack.c.l.b16 %v199
      %v330 = vunpack.c.l.b16 %v200
      %v331 = vunpack.c.l.b16 %v201
      %v332 = vunpack.c.l.b16 %v202
      %v333 = vunpack.c.l.b16 %v203
      %v334 = vunpack.c.l.b16 %v204
      %v335 = vunpack.c.l.b16 %v205
      %v336 = vunpack.c.l.b16 %v206
      %v337 = vunpack.c.l.b16 %v207
      %v338 = vunpack.c.l.b16 %v208
      %v339 = vunpack.c.l.b16 %v209
      %v340 = vunpack.c.l.b16 %v210
      %v341 = vunpack.c.l.b16 %v211
      %v342 = vunpack.c.l.b16 %v212
      %v343 = vunpack.c.l.b16 %v213
      %v344 = vunpack.c.l.b16 %v214
      %v345 = vunpack.c.l.b16 %v215
      %v346 = vunpack.c.l.b16 %v216
      %v347 = vunpack.c.l.b16 %v217
      %v348 = vunpack.c.l.b16 %v218
      %v349 = vunpack.c.l.b16 %v219
      %v350 = vunpack.c.l.b16 %v220
      %v351 = vunpack.c.l.b16 %v221
      %v352 = vunpack.c.l.b16 %v222
      %v353 = vunpack.c.l.b16 %v223
      %v354 = vunpack.c.l.b16 %v224
      %v355 = vunpack.c.l.b16 %v225
      %v356 = vunpack.c.l.b16 %v226
      %v357 = vunpack.c.l.b16 %v227
      %v358 = vunpack.c.l.b16 %v228
      %v359 = vunpack.c.l.b16 %v229
      %v360 = vunpack.c.l.b16 %v230
      %v361 = vunpack.c.l.b16 %v231
      %v362 = vunpack.c.l.b16 %v232
      %v363 = vunpack.c.l.b16 %v233
      %v364 = vunpack.c.l.b16 %v234
      %v365 = vunpack.c.l.b16 %v235
      %v366 = vunpack.c.l.b16 %v236
      %v367 = vunpack.c.l.b16 %v237
      %v368 = vunpack.c.l.b16 %v238
      %v369 = vunpack.c.l.b16 %v239
      %v370 = vunpack.c.l.b16 %v240
      %v371 = vunpack.c.l.b16 %v241
      %v372 = vunpack.c.l.b16 %v242
      %v373 = vunpack.c.l.b16 %v243
      %v374 = vunpack.c.l.b16 %v244
      %v375 = vunpack.c.l.b16 %v245
      %v376 = vunpack.c.l.b16 %v246
      %v377 = vunpack.c.l.b16 %v247
      %v378 = vunpack.c.l.b16 %v248
      %v379 = vpack.c.b16 %v316, %v315
      %v380 = vpack.c.b16 %v318, %v317
      %v381 = vpack.c.b16 %v320, %v319
      %v382 = vpack.c.b16 %v322, %v321
      %v383 = vpack.c.b16 %v324, %v323
      %v384 = vpack.c.b16 %v326, %v325
      %v385 = vpack.c.b16 %v328, %v327
      %v386 = vpack.c.b16 %v330, %v329
      %v387 = vpack.c.b16 %v332, %v331
      %v388 = vpack.c.b16 %v334, %v333
      %v389 = vpack.c.b16 %v336, %v335
      %v390 = vpack.c.b16 %v338, %v337
      %v391 = vpack.c.b16 %v340, %v339
      %v392 = vpack.c.b16 %v342, %v341
      %v393 = vpack.c.b16 %v344, %v343
      %v394 = vpack.c.b16 %v346, %v345
      %v395 = vpack.c.b16 %v348, %v347
      %v396 = vpack.c.b16 %v350, %v349
      %v397 = vpack.c.b16 %v352, %v351
      %v398 = vpack.c.b16 %v354, %v353
      %v399 = vpack.c.b16 %v356, %v355
      %v400 = vpack.c.b16 %v358, %v357
      %v401 = vpack.c.b16 %v360, %v359
      %v402 = vpack.c.b16 %v362, %v361
      %v403 = vpack.c.b16 %v364, %v363
      %v404 = vpack.c.b16 %v366, %v365
      %v405 = vpack.c.b16 %v368, %v367
      %v406 = vpack.c.b16 %v370, %v369
      %v407 = vpack.c.b16 %v372, %v371
      %v408 = vpack.c.b16 %v374, %v373
      %v409 = vpack.c.b16 %v376, %v375
      %v410 = vpack.c.b16 %v378, %v377
      %v413 = vunpack.c.l.b16 %v249
      %v414 = vunpack.c.l.b16 %v250
      %v415 = vpack.c.b16 %v414, %v413
      %vm417 = vcmask 130048
      %v419 = vsel %vm417, %v379, 0
      %v422 = vsel %vm417, %v380, 0
      %v425 = vsel %vm417, %v381, 0
      %v428 = vsel %vm417, %v382, 0
      %v431 = vsel %vm417, %v383, 0
      %v434 = vsel %vm417, %v384, 0
      %v437 = vsel %vm417, %v385, 0
      %v440 = vsel %vm417, %v386, 0
      %v443 = vsel %vm417, %v387, 0
      %v446 = vsel %vm417, %v388, 0
      %v449 = vsel %vm417, %v389, 0
      %v452 = vsel %vm417, %v390, 0
      %v455 = vsel %vm417, %v391, 0
      %v458 = vsel %vm417, %v392, 0
      %v461 = vsel %vm417, %v393, 0
      %v464 = vsel %vm417, %v394, 0
      %v467 = vsel %vm417, %v395, 0
      %v470 = vsel %vm417, %v396, 0
      %v473 = vsel %vm417, %v397, 0
      %v476 = vsel %vm417, %v398, 0
      %v479 = vsel %vm417, %v399, 0
      %v482 = vsel %vm417, %v400, 0
      %v485 = vsel %vm417, %v401, 0
      %v488 = vsel %vm417, %v402, 0
      %v491 = vsel %vm417, %v403, 0
      %v494 = vsel %vm417, %v404, 0
      %v497 = vsel %vm417, %v405, 0
      %v500 = vsel %vm417, %v406, 0
      %v503 = vsel %vm417, %v407, 0
      %v506 = vsel %vm417, %v408, 0
      %v509 = vsel %vm417, %v409, 0
      %v512 = vsel %vm417, %v410, 0
      %514 = vmatprep.subr.bf16.mxu0 0
      %515 = vmatpush1.bf16.msra.mxu0 %v415
      %516 = vmatprep.subr.bf16.mxu0 0
      %517 = vmatpush1.bf16.msra.mxu0 0
      %518 = vmatprep.subr.bf16.mxu0 0
      %519 = vmatpush1.bf16.msra.mxu0 0
      %520 = vmatprep.subr.bf16.mxu0 0
      %521 = vmatpush1.bf16.msra.mxu0 0
      %522 = vmatprep.subr.bf16.mxu0 0
      %523 = vmatpush1.bf16.msra.mxu0 0
      %524 = vmatprep.subr.bf16.mxu0 0
      %525 = vmatpush1.bf16.msra.mxu0 0
      %526 = vmatprep.subr.bf16.mxu0 0
      %527 = vmatpush1.bf16.msra.mxu0 0
      %528 = vmatprep.subr.bf16.mxu0 0
      %529 = vmatpush1.bf16.msra.mxu0 0
      %530 = vmatprep.subr.bf16.mxu0 0
      %531 = vmatpush1.bf16.msra.mxu0 0
      %532 = vmatprep.subr.bf16.mxu0 0
      %533 = vmatpush1.bf16.msra.mxu0 0
      %534 = vmatprep.subr.bf16.mxu0 0
      %535 = vmatpush1.bf16.msra.mxu0 0
      %536 = vmatprep.subr.bf16.mxu0 0
      %537 = vmatpush1.bf16.msra.mxu0 0
      %538 = vmatprep.subr.bf16.mxu0 0
      %539 = vmatpush1.bf16.msra.mxu0 0
      %540 = vmatprep.subr.bf16.mxu0 0
      %541 = vmatpush1.bf16.msra.mxu0 0
      %542 = vmatprep.subr.bf16.mxu0 0
      %543 = vmatpush1.bf16.msra.mxu0 0
      %544 = vmatprep.subr.bf16.mxu0 0
      %545 = vmatpush1.bf16.msra.mxu0 0
      %546 = vmatprep.mubr.bf16.mxu0 0
      %547 = vmatmul.mubr.bf16.gmra.mrb[0].mxu0 %v419
      %v548 = vpop.f32.mrb[0].mxu0
      %v549 = vadd.f32 0.0, %v548
      %v550 = vpop.f32.mrb[0].mxu0
      %v551 = vpop.f32.mrb[0].mxu0
      %v552 = vadd.f32 0.0, %v551
      %v553 = vpop.f32.mrb[0].mxu0
      %554 = vmatprep.mubr.bf16.mxu0 0
      %555 = vmatmul.mubr.bf16.gmra.mrb[0].mxu0 %v422
      %v556 = vpop.f32.mrb[0].mxu0
      %v557 = vadd.f32 0.0, %v556
      %v558 = vpop.f32.mrb[0].mxu0
      %v559 = vpop.f32.mrb[0].mxu0
      %v560 = vadd.f32 0.0, %v559
      %v561 = vpop.f32.mrb[0].mxu0
      %562 = vmatprep.mubr.bf16.mxu0 0
      %563 = vmatmul.mubr.bf16.gmra.mrb[0].mxu0 %v425
      %v564 = vpop.f32.mrb[0].mxu0
      %v565 = vadd.f32 0.0, %v564
      %v566 = vpop.f32.mrb[0].mxu0
      %v567 = vpop.f32.mrb[0].mxu0
      %v568 = vadd.f32 0.0, %v567
      %v569 = vpop.f32.mrb[0].mxu0
      %570 = vmatprep.mubr.bf16.mxu0 0
      %571 = vmatmul.mubr.bf16.gmra.mrb[0].mxu0 %v428
      %v572 = vpop.f32.mrb[0].mxu0
      %v573 = vadd.f32 0.0, %v572
      %v574 = vpop.f32.mrb[0].mxu0
      %v575 = vpop.f32.mrb[0].mxu0
      %v576 = vadd.f32 0.0, %v575
      %v577 = vpop.f32.mrb[0].mxu0
      %578 = vmatprep.mubr.bf16.mxu0 0
      %579 = vmatmul.mubr.bf16.gmra.mrb[0].mxu0 %v431
      %v580 = vpop.f32.mrb[0].mxu0
      %v581 = vadd.f32 0.0, %v580
      %v582 = vpop.f32.mrb[0].mxu0
      %v583 = vpop.f32.mrb[0].mxu0
      %v584 = vadd.f32 0.0, %v583
      %v585 = vpop.f32.mrb[0].mxu0
      %586 = vmatprep.mubr.bf16.mxu0 0
      %587 = vmatmul.mubr.bf16.gmra.mrb[0].mxu0 %v434
      %v588 = vpop.f32.mrb[0].mxu0
      %v589 = vadd.f32 0.0, %v588
      %v590 = vpop.f32.mrb[0].mxu0
      %v591 = vpop.f32.mrb[0].mxu0
      %v592 = vadd.f32 0.0, %v591
      %v593 = vpop.f32.mrb[0].mxu0
      %594 = vmatprep.mubr.bf16.mxu0 0
      %595 = vmatmul.mubr.bf16.gmra.mrb[0].mxu0 %v437
      %v596 = vpop.f32.mrb[0].mxu0
      %v597 = vadd.f32 0.0, %v596
      %v598 = vpop.f32.mrb[0].mxu0
      %v599 = vpop.f32.mrb[0].mxu0
      %v600 = vadd.f32 0.0, %v599
      %v601 = vpop.f32.mrb[0].mxu0
      %602 = vmatprep.mubr.bf16.mxu0 0
      %603 = vmatmul.mubr.bf16.gmra.mrb[0].mxu0 %v440
      %v604 = vpop.f32.mrb[0].mxu0
      %v605 = vadd.f32 0.0, %v604
      %v606 = vpop.f32.mrb[0].mxu0
      %v607 = vpop.f32.mrb[0].mxu0
      %v608 = vadd.f32 0.0, %v607
      %v609 = vpop.f32.mrb[0].mxu0
      %610 = vmatprep.mubr.bf16.mxu0 0
      %611 = vmatmul.mubr.bf16.gmra.mrb[0].mxu0 %v443
      %v612 = vpop.f32.mrb[0].mxu0
      %v613 = vadd.f32 0.0, %v612
      %v614 = vpop.f32.mrb[0].mxu0
      %v615 = vpop.f32.mrb[0].mxu0
      %v616 = vadd.f32 0.0, %v615
      %v617 = vpop.f32.mrb[0].mxu0
      %618 = vmatprep.mubr.bf16.mxu0 0
      %619 = vmatmul.mubr.bf16.gmra.mrb[0].mxu0 %v446
      %v620 = vpop.f32.mrb[0].mxu0
      %v621 = vadd.f32 0.0, %v620
      %v622 = vpop.f32.mrb[0].mxu0
      %v623 = vpop.f32.mrb[0].mxu0
      %v624 = vadd.f32 0.0, %v623
      %v625 = vpop.f32.mrb[0].mxu0
      %626 = vmatprep.mubr.bf16.mxu0 0
      %627 = vmatmul.mubr.bf16.gmra.mrb[0].mxu0 %v449
      %v628 = vpop.f32.mrb[0].mxu0
      %v629 = vadd.f32 0.0, %v628
      %v630 = vpop.f32.mrb[0].mxu0
      %v631 = vpop.f32.mrb[0].mxu0
      %v632 = vadd.f32 0.0, %v631
      %v633 = vpop.f32.mrb[0].mxu0
      %634 = vmatprep.mubr.bf16.mxu0 0
      %635 = vmatmul.mubr.bf16.gmra.mrb[0].mxu0 %v452
      %v636 = vpop.f32.mrb[0].mxu0
      %v637 = vadd.f32 0.0, %v636
      %v638 = vpop.f32.mrb[0].mxu0
      %v639 = vpop.f32.mrb[0].mxu0
      %v640 = vadd.f32 0.0, %v639
      %v641 = vpop.f32.mrb[0].mxu0
      %642 = vmatprep.mubr.bf16.mxu0 0
      %643 = vmatmul.mubr.bf16.gmra.mrb[0].mxu0 %v455
      %v644 = vpop.f32.mrb[0].mxu0
      %v645 = vadd.f32 0.0, %v644
      %v646 = vpop.f32.mrb[0].mxu0
      %v647 = vpop.f32.mrb[0].mxu0
      %v648 = vadd.f32 0.0, %v647
      %v649 = vpop.f32.mrb[0].mxu0
      %650 = vmatprep.mubr.bf16.mxu0 0
      %651 = vmatmul.mubr.bf16.gmra.mrb[0].mxu0 %v458
      %v652 = vpop.f32.mrb[0].mxu0
      %v653 = vadd.f32 0.0, %v652
      %v654 = vpop.f32.mrb[0].mxu0
      %v655 = vpop.f32.mrb[0].mxu0
      %v656 = vadd.f32 0.0, %v655
      %v657 = vpop.f32.mrb[0].mxu0
      %658 = vmatprep.mubr.bf16.mxu0 0
      %659 = vmatmul.mubr.bf16.gmra.mrb[0].mxu0 %v461
      %v660 = vpop.f32.mrb[0].mxu0
      %v661 = vadd.f32 0.0, %v660
      %v662 = vpop.f32.mrb[0].mxu0
      %v663 = vpop.f32.mrb[0].mxu0
      %v664 = vadd.f32 0.0, %v663
      %v665 = vpop.f32.mrb[0].mxu0
      %666 = vmatprep.mubr.bf16.mxu0 0
      %667 = vmatmul.mubr.bf16.gmra.mrb[0].mxu0 %v464
      %v668 = vpop.f32.mrb[0].mxu0
      %v669 = vadd.f32 0.0, %v668
      %v670 = vpop.f32.mrb[0].mxu0
      %v671 = vpop.f32.mrb[0].mxu0
      %v672 = vadd.f32 0.0, %v671
      %v673 = vpop.f32.mrb[0].mxu0
      %674 = vmatprep.mubr.bf16.mxu0 0
      %675 = vmatmul.mubr.bf16.gmra.mrb[0].mxu0 %v467
      %v676 = vpop.f32.mrb[0].mxu0
      %v677 = vadd.f32 0.0, %v676
      %v678 = vpop.f32.mrb[0].mxu0
      %v679 = vpop.f32.mrb[0].mxu0
      %v680 = vadd.f32 0.0, %v679
      %v681 = vpop.f32.mrb[0].mxu0
      %682 = vmatprep.mubr.bf16.mxu0 0
      %683 = vmatmul.mubr.bf16.gmra.mrb[0].mxu0 %v470
      %v684 = vpop.f32.mrb[0].mxu0
      %v685 = vadd.f32 0.0, %v684
      %v686 = vpop.f32.mrb[0].mxu0
      %v687 = vpop.f32.mrb[0].mxu0
      %v688 = vadd.f32 0.0, %v687
      %v689 = vpop.f32.mrb[0].mxu0
      %690 = vmatprep.mubr.bf16.mxu0 0
      %691 = vmatmul.mubr.bf16.gmra.mrb[0].mxu0 %v473
      %v692 = vpop.f32.mrb[0].mxu0
      %v693 = vadd.f32 0.0, %v692
      %v694 = vpop.f32.mrb[0].mxu0
      %v695 = vpop.f32.mrb[0].mxu0
      %v696 = vadd.f32 0.0, %v695
      %v697 = vpop.f32.mrb[0].mxu0
      %698 = vmatprep.mubr.bf16.mxu0 0
      %699 = vmatmul.mubr.bf16.gmra.mrb[0].mxu0 %v476
      %v700 = vpop.f32.mrb[0].mxu0
      %v701 = vadd.f32 0.0, %v700
      %v702 = vpop.f32.mrb[0].mxu0
      %v703 = vpop.f32.mrb[0].mxu0
      %v704 = vadd.f32 0.0, %v703
      %v705 = vpop.f32.mrb[0].mxu0
      %706 = vmatprep.mubr.bf16.mxu0 0
      %707 = vmatmul.mubr.bf16.gmra.mrb[0].mxu0 %v479
      %v708 = vpop.f32.mrb[0].mxu0
      %v709 = vadd.f32 0.0, %v708
      %v710 = vpop.f32.mrb[0].mxu0
      %v711 = vpop.f32.mrb[0].mxu0
      %v712 = vadd.f32 0.0, %v711
      %v713 = vpop.f32.mrb[0].mxu0
      %714 = vmatprep.mubr.bf16.mxu0 0
      %715 = vmatmul.mubr.bf16.gmra.mrb[0].mxu0 %v482
      %v716 = vpop.f32.mrb[0].mxu0
      %v717 = vadd.f32 0.0, %v716
      %v718 = vpop.f32.mrb[0].mxu0
      %v719 = vpop.f32.mrb[0].mxu0
      %v720 = vadd.f32 0.0, %v719
      %v721 = vpop.f32.mrb[0].mxu0
      %722 = vmatprep.mubr.bf16.mxu0 0
      %723 = vmatmul.mubr.bf16.gmra.mrb[0].mxu0 %v485
      %v724 = vpop.f32.mrb[0].mxu0
      %v725 = vadd.f32 0.0, %v724
      %v726 = vpop.f32.mrb[0].mxu0
      %v727 = vpop.f32.mrb[0].mxu0
      %v728 = vadd.f32 0.0, %v727
      %v729 = vpop.f32.mrb[0].mxu0
      %730 = vmatprep.mubr.bf16.mxu0 0
      %731 = vmatmul.mubr.bf16.gmra.mrb[0].mxu0 %v488
      %v732 = vpop.f32.mrb[0].mxu0
      %v733 = vadd.f32 0.0, %v732
      %v734 = vpop.f32.mrb[0].mxu0
      %v735 = vpop.f32.mrb[0].mxu0
      %v736 = vadd.f32 0.0, %v735
      %v737 = vpop.f32.mrb[0].mxu0
      %738 = vmatprep.mubr.bf16.mxu0 0
      %739 = vmatmul.mubr.bf16.gmra.mrb[0].mxu0 %v491
      %v740 = vpop.f32.mrb[0].mxu0
      %v741 = vadd.f32 0.0, %v740
      %v742 = vpop.f32.mrb[0].mxu0
      %v743 = vpop.f32.mrb[0].mxu0
      %v744 = vadd.f32 0.0, %v743
      %v745 = vpop.f32.mrb[0].mxu0
      %746 = vmatprep.mubr.bf16.mxu0 0
      %747 = vmatmul.mubr.bf16.gmra.mrb[0].mxu0 %v494
      %v748 = vpop.f32.mrb[0].mxu0
      %v749 = vadd.f32 0.0, %v748
      %v750 = vpop.f32.mrb[0].mxu0
      %v751 = vpop.f32.mrb[0].mxu0
      %v752 = vadd.f32 0.0, %v751
      %v753 = vpop.f32.mrb[0].mxu0
      %754 = vmatprep.mubr.bf16.mxu0 0
      %755 = vmatmul.mubr.bf16.gmra.mrb[0].mxu0 %v497
      %v756 = vpop.f32.mrb[0].mxu0
      %v757 = vadd.f32 0.0, %v756
      %v758 = vpop.f32.mrb[0].mxu0
      %v759 = vpop.f32.mrb[0].mxu0
      %v760 = vadd.f32 0.0, %v759
      %v761 = vpop.f32.mrb[0].mxu0
      %762 = vmatprep.mubr.bf16.mxu0 0
      %763 = vmatmul.mubr.bf16.gmra.mrb[0].mxu0 %v500
      %v764 = vpop.f32.mrb[0].mxu0
      %v765 = vadd.f32 0.0, %v764
      %v766 = vpop.f32.mrb[0].mxu0
      %v767 = vpop.f32.mrb[0].mxu0
      %v768 = vadd.f32 0.0, %v767
      %v769 = vpop.f32.mrb[0].mxu0
      %770 = vmatprep.mubr.bf16.mxu0 0
      %771 = vmatmul.mubr.bf16.gmra.mrb[0].mxu0 %v503
      %v772 = vpop.f32.mrb[0].mxu0
      %v773 = vadd.f32 0.0, %v772
      %v774 = vpop.f32.mrb[0].mxu0
      %v775 = vpop.f32.mrb[0].mxu0
      %v776 = vadd.f32 0.0, %v775
      %v777 = vpop.f32.mrb[0].mxu0
      %778 = vmatprep.mubr.bf16.mxu0 0
      %779 = vmatmul.mubr.bf16.gmra.mrb[0].mxu0 %v506
      %v780 = vpop.f32.mrb[0].mxu0
      %v781 = vadd.f32 0.0, %v780
      %v782 = vpop.f32.mrb[0].mxu0
      %v783 = vpop.f32.mrb[0].mxu0
      %v784 = vadd.f32 0.0, %v783
      %v785 = vpop.f32.mrb[0].mxu0
      %786 = vmatprep.mubr.bf16.mxu0 0
      %787 = vmatmul.mubr.bf16.gmra.mrb[0].mxu0 %v509
      %v788 = vpop.f32.mrb[0].mxu0
      %v789 = vadd.f32 0.0, %v788
      %v790 = vpop.f32.mrb[0].mxu0
      %v791 = vpop.f32.mrb[0].mxu0
      %v792 = vadd.f32 0.0, %v791
      %v793 = vpop.f32.mrb[0].mxu0
      %794 = vmatprep.mubr.bf16.mxu0 0
      %795 = vmatmul.mubr.bf16.gmra.mrb[0].mxu0 %v512
      %v796 = vpop.f32.mrb[0].mxu0
      %v797 = vadd.f32 0.0, %v796
      %v798 = vpop.f32.mrb[0].mxu0
      %v799 = vpop.f32.mrb[0].mxu0
      %v800 = vadd.f32 0.0, %v799
      %v801 = vpop.f32.mrb[0].mxu0
      %802 = vdwg.mxu0
      %803 = vst [vmem:[%s182] sm:$0xff] %v549
      %804 = vst [vmem:[%s182 + $0x8] sm:$0xff] %v552
      %805 = vst [vmem:[%s182 + $0x10] sm:$0xff] %v557
      %806 = vst [vmem:[%s182 + $0x18] sm:$0xff] %v560
      %807 = vst [vmem:[%s182 + $0x20] sm:$0xff] %v565
      %808 = vst [vmem:[%s182 + $0x28] sm:$0xff] %v568
      %809 = vst [vmem:[%s182 + $0x30] sm:$0xff] %v573
      %810 = vst [vmem:[%s182 + $0x38] sm:$0xff] %v576
      %811 = vst [vmem:[%s182 + $0x40] sm:$0xff] %v581
      %812 = vst [vmem:[%s182 + $0x48] sm:$0xff] %v584
      %813 = vst [vmem:[%s182 + $0x50] sm:$0xff] %v589
      %814 = vst [vmem:[%s182 + $0x58] sm:$0xff] %v592
      %815 = vst [vmem:[%s182 + $0x60] sm:$0xff] %v597
      %816 = vst [vmem:[%s182 + $0x68] sm:$0xff] %v600
      %817 = vst [vmem:[%s182 + $0x70] sm:$0xff] %v605
      %818 = vst [vmem:[%s182 + $0x78] sm:$0xff] %v608
      %819 = vst [vmem:[%s182 + $0x80] sm:$0xff] %v613
      %820 = vst [vmem:[%s182 + $0x88] sm:$0xff] %v616
      %821 = vst [vmem:[%s182 + $0x90] sm:$0xff] %v621
      %822 = vst [vmem:[%s182 + $0x98] sm:$0xff] %v624
      %823 = vst [vmem:[%s182 + $0xa0] sm:$0xff] %v629
      %824 = vst [vmem:[%s182 + $0xa8] sm:$0xff] %v632
      %825 = vst [vmem:[%s182 + $0xb0] sm:$0xff] %v637
      %826 = vst [vmem:[%s182 + $0xb8] sm:$0xff] %v640
      %827 = vst [vmem:[%s182 + $0xc0] sm:$0xff] %v645
      %828 = vst [vmem:[%s182 + $0xc8] sm:$0xff] %v648
      %829 = vst [vmem:[%s182 + $0xd0] sm:$0xff] %v653
      %830 = vst [vmem:[%s182 + $0xd8] sm:$0xff] %v656
      %831 = vst [vmem:[%s182 + $0xe0] sm:$0xff] %v661
      %832 = vst [vmem:[%s182 + $0xe8] sm:$0xff] %v664
      %833 = vst [vmem:[%s182 + $0xf0] sm:$0xff] %v669
      %834 = vst [vmem:[%s182 + $0xf8] sm:$0xff] %v672
      %835 = vst [vmem:[%s182 + $0x100] sm:$0xff] %v677
      %836 = vst [vmem:[%s182 + $0x108] sm:$0xff] %v680
      %837 = vst [vmem:[%s182 + $0x110] sm:$0xff] %v685
      %838 = vst [vmem:[%s182 + $0x118] sm:$0xff] %v688
      %839 = vst [vmem:[%s182 + $0x120] sm:$0xff] %v693
      %840 = vst [vmem:[%s182 + $0x128] sm:$0xff] %v696
      %841 = vst [vmem:[%s182 + $0x130] sm:$0xff] %v701
      %842 = vst [vmem:[%s182 + $0x138] sm:$0xff] %v704
      %843 = vst [vmem:[%s182 + $0x140] sm:$0xff] %v709
      %844 = vst [vmem:[%s182 + $0x148] sm:$0xff] %v712
      %845 = vst [vmem:[%s182 + $0x150] sm:$0xff] %v717
      %846 = vst [vmem:[%s182 + $0x158] sm:$0xff] %v720
      %847 = vst [vmem:[%s182 + $0x160] sm:$0xff] %v725
      %848 = vst [vmem:[%s182 + $0x168] sm:$0xff] %v728
      %849 = vst [vmem:[%s182 + $0x170] sm:$0xff] %v733
      %850 = vst [vmem:[%s182 + $0x178] sm:$0xff] %v736
      %851 = vst [vmem:[%s182 + $0x180] sm:$0xff] %v741
      %852 = vst [vmem:[%s182 + $0x188] sm:$0xff] %v744
      %853 = vst [vmem:[%s182 + $0x190] sm:$0xff] %v749
      %854 = vst [vmem:[%s182 + $0x198] sm:$0xff] %v752
      %855 = vst [vmem:[%s182 + $0x1a0] sm:$0xff] %v757
      %856 = vst [vmem:[%s182 + $0x1a8] sm:$0xff] %v760
      %857 = vst [vmem:[%s182 + $0x1b0] sm:$0xff] %v765
      %858 = vst [vmem:[%s182 + $0x1b8] sm:$0xff] %v768
      %859 = vst [vmem:[%s182 + $0x1c0] sm:$0xff] %v773
      %860 = vst [vmem:[%s182 + $0x1c8] sm:$0xff] %v776
      %861 = vst [vmem:[%s182 + $0x1d0] sm:$0xff] %v781
      %862 = vst [vmem:[%s182 + $0x1d8] sm:$0xff] %v784
      %863 = vst [vmem:[%s182 + $0x1e0] sm:$0xff] %v789
      %864 = vst [vmem:[%s182 + $0x1e8] sm:$0xff] %v792
      %865 = vst [vmem:[%s182 + $0x1f0] sm:$0xff] %v797
      %866 = vst [vmem:[%s182 + $0x1f8] sm:$0xff] %v800
      %s867 = smul.u32 64, %s17
      %p868 = scmp.lt.s32.totalorder %s867, 255
      %s869 = scalar_select %p868, %s867, 255
      %p870 = scmp.lt.s32.totalorder %s18, 0
      %s871 = scalar_select %p870, %s18, 0
      %s872 = sadd.s32 %s871, %s869
      %s873 = smul.addr %s872, 8
      %s874 = scalar_lea.vmem %s2, %s873
      // Predicated region
      $region29: #{generator_forward.26} parent=27 // pred_check
        %p875 = pneg %p97
      $region30: #{generator_forward.26} parent=27 // pred_check_branch
        %877 = sbr.rel (%p875) target = $region32
      $region31: #{generator_forward.26} parent=27 // pred_region
        %s878 = smul.u32 64, %s17
      $region32: #{generator_forward.26} parent=27 // pred_fallthru
        _
    $region28: #{generator_forward.26} parent=5 // pred_fallthru
      _
    %p879 = scmp.le.s32.totalorder 2, %s8
    // Predicated region
    $region33: #{generator_forward.26} parent=5 // pred_check
      %p880 = pneg %p879
    $region34: #{generator_forward.26} parent=5 // pred_check_branch
      %882 = sbr.rel (%p880) target = $region36
    $region35: #{generator_forward.26} parent=5 // pred_region
      %s883 = ssub.s32 %s8, 2
      // Predicated region
      $region37: #{generator_forward.26} parent=35 // pred_check
        %p884 = pneg %p103
      $region38: #{generator_forward.26} parent=35 // pred_check_branch
        %886 = sbr.rel (%p884) target = $region40
      $region39: #{generator_forward.26} parent=35 // pred_region
        %s887 = smul.u32 64, %s19
        %p888 = scmp.lt.s32.totalorder %s887, 255
        %s889 = scalar_select %p888, %s887, 255
        %p890 = scmp.lt.s32.totalorder %s20, 0
        %s891 = scalar_select %p890, %s20, 0
        %s892 = sadd.s32 %s891, %s889
        %s893 = smul.addr %s892, 8
        %s894 = scalar_lea.vmem %s2, %s893
      $region40: #{generator_forward.26} parent=35 // pred_fallthru
        _
    $region36: #{generator_forward.26} parent=5 // pred_fallthru
      _
  $region6: #{generator_forward.26} parent=0 // loop_footer
    %s12 = sadd.s32 1, %s8
  $region7: #{generator_forward.26} parent=0 // loop_footer_branch
    %7 = sbr.rel target = $region3
  $region8: #{generator_forward.26} parent=0 // loop_exit
    _

// kernel: tile.88
$region0: #{tile.88}
  #allocation0 [shape = 's32[1]{0}', space=sflag, size = 0x4, scoped, tag = 'scoped memory for tile.88']
  %s0 = inlined_call_operand.vmem [shape: f32[8], index: 0, kind: input, shape index: {}]
  %s1 = inlined_call_operand.vmem [shape: f32[64,8], index: 1, kind: output, shape index: {}]
  // Predicated region
  $region2: #{tile.88} parent=0 // pred_check
    _
  $region3: #{tile.88} parent=0 // pred_check_branch
    %3 = sbr.rel (0) target = $region5
  $region4: #{tile.88} parent=0 // pred_region
    _
  $region5: #{tile.88} parent=0 // pred_fallthru
    _
  %v4 = vld [vmem:[%s0] ss:$0 sm:$0xff]
  %5 = vst [vmem:[%s1] sm:$0xff] %v4
  %s6 = scalar_lea.vmem %s1, 8
  %7 = vst [vmem:[%s6] sm:$0xff] %v4
  %s8 = scalar_lea.vmem %s1, 16
  %9 = vst [vmem:[%s8] sm:$0xff] %v4
  %s10 = scalar_lea.vmem %s1, 24
  %11 = vst [vmem:[%s10] sm:$0xff] %v4
  %s12 = scalar_lea.vmem %s1, 32
  %13 = vst [vmem:[%s12] sm:$0xff] %v4
  %s14 = scalar_lea.vmem %s1, 40
  %15 = vst [vmem:[%s14] sm:$0xff] %v4
  %s16 = scalar_lea.vmem %s1, 48
  %17 = vst [vmem:[%s16] sm:$0xff] %v4
  %s18 = scalar_lea.vmem %s1, 56
  %19 = vst [vmem:[%s18] sm:$0xff] %v4

// kernel: tile.89
$region0: #{tile.89}
  %s0 = inlined_call_operand.vmem [shape: f32[64,8], index: 0, kind: input, shape index: {}]
  %s1 = inlined_call_operand.vmem [shape: f32[1,512], index: 1, kind: output, shape index: {}]
  $region1: #{tile.89} parent=0
    #allocation0 [shape = 'u8[16384]{0}', space=vmem, size = 0x4000, scoped, tag = 'scoped mem for output reshape']
    %s2 = smov 3
    %v3 = vld [vmem:[%s0] ss:$16 sm:%s2]
    %s4 = smov 12
    %v5 = vld [vmem:[%s0] ss:$16 sm:%s4]
    %vm6 = vcmask 1043458
    %v7 = vsel %vm6, %v5, %v3
    %vm8 = vcmask 64512
    %9 = vst.msk [vmem:[#allocation0] ss:$8 sm:$0xf] %vm8, %v7
    %s10 = scalar_lea.vmem %s0, 15
    %s11 = smov 3
    %v12 = vld [vmem:[%s10] ss:$16 sm:%s11]
    %s13 = scalar_lea.vmem %s0, 15
    %s14 = smov 12
    %v15 = vld [vmem:[%s13] ss:$16 sm:%s14]
    %vm16 = vcmask 1043458
    %v17 = vsel %vm16, %v15, %v12
    %18 = vrot.lane.b32.xlu0 %v17, 120
    %v19 = vpop.permute.xlu0 %18
    %vm20 = vcmask 1048512
    %21 = vst.msk [vmem:[#allocation0] ss:$8 sm:$0xf] %vm20, %v19
    %s22 = scalar_lea.vmem %s0, 14
    %s23 = smov 3
    %v24 = vld [vmem:[%s22] ss:$16 sm:%s23]
    %s25 = scalar_lea.vmem %s0, 14
    %s26 = smov 12
    %v27 = vld [vmem:[%s25] ss:$16 sm:%s26]
    %vm28 = vcmask 1043458
    %v29 = vsel %vm28, %v27, %v24
    %30 = vrot.lane.b32.xlu0 %v29, 112
    %v31 = vpop.permute.xlu0 %30
    %vm32 = vcmask 982912
    %33 = vst.msk [vmem:[#allocation0] ss:$8 sm:$0xf] %vm32, %v31
    %s34 = scalar_lea.vmem %s0, 13
    %s35 = smov 3
    %v36 = vld [vmem:[%s34] ss:$16 sm:%s35]
    %s37 = scalar_lea.vmem %s0, 13
    %s38 = smov 12
    %v39 = vld [vmem:[%s37] ss:$16 sm:%s38]
    %vm40 = vcmask 1043458
    %v41 = vsel %vm40, %v39, %v36
    %42 = vrot.lane.b32.xlu0 %v41, 104
    %v43 = vpop.permute.xlu0 %42
    %vm44 = vcmask 917312
    %45 = vst.msk [vmem:[#allocation0] ss:$8 sm:$0xf] %vm44, %v43
    %s46 = scalar_lea.vmem %s0, 12
    %s47 = smov 3
    %v48 = vld [vmem:[%s46] ss:$16 sm:%s47]
    %s49 = scalar_lea.vmem %s0, 12
    %s50 = smov 12
    %v51 = vld [vmem:[%s49] ss:$16 sm:%s50]
    %vm52 = vcmask 1043458
    %v53 = vsel %vm52, %v51, %v48
    %54 = vrot.lane.b32.xlu0 %v53, 96
    %v55 = vpop.permute.xlu0 %54
    %vm56 = vcmask 851712
    %57 = vst.msk [vmem:[#allocation0] ss:$8 sm:$0xf] %vm56, %v55
    %s58 = scalar_lea.vmem %s0, 11
    %s59 = smov 3
    %v60 = vld [vmem:[%s58] ss:$16 sm:%s59]
    %s61 = scalar_lea.vmem %s0, 11
    %s62 = smov 12
    %v63 = vld [vmem:[%s61] ss:$16 sm:%s62]
    %vm64 = vcmask 1043458
    %v65 = vsel %vm64, %v63, %v60
    %66 = vrot.lane.b32.xlu0 %v65, 88
    %v67 = vpop.permute.xlu0 %66
    %vm68 = vcmask 786112
    %69 = vst.msk [vmem:[#allocation0] ss:$8 sm:$0xf] %vm68, %v67
    %s70 = scalar_lea.vmem %s0, 10
    %s71 = smov 3
    %v72 = vld [vmem:[%s70] ss:$16 sm:%s71]
    %s73 = scalar_lea.vmem %s0, 10
    %s74 = smov 12
    %v75 = vld [vmem:[%s73] ss:$16 sm:%s74]
    %vm76 = vcmask 1043458
    %v77 = vsel %vm76, %v75, %v72
    %78 = vrot.lane.b32.xlu0 %v77, 80
    %v79 = vpop.permute.xlu0 %78
    %vm80 = vcmask 720512
    %81 = vst.msk [vmem:[#allocation0] ss:$8 sm:$0xf] %vm80, %v79
    %s82 = scalar_lea.vmem %s0, 9
    %s83 = smov 3
    %v84 = vld [vmem:[%s82] ss:$16 sm:%s83]
    %s85 = scalar_lea.vmem %s0, 9
    %s86 = smov 12
    %v87 = vld [vmem:[%s85] ss:$16 sm:%s86]
    %vm88 = vcmask 1043458
    %v89 = vsel %vm88, %v87, %v84
    %90 = vrot.lane.b32.xlu0 %v89, 72
    %v91 = vpop.permute.xlu0 %90
    %vm92 = vcmask 654912
    %93 = vst.msk [vmem:[#allocation0] ss:$8 sm:$0xf] %vm92, %v91
    %s94 = scalar_lea.vmem %s0, 8
    %s95 = smov 3
    %v96 = vld [vmem:[%s94] ss:$16 sm:%s95]
    %s97 = scalar_lea.vmem %s0, 8
    %s98 = smov 12
    %v99 = vld [vmem:[%s97] ss:$16 sm:%s98]
    %vm100 = vcmask 1043458
    %v101 = vsel %vm100, %v99, %v96
    %102 = vrot.lane.b32.xlu0 %v101, 64
    %v103 = vpop.permute.xlu0 %102
    %vm104 = vcmask 589312
    %105 = vst.msk [vmem:[#allocation0] ss:$8 sm:$0xf] %vm104, %v103
    %s106 = scalar_lea.vmem %s0, 7
    %s107 = smov 3
    %v108 = vld [vmem:[%s106] ss:$16 sm:%s107]
    %s109 = scalar_lea.vmem %s0, 7
    %s110 = smov 12
    %v111 = vld [vmem:[%s109] ss:$16 sm:%s110]
    %vm112 = vcmask 1043458
    %v113 = vsel %vm112, %v111, %v108
    %114 = vrot.lane.b32.xlu0 %v113, 56
    %v115 = vpop.permute.xlu0 %114
    %vm116 = vcmask 523712
    %117 = vst.msk [vmem:[#allocation0] ss:$8 sm:$0xf] %vm116, %v115
    %s118 = scalar_lea.vmem %s0, 6
    %s119 = smov 3
    %v120 = vld [vmem:[%s118] ss:$16 sm:%s119]
    %s121 = scalar_lea.vmem %s0, 6
    %s122 = smov 12
    %v123 = vld [vmem:[%s121] ss:$16 sm:%s122]
    %vm124 = vcmask 1043458
    %v125 = vsel %vm124, %v123, %v120
    %126 = vrot.lane.b32.xlu0 %v125, 48
    %v127 = vpop.permute.xlu0 %126
    %vm128 = vcmask 458112
    %129 = vst.msk [vmem:[#allocation0] ss:$8 sm:$0xf] %vm128, %v127
    %s130 = scalar_lea.vmem %s0, 5
    %s131 = smov 3
    %v132 = vld [vmem:[%s130] ss:$16 sm:%s131]
    %s133 = scalar_lea.vmem %s0, 5
    %s134 = smov 12
    %v135 = vld [vmem:[%s133] ss:$16 sm:%s134]
    %vm136 = vcmask 1043458
    %v137 = vsel %vm136, %v135, %v132
    %138 = vrot.lane.b32.xlu0 %v137, 40
    %v139 = vpop.permute.xlu0 %138
    %vm140 = vcmask 392512
    %141 = vst.msk [vmem:[#allocation0] ss:$8 sm:$0xf] %vm140, %v139
    %s142 = scalar_lea.vmem %s0, 4
    %s143 = smov 3
    %v144 = vld [vmem:[%s142] ss:$16 sm:%s143]
    %s145 = scalar_lea.vmem %s0, 4
    %s146 = smov 12
    %v147 = vld [vmem:[%s145] ss:$16 sm:%s146]
    %vm148 = vcmask 1043458
    %v149 = vsel %vm148, %v147, %v144
    %150 = vrot.lane.b32.xlu0 %v149, 32
    %v151 = vpop.permute.xlu0 %150
    %vm152 = vcmask 326912
    %153 = vst.msk [vmem:[#allocation0] ss:$8 sm:$0xf] %vm152, %v151
    %s154 = scalar_lea.vmem %s0, 3
    %s155 = smov 3
    %v156 = vld [vmem:[%s154] ss:$16 sm:%s155]
    %s157 = scalar_lea.vmem %s0, 3
    %s158 = smov 12
    %v159 = vld [vmem:[%s157] ss:$16 sm:%s158]
    %vm160 = vcmask 1043458
    %v161 = vsel %vm160, %v159, %v156
    %162 = vrot.lane.b32.xlu0 %v161, 24
    %v163 = vpop.permute.xlu0 %162
    %vm164 = vcmask 261312
    %165 = vst.msk [vmem:[#allocation0] ss:$8 sm:$0xf] %vm164, %v163
    %s166 = scalar_lea.vmem %s0, 2
    %s167 = smov 3
    %v168 = vld [vmem:[%s166] ss:$16 sm:%s167]
    %s169 = scalar_lea.vmem %s0, 2
    %s170 = smov 12
    %v171 = vld [vmem:[%s169] ss:$16 sm:%s170]
    %vm172 = vcmask 1043458
    %v173 = vsel %vm172, %v171, %v168
    %174 = vrot.lane.b32.xlu0 %v173, 16
    %v175 = vpop.permute.xlu0 %174
    %vm176 = vcmask 195712
    %177 = vst.msk [vmem:[#allocation0] ss:$8 sm:$0xf] %vm176, %v175
    %s178 = scalar_lea.vmem %s0, 1
    %s179 = smov 3
    %v180 = vld [vmem:[%s178] ss:$16 sm:%s179]
    %s181 = scalar_lea.vmem %s0, 1
    %s182 = smov 12
    %v183 = vld [vmem:[%s181] ss:$16 sm:%s182]
    %vm184 = vcmask 1043458
    %v185 = vsel %vm184, %v183, %v180
    %186 = vrot.lane.b32.xlu0 %v185, 8
    %v187 = vpop.permute.xlu0 %186
    %vm188 = vcmask 130112
    %189 = vst.msk [vmem:[#allocation0] ss:$8 sm:$0xf] %vm188, %v187
    %s191 = sshllo.u32 0, 1
    %v193 = vld [vmem:[#allocation0] sm:%s191]
    %s194 = sshllo.u32 0, 1
    %195 = vst [vmem:[%s1] sm:%s194] %v193
    %s196 = scalar_lea.vmem [#allocation0], 8
    %v197 = vld [vmem:[%s196] sm:%s191]
    %s198 = sshllo.u32 0, 1
    %s199 = scalar_lea.vmem %s1, 1
    %200 = vst [vmem:[%s199] sm:%s198] %v197
    %s201 = scalar_lea.vmem [#allocation0], 16
    %v202 = vld [vmem:[%s201] sm:%s191]
    %s203 = sshllo.u32 0, 1
    %s204 = smul.addr 1, 2
    %s205 = scalar_lea.vmem %s1, %s204
    %206 = vst [vmem:[%s205] sm:%s203] %v202
    %s207 = scalar_lea.vmem [#allocation0], 24
    %v208 = vld [vmem:[%s207] sm:%s191]
    %s209 = sshllo.u32 0, 1
    %s210 = smul.addr 1, 3
    %s211 = scalar_lea.vmem %s1, %s210
    %212 = vst [vmem:[%s211] sm:%s209] %v208

// kernel: generator_forward.27
$region0: #{generator_forward.27}
  #allocation0 [shape = 'u32[]', space=smem, size = 0x4, offset = 0x4, fixed_abs, tag = 'smem constant byte address 0x4 - core index']
  #allocation1 [shape = 'u32[144,128]{1,0:T(1,128)}', space=vmem, size = 0x12000, scoped, tag = 'internal scratch']
  %s0 = inlined_call_operand.vmem [shape: f32[128,512], index: 0, kind: input, shape index: {}]
  %s1 = inlined_call_operand.vmem [shape: f32[1,512], index: 1, kind: input, shape index: {}]
  %s2 = inlined_call_operand.vmem [shape: f32[1,512], index: 2, kind: input, shape index: {}]
  %s3 = inlined_call_operand.vmem [shape: f32[128,512], index: 3, kind: output, shape index: {}]
  %s4 = sld [smem:[#allocation0]]
  $region22: #{generator_forward.27} parent=0
    _
  %s6 = ssub.s32 1, %s4
  %s7 = scalar_select 0, %s6, %s4
  // Predicated region
  $region2: #{generator_forward.27} parent=0 // pred_check
    _
  $region3: #{generator_forward.27} parent=0 // pred_check_branch
    %9 = sbr.rel (0) target = $region5
  $region4: #{generator_forward.27} parent=0 // pred_region
    _
  $region5: #{generator_forward.27} parent=0 // pred_fallthru
    _
  // Predicated region
  $region6: #{generator_forward.27} parent=0 // pred_check
    _
  $region7: #{generator_forward.27} parent=0 // pred_check_branch
    %11 = sbr.rel (0) target = $region9
  $region8: #{generator_forward.27} parent=0 // pred_region
    _
  $region9: #{generator_forward.27} parent=0 // pred_fallthru
    _
  // Predicated region
  $region10: #{generator_forward.27} parent=0 // pred_check
    _
  $region11: #{generator_forward.27} parent=0 // pred_check_branch
    %13 = sbr.rel (0) target = $region13
  $region12: #{generator_forward.27} parent=0 // pred_region
    _
  $region13: #{generator_forward.27} parent=0 // pred_fallthru
    _
  %v14 = vld [vmem:[%s0] sm:$0xff]
  %v15 = vld [vmem:[%s0 + $0x8] sm:$0xff]
  %v16 = vld [vmem:[%s0 + $0x10] sm:$0xff]
  %v17 = vld [vmem:[%s0 + $0x18] sm:$0xff]
  %v18 = vld [vmem:[%s0 + $0x20] sm:$0xff]
  %v19 = vld [vmem:[%s0 + $0x28] sm:$0xff]
  %v20 = vld [vmem:[%s0 + $0x30] sm:$0xff]
  %v21 = vld [vmem:[%s0 + $0x38] sm:$0xff]
  %v22 = vld [vmem:[%s0 + $0x40] sm:$0xff]
  %v23 = vld [vmem:[%s0 + $0x48] sm:$0xff]
  %v24 = vld [vmem:[%s0 + $0x50] sm:$0xff]
  %v25 = vld [vmem:[%s0 + $0x58] sm:$0xff]
  %v26 = vld [vmem:[%s0 + $0x60] sm:$0xff]
  %v27 = vld [vmem:[%s0 + $0x68] sm:$0xff]
  %v28 = vld [vmem:[%s0 + $0x70] sm:$0xff]
  %v29 = vld [vmem:[%s0 + $0x78] sm:$0xff]
  %v30 = vld [vmem:[%s0 + $0x80] sm:$0xff]
  %v31 = vld [vmem:[%s0 + $0x88] sm:$0xff]
  %v32 = vld [vmem:[%s0 + $0x90] sm:$0xff]
  %v33 = vld [vmem:[%s0 + $0x98] sm:$0xff]
  %v34 = vld [vmem:[%s0 + $0xa0] sm:$0xff]
  %v35 = vld [vmem:[%s0 + $0xa8] sm:$0xff]
  %v36 = vld [vmem:[%s0 + $0xb0] sm:$0xff]
  %v37 = vld [vmem:[%s0 + $0xb8] sm:$0xff]
  %v38 = vld [vmem:[%s0 + $0xc0] sm:$0xff]
  %v39 = vld [vmem:[%s0 + $0xc8] sm:$0xff]
  %v40 = vld [vmem:[%s0 + $0xd0] sm:$0xff]
  %v41 = vld [vmem:[%s0 + $0xd8] sm:$0xff]
  %v42 = vld [vmem:[%s0 + $0xe0] sm:$0xff]
  %v43 = vld [vmem:[%s0 + $0xe8] sm:$0xff]
  %v44 = vld [vmem:[%s0 + $0xf0] sm:$0xff]
  %v45 = vld [vmem:[%s0 + $0xf8] sm:$0xff]
  %v46 = vld [vmem:[%s0 + $0x100] sm:$0xff]
  %v47 = vld [vmem:[%s0 + $0x108] sm:$0xff]
  %v48 = vld [vmem:[%s0 + $0x110] sm:$0xff]
  %v49 = vld [vmem:[%s0 + $0x118] sm:$0xff]
  %v50 = vld [vmem:[%s0 + $0x120] sm:$0xff]
  %v51 = vld [vmem:[%s0 + $0x128] sm:$0xff]
  %v52 = vld [vmem:[%s0 + $0x130] sm:$0xff]
  %v53 = vld [vmem:[%s0 + $0x138] sm:$0xff]
  %v54 = vld [vmem:[%s0 + $0x140] sm:$0xff]
  %v55 = vld [vmem:[%s0 + $0x148] sm:$0xff]
  %v56 = vld [vmem:[%s0 + $0x150] sm:$0xff]
  %v57 = vld [vmem:[%s0 + $0x158] sm:$0xff]
  %v58 = vld [vmem:[%s0 + $0x160] sm:$0xff]
  %v59 = vld [vmem:[%s0 + $0x168] sm:$0xff]
  %v60 = vld [vmem:[%s0 + $0x170] sm:$0xff]
  %v61 = vld [vmem:[%s0 + $0x178] sm:$0xff]
  %v62 = vld [vmem:[%s0 + $0x180] sm:$0xff]
  %v63 = vld [vmem:[%s0 + $0x188] sm:$0xff]
  %v64 = vld [vmem:[%s0 + $0x190] sm:$0xff]
  %v65 = vld [vmem:[%s0 + $0x198] sm:$0xff]
  %v66 = vld [vmem:[%s0 + $0x1a0] sm:$0xff]
  %v67 = vld [vmem:[%s0 + $0x1a8] sm:$0xff]
  %v68 = vld [vmem:[%s0 + $0x1b0] sm:$0xff]
  %v69 = vld [vmem:[%s0 + $0x1b8] sm:$0xff]
  %v70 = vld [vmem:[%s0 + $0x1c0] sm:$0xff]
  %v71 = vld [vmem:[%s0 + $0x1c8] sm:$0xff]
  %v72 = vld [vmem:[%s0 + $0x1d0] sm:$0xff]
  %v73 = vld [vmem:[%s0 + $0x1d8] sm:$0xff]
  %v74 = vld [vmem:[%s0 + $0x1e0] sm:$0xff]
  %v75 = vld [vmem:[%s0 + $0x1e8] sm:$0xff]
  %v76 = vld [vmem:[%s0 + $0x1f0] sm:$0xff]
  %v77 = vld [vmem:[%s0 + $0x1f8] sm:$0xff]
  %v78 = vld [vmem:[%s1] sm:$0xf]
  %v80 = vlaneseq
  %v81 = vshrl.u32 %v80, 7
  %v82 = vsub.s32 0, %v81
  %v83 = vrot.slane %v78, %v82
  %v84 = vlaneseq
  %v85 = vshrl.u32 %v84, 7
  %v86 = vsub.s32 1, %v85
  %v87 = vrot.slane %v78, %v86
  %v88 = vlaneseq
  %v89 = vshrl.u32 %v88, 7
  %v90 = vsub.s32 2, %v89
  %v91 = vrot.slane %v78, %v90
  %v92 = vlaneseq
  %v93 = vshrl.u32 %v92, 7
  %v94 = vsub.s32 3, %v93
  %v95 = vrot.slane %v78, %v94
  %v100 = vmul.f32 %v14, %v83
  %v101 = vmul.f32 %v15, %v87
  %v102 = vmul.f32 %v16, %v91
  %v103 = vmul.f32 %v17, %v95
  %v104 = vmul.f32 %v18, %v83
  %v105 = vmul.f32 %v19, %v87
  %v106 = vmul.f32 %v20, %v91
  %v107 = vmul.f32 %v21, %v95
  %v108 = vmul.f32 %v22, %v83
  %v109 = vmul.f32 %v23, %v87
  %v110 = vmul.f32 %v24, %v91
  %v111 = vmul.f32 %v25, %v95
  %v112 = vmul.f32 %v26, %v83
  %v113 = vmul.f32 %v27, %v87
  %v114 = vmul.f32 %v28, %v91
  %v115 = vmul.f32 %v29, %v95
  %v116 = vmul.f32 %v30, %v83
  %v117 = vmul.f32 %v31, %v87
  %v118 = vmul.f32 %v32, %v91
  %v119 = vmul.f32 %v33, %v95
  %v120 = vmul.f32 %v34, %v83
  %v121 = vmul.f32 %v35, %v87
  %v122 = vmul.f32 %v36, %v91
  %v123 = vmul.f32 %v37, %v95
  %v124 = vmul.f32 %v38, %v83
  %v125 = vmul.f32 %v39, %v87
  %v126 = vmul.f32 %v40, %v91
  %v127 = vmul.f32 %v41, %v95
  %v128 = vmul.f32 %v42, %v83
  %v129 = vmul.f32 %v43, %v87
  %v130 = vmul.f32 %v44, %v91
  %v131 = vmul.f32 %v45, %v95
  %v132 = vmul.f32 %v46, %v83
  %v133 = vmul.f32 %v47, %v87
  %v134 = vmul.f32 %v48, %v91
  %v135 = vmul.f32 %v49, %v95
  %v136 = vmul.f32 %v50, %v83
  %v137 = vmul.f32 %v51, %v87
  %v138 = vmul.f32 %v52, %v91
  %v139 = vmul.f32 %v53, %v95
  %v140 = vmul.f32 %v54, %v83
  %v141 = vmul.f32 %v55, %v87
  %v142 = vmul.f32 %v56, %v91
  %v143 = vmul.f32 %v57, %v95
  %v144 = vmul.f32 %v58, %v83
  %v145 = vmul.f32 %v59, %v87
  %v146 = vmul.f32 %v60, %v91
  %v147 = vmul.f32 %v61, %v95
  %v148 = vmul.f32 %v62, %v83
  %v149 = vmul.f32 %v63, %v87
  %v150 = vmul.f32 %v64, %v91
  %v151 = vmul.f32 %v65, %v95
  %v152 = vmul.f32 %v66, %v83
  %v153 = vmul.f32 %v67, %v87
  %v154 = vmul.f32 %v68, %v91
  %v155 = vmul.f32 %v69, %v95
  %v156 = vmul.f32 %v70, %v83
  %v157 = vmul.f32 %v71, %v87
  %v158 = vmul.f32 %v72, %v91
  %v159 = vmul.f32 %v73, %v95
  %v160 = vmul.f32 %v74, %v83
  %v161 = vmul.f32 %v75, %v87
  %v162 = vmul.f32 %v76, %v91
  %v163 = vmul.f32 %v77, %v95
  %v164 = vld [vmem:[%s2] sm:$0xf]
  %v166 = vlaneseq
  %v167 = vshrl.u32 %v166, 7
  %v168 = vsub.s32 0, %v167
  %v169 = vrot.slane %v164, %v168
  %v170 = vlaneseq
  %v171 = vshrl.u32 %v170, 7
  %v172 = vsub.s32 1, %v171
  %v173 = vrot.slane %v164, %v172
  %v174 = vlaneseq
  %v175 = vshrl.u32 %v174, 7
  %v176 = vsub.s32 2, %v175
  %v177 = vrot.slane %v164, %v176
  %v178 = vlaneseq
  %v179 = vshrl.u32 %v178, 7
  %v180 = vsub.s32 3, %v179
  %v181 = vrot.slane %v164, %v180
  %v186 = vadd.f32 %v100, %v169
  %v187 = vadd.f32 %v101, %v173
  %v188 = vadd.f32 %v102, %v177
  %v189 = vadd.f32 %v103, %v181
  %v190 = vadd.f32 %v104, %v169
  %v191 = vadd.f32 %v105, %v173
  %v192 = vadd.f32 %v106, %v177
  %v193 = vadd.f32 %v107, %v181
  %v194 = vadd.f32 %v108, %v169
  %v195 = vadd.f32 %v109, %v173
  %v196 = vadd.f32 %v110, %v177
  %v197 = vadd.f32 %v111, %v181
  %v198 = vadd.f32 %v112, %v169
  %v199 = vadd.f32 %v113, %v173
  %v200 = vadd.f32 %v114, %v177
  %v201 = vadd.f32 %v115, %v181
  %v202 = vadd.f32 %v116, %v169
  %v203 = vadd.f32 %v117, %v173
  %v204 = vadd.f32 %v118, %v177
  %v205 = vadd.f32 %v119, %v181
  %v206 = vadd.f32 %v120, %v169
  %v207 = vadd.f32 %v121, %v173
  %v208 = vadd.f32 %v122, %v177
  %v209 = vadd.f32 %v123, %v181
  %v210 = vadd.f32 %v124, %v169
  %v211 = vadd.f32 %v125, %v173
  %v212 = vadd.f32 %v126, %v177
  %v213 = vadd.f32 %v127, %v181
  %v214 = vadd.f32 %v128, %v169
  %v215 = vadd.f32 %v129, %v173
  %v216 = vadd.f32 %v130, %v177
  %v217 = vadd.f32 %v131, %v181
  %v218 = vadd.f32 %v132, %v169
  %v219 = vadd.f32 %v133, %v173
  %v220 = vadd.f32 %v134, %v177
  %v221 = vadd.f32 %v135, %v181
  %v222 = vadd.f32 %v136, %v169
  %v223 = vadd.f32 %v137, %v173
  %v224 = vadd.f32 %v138, %v177
  %v225 = vadd.f32 %v139, %v181
  %v226 = vadd.f32 %v140, %v169
  %v227 = vadd.f32 %v141, %v173
  %v228 = vadd.f32 %v142, %v177
  %v229 = vadd.f32 %v143, %v181
  %v230 = vadd.f32 %v144, %v169
  %v231 = vadd.f32 %v145, %v173
  %v232 = vadd.f32 %v146, %v177
  %v233 = vadd.f32 %v147, %v181
  %v234 = vadd.f32 %v148, %v169
  %v235 = vadd.f32 %v149, %v173
  %v236 = vadd.f32 %v150, %v177
  %v237 = vadd.f32 %v151, %v181
  %v238 = vadd.f32 %v152, %v169
  %v239 = vadd.f32 %v153, %v173
  %v240 = vadd.f32 %v154, %v177
  %v241 = vadd.f32 %v155, %v181
  %v242 = vadd.f32 %v156, %v169
  %v243 = vadd.f32 %v157, %v173
  %v244 = vadd.f32 %v158, %v177
  %v245 = vadd.f32 %v159, %v181
  %v246 = vadd.f32 %v160, %v169
  %v247 = vadd.f32 %v161, %v173
  %v248 = vadd.f32 %v162, %v177
  %v249 = vadd.f32 %v163, %v181
  %v250 = vtanh.pop %v186
  %v251 = vtanh.pop %v187
  %v252 = vtanh.pop %v188
  %v253 = vtanh.pop %v189
  %v254 = vtanh.pop %v190
  %v255 = vtanh.pop %v191
  %v256 = vtanh.pop %v192
  %v257 = vtanh.pop %v193
  %v258 = vtanh.pop %v194
  %v259 = vtanh.pop %v195
  %v260 = vtanh.pop %v196
  %v261 = vtanh.pop %v197
  %v262 = vtanh.pop %v198
  %v263 = vtanh.pop %v199
  %v264 = vtanh.pop %v200
  %v265 = vtanh.pop %v201
  %v266 = vtanh.pop %v202
  %v267 = vtanh.pop %v203
  %v268 = vtanh.pop %v204
  %v269 = vtanh.pop %v205
  %v270 = vtanh.pop %v206
  %v271 = vtanh.pop %v207
  %v272 = vtanh.pop %v208
  %v273 = vtanh.pop %v209
  %v274 = vtanh.pop %v210
  %v275 = vtanh.pop %v211
  %v276 = vtanh.pop %v212
  %v277 = vtanh.pop %v213
  %v278 = vtanh.pop %v214
  %v279 = vtanh.pop %v215
  %v280 = vtanh.pop %v216
  %v281 = vtanh.pop %v217
  %v282 = vtanh.pop %v218
  %v283 = vtanh.pop %v219
  %v284 = vtanh.pop %v220
  %v285 = vtanh.pop %v221
  %v286 = vtanh.pop %v222
  %v287 = vtanh.pop %v223
  %v288 = vtanh.pop %v224
  %v289 = vtanh.pop %v225
  %v290 = vtanh.pop %v226
  %v291 = vtanh.pop %v227
  %v292 = vtanh.pop %v228
  %v293 = vtanh.pop %v229
  %v294 = vtanh.pop %v230
  %v295 = vtanh.pop %v231
  %v296 = vtanh.pop %v232
  %v297 = vtanh.pop %v233
  %v298 = vtanh.pop %v234
  %v299 = vtanh.pop %v235
  %v300 = vtanh.pop %v236
  %v301 = vtanh.pop %v237
  %v302 = vtanh.pop %v238
  %v303 = vtanh.pop %v239
  %v304 = vtanh.pop %v240
  %v305 = vtanh.pop %v241
  %v306 = vtanh.pop %v242
  %v307 = vtanh.pop %v243
  %v308 = vtanh.pop %v244
  %v309 = vtanh.pop %v245
  %v310 = vtanh.pop %v246
  %v311 = vtanh.pop %v247
  %v312 = vtanh.pop %v248
  %v313 = vtanh.pop %v249
  %314 = vst [vmem:[%s3] sm:$0xff] %v250
  %315 = vst [vmem:[%s3 + $0x8] sm:$0xff] %v251
  %316 = vst [vmem:[%s3 + $0x10] sm:$0xff] %v252
  %317 = vst [vmem:[%s3 + $0x18] sm:$0xff] %v253
  %318 = vst [vmem:[%s3 + $0x20] sm:$0xff] %v254
  %319 = vst [vmem:[%s3 + $0x28] sm:$0xff] %v255
  %320 = vst [vmem:[%s3 + $0x30] sm:$0xff] %v256
  %321 = vst [vmem:[%s3 + $0x38] sm:$0xff] %v257
  %322 = vst [vmem:[%s3 + $0x40] sm:$0xff] %v258
  %323 = vst [vmem:[%s3 + $0x48] sm:$0xff] %v259
  %324 = vst [vmem:[%s3 + $0x50] sm:$0xff] %v260
  %325 = vst [vmem:[%s3 + $0x58] sm:$0xff] %v261
  %326 = vst [vmem:[%s3 + $0x60] sm:$0xff] %v262
  %327 = vst [vmem:[%s3 + $0x68] sm:$0xff] %v263
  %328 = vst [vmem:[%s3 + $0x70] sm:$0xff] %v264
  %329 = vst [vmem:[%s3 + $0x78] sm:$0xff] %v265
  %330 = vst [vmem:[%s3 + $0x80] sm:$0xff] %v266
  %331 = vst [vmem:[%s3 + $0x88] sm:$0xff] %v267
  %332 = vst [vmem:[%s3 + $0x90] sm:$0xff] %v268
  %333 = vst [vmem:[%s3 + $0x98] sm:$0xff] %v269
  %334 = vst [vmem:[%s3 + $0xa0] sm:$0xff] %v270
  %335 = vst [vmem:[%s3 + $0xa8] sm:$0xff] %v271
  %336 = vst [vmem:[%s3 + $0xb0] sm:$0xff] %v272
  %337 = vst [vmem:[%s3 + $0xb8] sm:$0xff] %v273
  %338 = vst [vmem:[%s3 + $0xc0] sm:$0xff] %v274
  %339 = vst [vmem:[%s3 + $0xc8] sm:$0xff] %v275
  %340 = vst [vmem:[%s3 + $0xd0] sm:$0xff] %v276
  %341 = vst [vmem:[%s3 + $0xd8] sm:$0xff] %v277
  %342 = vst [vmem:[%s3 + $0xe0] sm:$0xff] %v278
  %343 = vst [vmem:[%s3 + $0xe8] sm:$0xff] %v279
  %344 = vst [vmem:[%s3 + $0xf0] sm:$0xff] %v280
  %345 = vst [vmem:[%s3 + $0xf8] sm:$0xff] %v281
  %346 = vst [vmem:[%s3 + $0x100] sm:$0xff] %v282
  %347 = vst [vmem:[%s3 + $0x108] sm:$0xff] %v283
  %348 = vst [vmem:[%s3 + $0x110] sm:$0xff] %v284
  %349 = vst [vmem:[%s3 + $0x118] sm:$0xff] %v285
  %350 = vst [vmem:[%s3 + $0x120] sm:$0xff] %v286
  %351 = vst [vmem:[%s3 + $0x128] sm:$0xff] %v287
  %352 = vst [vmem:[%s3 + $0x130] sm:$0xff] %v288
  %353 = vst [vmem:[%s3 + $0x138] sm:$0xff] %v289
  %354 = vst [vmem:[%s3 + $0x140] sm:$0xff] %v290
  %355 = vst [vmem:[%s3 + $0x148] sm:$0xff] %v291
  %356 = vst [vmem:[%s3 + $0x150] sm:$0xff] %v292
  %357 = vst [vmem:[%s3 + $0x158] sm:$0xff] %v293
  %358 = vst [vmem:[%s3 + $0x160] sm:$0xff] %v294
  %359 = vst [vmem:[%s3 + $0x168] sm:$0xff] %v295
  %360 = vst [vmem:[%s3 + $0x170] sm:$0xff] %v296
  %361 = vst [vmem:[%s3 + $0x178] sm:$0xff] %v297
  %362 = vst [vmem:[%s3 + $0x180] sm:$0xff] %v298
  %363 = vst [vmem:[%s3 + $0x188] sm:$0xff] %v299
  %364 = vst [vmem:[%s3 + $0x190] sm:$0xff] %v300
  %365 = vst [vmem:[%s3 + $0x198] sm:$0xff] %v301
  %366 = vst [vmem:[%s3 + $0x1a0] sm:$0xff] %v302
  %367 = vst [vmem:[%s3 + $0x1a8] sm:$0xff] %v303
  %368 = vst [vmem:[%s3 + $0x1b0] sm:$0xff] %v304
  %369 = vst [vmem:[%s3 + $0x1b8] sm:$0xff] %v305
  %370 = vst [vmem:[%s3 + $0x1c0] sm:$0xff] %v306
  %371 = vst [vmem:[%s3 + $0x1c8] sm:$0xff] %v307
  %372 = vst [vmem:[%s3 + $0x1d0] sm:$0xff] %v308
  %373 = vst [vmem:[%s3 + $0x1d8] sm:$0xff] %v309
  %374 = vst [vmem:[%s3 + $0x1e0] sm:$0xff] %v310
  %375 = vst [vmem:[%s3 + $0x1e8] sm:$0xff] %v311
  %376 = vst [vmem:[%s3 + $0x1f0] sm:$0xff] %v312
  %377 = vst [vmem:[%s3 + $0x1f8] sm:$0xff] %v313
  // Predicated region
  $region14: #{generator_forward.27} parent=0 // pred_check
    _
  $region15: #{generator_forward.27} parent=0 // pred_check_branch
    %379 = sbr.rel (0) target = $region17
  $region16: #{generator_forward.27} parent=0 // pred_region
    _
  $region17: #{generator_forward.27} parent=0 // pred_fallthru
    _
  // Predicated region
  $region18: #{generator_forward.27} parent=0 // pred_check
    _
  $region19: #{generator_forward.27} parent=0 // pred_check_branch
    %381 = sbr.rel (0) target = $region21
  $region20: #{generator_forward.27} parent=0 // pred_region
    _
  $region21: #{generator_forward.27} parent=0 // pred_fallthru
    _

</llo_original>
